<compile_context>
chip_gen: v7x
topology: tpu7x:2x2x1
jax: 0.10.0
libtpu: 0.0.40
codegen_flags: <defaults>
</compile_context>

<pallas_src>
import jax
import jax.numpy as jnp
from jax.experimental import pallas as pl
from jax.experimental.pallas import tpu as pltpu

EPS_BN = 1e-5
MXU_DTYPE = jnp.bfloat16      # set to jnp.float32 for bit-closer parity with the f32 model
QNET_TILE_CAP = 1024          # point-tile cap (re-derive if activations go bf16 end-to-end)
VMEM_LIMIT = 32 * 1024 * 1024


def _round_up(n, m):
    return ((n + m - 1) // m) * m


def _bn_affine(gamma, beta, mean, var):
    scale = gamma / jnp.sqrt(var + EPS_BN)
    shift = beta - mean * scale
    return scale.astype(jnp.float32), shift.astype(jnp.float32)


def _fixed2(a):
    """BlockSpec for a grid-invariant 2-D array under a 2-D grid."""
    return pl.BlockSpec(a.shape, lambda b, k: (0, 0))


# ---------------------------------------------------------------------------
# Kernel 1: qnet trunk (conv1..conv3 + running max over points).
# Point-major layout (points on sublanes, channels on lanes).
#   grid = (B, Np // TN); output (B, 1, 1024) is resident across the point axis.
# ---------------------------------------------------------------------------
def _qnet_trunk_kernel(x_ref,
                       w1, s1, b1,      # (3,64),    (1,64),   (1,64)
                       w2, s2, b2,      # (64,128),  (1,128),  (1,128)
                       w3, s3, b3,      # (128,1024),(1,1024), (1,1024)
                       g_ref):          # (1,1,1024) running max (output-resident)
    k = pl.program_id(1)

    @pl.when(k == 0)
    def _():
        g_ref[...] = jnp.full(g_ref.shape, -jnp.inf, dtype=g_ref.dtype)

    cdt = w1.dtype
    x = x_ref[0].astype(cdt)                                          # (TN, 3)
    h = jnp.dot(x, w1[...], preferred_element_type=jnp.float32)
    h = jnp.maximum(h * s1[...] + b1[...], 0.0)                       # (TN, 64)
    h = jnp.dot(h.astype(cdt), w2[...], preferred_element_type=jnp.float32)
    h = jnp.maximum(h * s2[...] + b2[...], 0.0)                       # (TN, 128)
    h = jnp.dot(h.astype(cdt), w3[...], preferred_element_type=jnp.float32)
    h = jnp.maximum(h * s3[...] + b3[...], 0.0)                       # (TN, 1024)
    g_ref[0] = jnp.maximum(g_ref[0], jnp.max(h, axis=0, keepdims=True))


# ---------------------------------------------------------------------------
# Kernel 2: qnet FC head, batched over all B at once (single grid step).
#   g (B,1024) -> raw quaternion (B,4)  (before +[1,0,0,0] and normalize)
# ---------------------------------------------------------------------------
def _qnet_head_kernel(g_ref, wf1, wf2, wf3, bf3, q_ref):
    cdt = wf1.dtype
    g = g_ref[...].astype(cdt)                                        # (B, 1024)
    f = jnp.maximum(jnp.dot(g, wf1[...], preferred_element_type=jnp.float32), 0.0)
    f = jnp.maximum(jnp.dot(f.astype(cdt), wf2[...], preferred_element_type=jnp.float32), 0.0)
    q_ref[...] = jnp.dot(f.astype(cdt), wf3[...], preferred_element_type=jnp.float32) + bf3[...]


# ---------------------------------------------------------------------------
# Kernel 3: feature chain conv1..conv5, channel-major (channels on sublanes,
# points on lanes). Rotation folded into conv1 via per-batch w1_eff = W1 @ R.
#   grid = (B, Np // TN); output block (1, 64, TN) is lane-dense.
# ---------------------------------------------------------------------------
def _feat_kernel(x_ref, w1e_ref,
                 s1, b1,
                 w2, s2, b2,
                 w3, s3, b3,
                 w4, s4, b4,
                 w5, s5, b5,
                 o_ref):
    cdt = w1e_ref.dtype
    x = x_ref[0].astype(cdt)                                          # (3, TN)
    h = jnp.dot(w1e_ref[0], x, preferred_element_type=jnp.float32)    # conv1 (+folded rotation)
    h = jnp.maximum(h * s1[...] + b1[...], 0.0)
    h = jnp.dot(w2[...], h.astype(cdt), preferred_element_type=jnp.float32)
    h = jnp.maximum(h * s2[...] + b2[...], 0.0)                       # conv2 (x_skip; ftn=None)
    h = jnp.dot(w3[...], h.astype(cdt), preferred_element_type=jnp.float32)
    h = jnp.maximum(h * s3[...] + b3[...], 0.0)                       # conv3
    h = jnp.dot(w4[...], h.astype(cdt), preferred_element_type=jnp.float32)
    h = jnp.maximum(h * s4[...] + b4[...], 0.0)                       # conv4
    h = jnp.dot(w5[...], h.astype(cdt), preferred_element_type=jnp.float32)
    o_ref[0] = h * s5[...] + b5[...]                                  # conv5: BN only, no ReLU


# ---------------------------------------------------------------------------
# Wrappers
# ---------------------------------------------------------------------------
def qnet_trunk(x_pm, p, tile, mxu_dtype):
    B, Np, _ = x_pm.shape
    w1 = p['q_w1'].astype(mxu_dtype)
    w2 = p['q_w2'].astype(mxu_dtype)
    w3 = p['q_w3'].astype(mxu_dtype)
    s1, b1 = p['q_s1'][None, :], p['q_b1'][None, :]
    s2, b2 = p['q_s2'][None, :], p['q_b2'][None, :]
    s3, b3 = p['q_s3'][None, :], p['q_b3'][None, :]
    fixed = [w1, s1, b1, w2, s2, b2, w3, s3, b3]
    out = pl.pallas_call(
        _qnet_trunk_kernel,
        out_shape=jax.ShapeDtypeStruct((B, 1, 1024), jnp.float32),
        grid=(B, Np // tile),
        in_specs=[pl.BlockSpec((1, tile, 3), lambda b, k: (b, k, 0))]
                 + [_fixed2(a) for a in fixed],
        out_specs=pl.BlockSpec((1, 1, 1024), lambda b, k: (b, 0, 0)),
        compiler_params=pltpu.CompilerParams(
            dimension_semantics=("parallel", "arbitrary"),
            vmem_limit_bytes=VMEM_LIMIT),
    )(x_pm, *fixed)
    return out[:, 0, :]                                               # (B, 1024)


def qnet_head(g, p, mxu_dtype):
    B = g.shape[0]
    wf1 = p['q_wf1'].astype(mxu_dtype)
    wf2 = p['q_wf2'].astype(mxu_dtype)
    wf3 = p['q_wf3'].astype(mxu_dtype)
    bf3 = p['q_bf3'][None, :]
    args = [g, wf1, wf2, wf3, bf3]
    return pl.pallas_call(
        _qnet_head_kernel,
        out_shape=jax.ShapeDtypeStruct((B, 4), jnp.float32),
        grid=(1,),
        in_specs=[pl.BlockSpec(a.shape, lambda i: (0, 0)) for a in args],
        out_specs=pl.BlockSpec((B, 4), lambda i: (0, 0)),
        compiler_params=pltpu.CompilerParams(dimension_semantics=("arbitrary",)),
    )(*args)


def feat_forward(vp, w1_eff, p, tile, mxu_dtype):
    B, _, Np = vp.shape
    w1e = w1_eff.astype(mxu_dtype)                                    # (B, 64, 3)
    w2 = p['w2'].astype(mxu_dtype)
    w3 = p['w3'].astype(mxu_dtype)
    w4 = p['w4'].astype(mxu_dtype)
    w5 = p['w5'].astype(mxu_dtype)
    s1, b1 = p['s1'][:, None], p['b1'][:, None]
    s2, b2 = p['s2'][:, None], p['b2'][:, None]
    s3, b3 = p['s3'][:, None], p['b3'][:, None]
    s4, b4 = p['s4'][:, None], p['b4'][:, None]
    s5, b5 = p['s5'][:, None], p['b5'][:, None]
    fixed = [s1, b1, w2, s2, b2, w3, s3, b3, w4, s4, b4, w5, s5, b5]
    out = pl.pallas_call(
        _feat_kernel,
        out_shape=jax.ShapeDtypeStruct((B, 64, Np), jnp.float32),
        grid=(B, Np // tile),
        in_specs=[pl.BlockSpec((1, 3, tile), lambda b, n: (b, 0, n)),
                  pl.BlockSpec((1, 64, 3), lambda b, n: (b, 0, 0))]
                 + [_fixed2(a) for a in fixed],
        out_specs=pl.BlockSpec((1, 64, tile), lambda b, n: (b, 0, n)),
        compiler_params=pltpu.CompilerParams(
            dimension_semantics=("parallel", "parallel"),
            vmem_limit_bytes=VMEM_LIMIT),
    )(vp, w1e, *fixed)
    return out                                                        # (B, 64, Np)


def quat_to_rotmat(q):
    # q: (B, 4) unit quaternion in (w, x, y, z) order.
    # Equivalent to tgm.quaternion_to_angle_axis -> tgm.angle_axis_to_rotation_matrix[:, :3, :3]
    # for unit-norm quaternions.
    w, x, y, z = q[:, 0], q[:, 1], q[:, 2], q[:, 3]
    r0 = jnp.stack([1 - 2 * (y * y + z * z), 2 * (x * y - w * z), 2 * (x * z + w * y)], axis=-1)
    r1 = jnp.stack([2 * (x * y + w * z), 1 - 2 * (x * x + z * z), 2 * (y * z - w * x)], axis=-1)
    r2 = jnp.stack([2 * (x * z - w * y), 2 * (y * z + w * x), 1 - 2 * (x * x + y * y)], axis=-1)
    return jnp.stack([r0, r1, r2], axis=1)                            # (B, 3, 3)


def my_pn_feat_forward(verts, params, mxu_dtype=MXU_DTYPE):
    """verts: (B, 3, N) float32  ->  (B, 64, N) float32"""
    B, C, N = verts.shape
    tile = min(_round_up(N, 128), QNET_TILE_CAP)
    Np = _round_up(N, tile)
    # Edge-replication padding keeps the qnet max-over-points exact for padded slots.
    vp = jnp.pad(verts.astype(jnp.float32), ((0, 0), (0, 0), (0, Np - N)), mode='edge')
    x_pm = jnp.transpose(vp, (0, 2, 1))                               # (B, Np, 3)  tiny transpose

    g = qnet_trunk(x_pm, params, tile, mxu_dtype)                     # (B, 1024)
    quat_raw = qnet_head(g, params, mxu_dtype)                        # (B, 4)
    quat = quat_raw + jnp.array([1.0, 0.0, 0.0, 0.0], jnp.float32)[None, :]
    quat = quat / jnp.maximum(jnp.linalg.norm(quat, axis=1, keepdims=True), 1e-12)
    R = quat_to_rotmat(quat)                                          # (B, 3, 3)

    # Fold the rotation into conv1:  W1 @ (R @ x) == (W1 @ R) @ x
    w1_eff = jnp.einsum('oc,bcd->bod', params['w1'], R)               # (B, 64, 3)

    feat = feat_forward(vp, w1_eff, params, tile, mxu_dtype)          # (B, 64, Np) lane-dense
    return feat[:, :, :N]                                             # (B, 64, N)


# ---------------------------------------------------------------------------
# Deterministic parameter init (shapes from the module __init__)
# ---------------------------------------------------------------------------
def init_params(key):
    keys = iter(jax.random.split(key, 64))

    def nrm(shape, scale=0.1):
        return scale * jax.random.normal(next(keys), shape, jnp.float32)

    def bn(c):
        gamma = 1.0 + 0.05 * jax.random.normal(next(keys), (c,), jnp.float32)
        beta = 0.05 * jax.random.normal(next(keys), (c,), jnp.float32)
        mean = 0.05 * jax.random.normal(next(keys), (c,), jnp.float32)
        var = 1.0 + 0.1 * jax.random.uniform(next(keys), (c,), jnp.float32)
        return _bn_affine(gamma, beta, mean, var)

    p = {}
    # qnet (stn) trunk: conv weights stored as (in, out) for point-major x @ W
    p['q_w1'] = nrm((3, 64));     p['q_s1'], p['q_b1'] = bn(64)
    p['q_w2'] = nrm((64, 128));   p['q_s2'], p['q_b2'] = bn(128)
    p['q_w3'] = nrm((128, 1024)); p['q_s3'], p['q_b3'] = bn(1024)
    p['q_wf1'] = nrm((1024, 512))
    p['q_wf2'] = nrm((512, 256))
    p['q_wf3'] = nrm((256, 4))
    p['q_bf3'] = jnp.zeros((4,), jnp.float32)   # qnet zero-inits fc3 bias
    # feature convs (conv1..conv5): weights stored as (out, in) for channel-major W @ x
    p['w1'] = nrm((64, 3));  p['s1'], p['b1'] = bn(64)
    p['w2'] = nrm((64, 64)); p['s2'], p['b2'] = bn(64)
    p['w3'] = nrm((64, 64)); p['s3'], p['b3'] = bn(64)
    p['w4'] = nrm((64, 64)); p['s4'], p['b4'] = bn(64)
    p['w5'] = nrm((64, 64)); p['s5'], p['b5'] = bn(64)
    return p


if __name__ == "__main__":
    key = jax.random.PRNGKey(0)
    kp, kx = jax.random.split(key)
    params = init_params(kp)

    B, N = 2, 16
    verts = jax.random.normal(kx, (B, 3, N), jnp.float32)             # PyTorch layout (B, C=3, N)

    out = jax.jit(lambda v: my_pn_feat_forward(v, params))(verts)
    out = jax.block_until_ready(out)
    assert out.shape == (B, 64, N) and out.dtype == jnp.float32
    print("KERNEL_OK")
</pallas_src>

<mosaic_0001>
module attributes {stable_mosaic.version = 11 : i64} {
  func.func @_qnet_trunk_kernel(%arg0: i32, %arg1: i32, %arg2: memref<1x128x3xf32, #tpu.memory_space<vmem>>, %arg3: memref<3x64xbf16, #tpu.memory_space<vmem>>, %arg4: memref<1x64xf32, #tpu.memory_space<vmem>>, %arg5: memref<1x64xf32, #tpu.memory_space<vmem>>, %arg6: memref<64x128xbf16, #tpu.memory_space<vmem>>, %arg7: memref<1x128xf32, #tpu.memory_space<vmem>>, %arg8: memref<1x128xf32, #tpu.memory_space<vmem>>, %arg9: memref<128x1024xbf16, #tpu.memory_space<vmem>>, %arg10: memref<1x1024xf32, #tpu.memory_space<vmem>>, %arg11: memref<1x1024xf32, #tpu.memory_space<vmem>>, %arg12: memref<1x1x1024xf32, #tpu.memory_space<vmem>>) attributes {dimension_semantics = [#tpu.dimension_semantics<parallel>, #tpu.dimension_semantics<arbitrary>], iteration_bounds = array<i64: 2, 1>, scalar_prefetch = 0 : i64, scratch_operands = 0 : i64, tpu.core_type = #tpu.core_type<tc>, window_params = [{transform_indices = @transform_0, window_bounds = array<i64: 1, 128, 3>}, {pipeline_mode = #tpu.pipeline_mode<synchronous>, transform_indices = @transform_1, window_bounds = array<i64: 3, 64>}, {pipeline_mode = #tpu.pipeline_mode<synchronous>, transform_indices = @transform_2, window_bounds = array<i64: 1, 64>}, {pipeline_mode = #tpu.pipeline_mode<synchronous>, transform_indices = @transform_3, window_bounds = array<i64: 1, 64>}, {pipeline_mode = #tpu.pipeline_mode<synchronous>, transform_indices = @transform_4, window_bounds = array<i64: 64, 128>}, {pipeline_mode = #tpu.pipeline_mode<synchronous>, transform_indices = @transform_5, window_bounds = array<i64: 1, 128>}, {pipeline_mode = #tpu.pipeline_mode<synchronous>, transform_indices = @transform_6, window_bounds = array<i64: 1, 128>}, {pipeline_mode = #tpu.pipeline_mode<synchronous>, transform_indices = @transform_7, window_bounds = array<i64: 128, 1024>}, {pipeline_mode = #tpu.pipeline_mode<synchronous>, transform_indices = @transform_8, window_bounds = array<i64: 1, 1024>}, {pipeline_mode = #tpu.pipeline_mode<synchronous>, transform_indices = @transform_9, window_bounds = array<i64: 1, 1024>}, {transform_indices = @transform_10, window_bounds = array<i64: 1, 1, 1024>}]} {
    %c0_i32 = arith.constant 0 : i32
    %0 = arith.cmpi eq, %arg1, %c0_i32 : i32
    %1 = arith.extui %0 : i1 to i32
    %c0_i32_0 = arith.constant 0 : i32
    %2 = arith.cmpi ne, %1, %c0_i32_0 : i32
    scf.if %2 {
      %cst_33 = arith.constant 0xFF800000 : f32
      %46 = vector.broadcast %cst_33 : f32 to vector<1x1x1024xf32>
      %c0_34 = arith.constant 0 : index
      %c0_35 = arith.constant 0 : index
      %c0_36 = arith.constant 0 : index
      %47 = vector.load %arg12[%c0_34, %c0_35, %c0_36] : memref<1x1x1024xf32, #tpu.memory_space<vmem>>, vector<1x1x1024xf32>
      tpu.vector_store %arg12[%c0_34, %c0_35, %c0_36], %46 {strides = array<i32>} : memref<1x1x1024xf32, #tpu.memory_space<vmem>>, vector<1x1x1024xf32>,
    } else {
    }
    %c0 = arith.constant 0 : index
    %c0_1 = arith.constant 0 : index
    %c0_2 = arith.constant 0 : index
    %3 = vector.load %arg2[%c0, %c0_1, %c0_2] : memref<1x128x3xf32, #tpu.memory_space<vmem>>, vector<1x128x3xf32>
    %4 = vector.shape_cast %3 : vector<1x128x3xf32> to vector<128x3xf32>
    %5 = arith.truncf %4 : vector<128x3xf32> to vector<128x3xbf16>
    %c0_3 = arith.constant 0 : index
    %c0_4 = arith.constant 0 : index
    %6 = vector.load %arg3[%c0_3, %c0_4] : memref<3x64xbf16, #tpu.memory_space<vmem>>, vector<3x64xbf16>
    %cst = arith.constant dense<0.000000e+00> : vector<128x64xf32>
    %7 = tpu.matmul %5, %6, %cst {dimension_numbers = #tpu.dot_dimension_numbers<[1], [0], [0], [1], [0, 0, 1, 1], [], []>} : vector<128x3xbf16>, vector<3x64xbf16>, vector<128x64xf32> -> vector<128x64xf32>
    %c0_5 = arith.constant 0 : index
    %c0_6 = arith.constant 0 : index
    %8 = vector.load %arg4[%c0_5, %c0_6] : memref<1x64xf32, #tpu.memory_space<vmem>>, vector<1x64xf32>
    %9 = vector.broadcast %8 : vector<1x64xf32> to vector<128x64xf32>
    %10 = arith.mulf %7, %9 : vector<128x64xf32>
    %c0_7 = arith.constant 0 : index
    %c0_8 = arith.constant 0 : index
    %11 = vector.load %arg5[%c0_7, %c0_8] : memref<1x64xf32, #tpu.memory_space<vmem>>, vector<1x64xf32>
    %12 = vector.broadcast %11 : vector<1x64xf32> to vector<128x64xf32>
    %13 = arith.addf %10, %12 : vector<128x64xf32>
    %cst_9 = arith.constant 0.000000e+00 : f32
    %14 = vector.broadcast %cst_9 : f32 to vector<128x64xf32>
    %15 = arith.maximumf %13, %14 : vector<128x64xf32>
    %16 = arith.truncf %15 : vector<128x64xf32> to vector<128x64xbf16>
    %c0_10 = arith.constant 0 : index
    %c0_11 = arith.constant 0 : index
    %17 = vector.load %arg6[%c0_10, %c0_11] : memref<64x128xbf16, #tpu.memory_space<vmem>>, vector<64x128xbf16>
    %cst_12 = arith.constant dense<0.000000e+00> : vector<128x128xf32>
    %18 = tpu.matmul %16, %17, %cst_12 {dimension_numbers = #tpu.dot_dimension_numbers<[1], [0], [0], [1], [0, 0, 1, 1], [], []>} : vector<128x64xbf16>, vector<64x128xbf16>, vector<128x128xf32> -> vector<128x128xf32>
    %c0_13 = arith.constant 0 : index
    %c0_14 = arith.constant 0 : index
    %19 = vector.load %arg7[%c0_13, %c0_14] : memref<1x128xf32, #tpu.memory_space<vmem>>, vector<1x128xf32>
    %20 = vector.broadcast %19 : vector<1x128xf32> to vector<128x128xf32>
    %21 = arith.mulf %18, %20 : vector<128x128xf32>
    %c0_15 = arith.constant 0 : index
    %c0_16 = arith.constant 0 : index
    %22 = vector.load %arg8[%c0_15, %c0_16] : memref<1x128xf32, #tpu.memory_space<vmem>>, vector<1x128xf32>
    %23 = vector.broadcast %22 : vector<1x128xf32> to vector<128x128xf32>
    %24 = arith.addf %21, %23 : vector<128x128xf32>
    %cst_17 = arith.constant 0.000000e+00 : f32
    %25 = vector.broadcast %cst_17 : f32 to vector<128x128xf32>
    %26 = arith.maximumf %24, %25 : vector<128x128xf32>
    %27 = arith.truncf %26 : vector<128x128xf32> to vector<128x128xbf16>
    %c0_18 = arith.constant 0 : index
    %c0_19 = arith.constant 0 : index
    %28 = vector.load %arg9[%c0_18, %c0_19] : memref<128x1024xbf16, #tpu.memory_space<vmem>>, vector<128x1024xbf16>
    %cst_20 = arith.constant dense<0.000000e+00> : vector<128x1024xf32>
    %29 = tpu.matmul %27, %28, %cst_20 {dimension_numbers = #tpu.dot_dimension_numbers<[1], [0], [0], [1], [0, 0, 1, 1], [], []>} : vector<128x128xbf16>, vector<128x1024xbf16>, vector<128x1024xf32> -> vector<128x1024xf32>
    %c0_21 = arith.constant 0 : index
    %c0_22 = arith.constant 0 : index
    %30 = vector.load %arg10[%c0_21, %c0_22] : memref<1x1024xf32, #tpu.memory_space<vmem>>, vector<1x1024xf32>
    %31 = vector.broadcast %30 : vector<1x1024xf32> to vector<128x1024xf32>
    %32 = arith.mulf %29, %31 : vector<128x1024xf32>
    %c0_23 = arith.constant 0 : index
    %c0_24 = arith.constant 0 : index
    %33 = vector.load %arg11[%c0_23, %c0_24] : memref<1x1024xf32, #tpu.memory_space<vmem>>, vector<1x1024xf32>
    %34 = vector.broadcast %33 : vector<1x1024xf32> to vector<128x1024xf32>
    %35 = arith.addf %32, %34 : vector<128x1024xf32>
    %cst_25 = arith.constant 0.000000e+00 : f32
    %36 = vector.broadcast %cst_25 : f32 to vector<128x1024xf32>
    %37 = arith.maximumf %35, %36 : vector<128x1024xf32>
    %c0_26 = arith.constant 0 : index
    %c0_27 = arith.constant 0 : index
    %c0_28 = arith.constant 0 : index
    %38 = vector.load %arg12[%c0_26, %c0_27, %c0_28] : memref<1x1x1024xf32, #tpu.memory_space<vmem>>, vector<1x1x1024xf32>
    %39 = vector.shape_cast %38 : vector<1x1x1024xf32> to vector<1x1024xf32>
    %cst_29 = arith.constant dense<0xFF800000> : vector<1024xf32>
    %40 = vector.multi_reduction <maximumf>, %37, %cst_29 [0] : vector<128x1024xf32> to vector<1024xf32>
    %41 = vector.shape_cast %40 : vector<1024xf32> to vector<1x1024xf32>
    %42 = arith.maximumf %39, %41 : vector<1x1024xf32>
    %c0_30 = arith.constant 0 : index
    %c0_31 = arith.constant 0 : index
    %c0_32 = arith.constant 0 : index
    %43 = vector.load %arg12[%c0_30, %c0_31, %c0_32] : memref<1x1x1024xf32, #tpu.memory_space<vmem>>, vector<1x1x1024xf32>
    %44 = vector.shape_cast %43 : vector<1x1x1024xf32> to vector<1x1024xf32>
    %45 = vector.shape_cast %42 : vector<1x1024xf32> to vector<1x1x1024xf32>
    tpu.vector_store %arg12[%c0_30, %c0_31, %c0_32], %45 {strides = array<i32>} : memref<1x1x1024xf32, #tpu.memory_space<vmem>>, vector<1x1x1024xf32>,
    return
  }
  func.func @transform_0(%arg0: i32, %arg1: i32) -> (i32, i32, i32) {
    %c0_i32 = arith.constant 0 : i32
    %c0_i32_0 = arith.constant 0 : i32
    return %arg0, %arg1, %c0_i32 : i32, i32, i32
  }
  func.func @transform_1(%arg0: i32, %arg1: i32) -> (i32, i32) {
    %c0_i32 = arith.constant 0 : i32
    %c0_i32_0 = arith.constant 0 : i32
    %c0_i32_1 = arith.constant 0 : i32
    return %c0_i32, %c0_i32_0 : i32, i32
  }
  func.func @transform_2(%arg0: i32, %arg1: i32) -> (i32, i32) {
    %c0_i32 = arith.constant 0 : i32
    %c0_i32_0 = arith.constant 0 : i32
    %c0_i32_1 = arith.constant 0 : i32
    return %c0_i32, %c0_i32_0 : i32, i32
  }
  func.func @transform_3(%arg0: i32, %arg1: i32) -> (i32, i32) {
    %c0_i32 = arith.constant 0 : i32
    %c0_i32_0 = arith.constant 0 : i32
    %c0_i32_1 = arith.constant 0 : i32
    return %c0_i32, %c0_i32_0 : i32, i32
  }
  func.func @transform_4(%arg0: i32, %arg1: i32) -> (i32, i32) {
    %c0_i32 = arith.constant 0 : i32
    %c0_i32_0 = arith.constant 0 : i32
    %c0_i32_1 = arith.constant 0 : i32
    return %c0_i32, %c0_i32_0 : i32, i32
  }
  func.func @transform_5(%arg0: i32, %arg1: i32) -> (i32, i32) {
    %c0_i32 = arith.constant 0 : i32
    %c0_i32_0 = arith.constant 0 : i32
    %c0_i32_1 = arith.constant 0 : i32
    return %c0_i32, %c0_i32_0 : i32, i32
  }
  func.func @transform_6(%arg0: i32, %arg1: i32) -> (i32, i32) {
    %c0_i32 = arith.constant 0 : i32
    %c0_i32_0 = arith.constant 0 : i32
    %c0_i32_1 = arith.constant 0 : i32
    return %c0_i32, %c0_i32_0 : i32, i32
  }
  func.func @transform_7(%arg0: i32, %arg1: i32) -> (i32, i32) {
    %c0_i32 = arith.constant 0 : i32
    %c0_i32_0 = arith.constant 0 : i32
    %c0_i32_1 = arith.constant 0 : i32
    return %c0_i32, %c0_i32_0 : i32, i32
  }
  func.func @transform_8(%arg0: i32, %arg1: i32) -> (i32, i32) {
    %c0_i32 = arith.constant 0 : i32
    %c0_i32_0 = arith.constant 0 : i32
    %c0_i32_1 = arith.constant 0 : i32
    return %c0_i32, %c0_i32_0 : i32, i32
  }
  func.func @transform_9(%arg0: i32, %arg1: i32) -> (i32, i32) {
    %c0_i32 = arith.constant 0 : i32
    %c0_i32_0 = arith.constant 0 : i32
    %c0_i32_1 = arith.constant 0 : i32
    return %c0_i32, %c0_i32_0 : i32, i32
  }
  func.func @transform_10(%arg0: i32, %arg1: i32) -> (i32, i32, i32) {
    %c0_i32 = arith.constant 0 : i32
    %c0_i32_0 = arith.constant 0 : i32
    %c0_i32_1 = arith.constant 0 : i32
    return %arg0, %c0_i32, %c0_i32_0 : i32, i32, i32
  }
}

module attributes {stable_mosaic.version = 11 : i64} {
  func.func @_qnet_head_kernel(%arg0: i32, %arg1: memref<2x1024xf32, #tpu.memory_space<vmem>>, %arg2: memref<1024x512xbf16, #tpu.memory_space<vmem>>, %arg3: memref<512x256xbf16, #tpu.memory_space<vmem>>, %arg4: memref<256x4xbf16, #tpu.memory_space<vmem>>, %arg5: memref<1x4xf32, #tpu.memory_space<vmem>>, %arg6: memref<2x4xf32, #tpu.memory_space<vmem>>) attributes {dimension_semantics = [#tpu.dimension_semantics<arbitrary>], iteration_bounds = array<i64: 1>, scalar_prefetch = 0 : i64, scratch_operands = 0 : i64, tpu.core_type = #tpu.core_type<tc>, window_params = [{pipeline_mode = #tpu.pipeline_mode<synchronous>, transform_indices = @transform_0, window_bounds = array<i64: 2, 1024>}, {pipeline_mode = #tpu.pipeline_mode<synchronous>, transform_indices = @transform_1, window_bounds = array<i64: 1024, 512>}, {pipeline_mode = #tpu.pipeline_mode<synchronous>, transform_indices = @transform_2, window_bounds = array<i64: 512, 256>}, {pipeline_mode = #tpu.pipeline_mode<synchronous>, transform_indices = @transform_3, window_bounds = array<i64: 256, 4>}, {pipeline_mode = #tpu.pipeline_mode<synchronous>, transform_indices = @transform_4, window_bounds = array<i64: 1, 4>}, {pipeline_mode = #tpu.pipeline_mode<synchronous>, transform_indices = @transform_5, window_bounds = array<i64: 2, 4>}]} {
    %c0 = arith.constant 0 : index
    %c0_0 = arith.constant 0 : index
    %0 = vector.load %arg1[%c0, %c0_0] : memref<2x1024xf32, #tpu.memory_space<vmem>>, vector<2x1024xf32>
    %1 = arith.truncf %0 : vector<2x1024xf32> to vector<2x1024xbf16>
    %c0_1 = arith.constant 0 : index
    %c0_2 = arith.constant 0 : index
    %2 = vector.load %arg2[%c0_1, %c0_2] : memref<1024x512xbf16, #tpu.memory_space<vmem>>, vector<1024x512xbf16>
    %cst = arith.constant dense<0.000000e+00> : vector<2x512xf32>
    %3 = tpu.matmul %1, %2, %cst {dimension_numbers = #tpu.dot_dimension_numbers<[1], [0], [0], [1], [0, 0, 1, 1], [], []>} : vector<2x1024xbf16>, vector<1024x512xbf16>, vector<2x512xf32> -> vector<2x512xf32>
    %cst_3 = arith.constant 0.000000e+00 : f32
    %4 = vector.broadcast %cst_3 : f32 to vector<2x512xf32>
    %5 = arith.maximumf %3, %4 : vector<2x512xf32>
    %6 = arith.truncf %5 : vector<2x512xf32> to vector<2x512xbf16>
    %c0_4 = arith.constant 0 : index
    %c0_5 = arith.constant 0 : index
    %7 = vector.load %arg3[%c0_4, %c0_5] : memref<512x256xbf16, #tpu.memory_space<vmem>>, vector<512x256xbf16>
    %cst_6 = arith.constant dense<0.000000e+00> : vector<2x256xf32>
    %8 = tpu.matmul %6, %7, %cst_6 {dimension_numbers = #tpu.dot_dimension_numbers<[1], [0], [0], [1], [0, 0, 1, 1], [], []>} : vector<2x512xbf16>, vector<512x256xbf16>, vector<2x256xf32> -> vector<2x256xf32>
    %cst_7 = arith.constant 0.000000e+00 : f32
    %9 = vector.broadcast %cst_7 : f32 to vector<2x256xf32>
    %10 = arith.maximumf %8, %9 : vector<2x256xf32>
    %11 = arith.truncf %10 : vector<2x256xf32> to vector<2x256xbf16>
    %c0_8 = arith.constant 0 : index
    %c0_9 = arith.constant 0 : index
    %12 = vector.load %arg4[%c0_8, %c0_9] : memref<256x4xbf16, #tpu.memory_space<vmem>>, vector<256x4xbf16>
    %cst_10 = arith.constant dense<0.000000e+00> : vector<2x4xf32>
    %13 = tpu.matmul %11, %12, %cst_10 {dimension_numbers = #tpu.dot_dimension_numbers<[1], [0], [0], [1], [0, 0, 1, 1], [], []>} : vector<2x256xbf16>, vector<256x4xbf16>, vector<2x4xf32> -> vector<2x4xf32>
    %c0_11 = arith.constant 0 : index
    %c0_12 = arith.constant 0 : index
    %14 = vector.load %arg5[%c0_11, %c0_12] : memref<1x4xf32, #tpu.memory_space<vmem>>, vector<1x4xf32>
    %15 = vector.broadcast %14 : vector<1x4xf32> to vector<2x4xf32>
    %16 = arith.addf %13, %15 : vector<2x4xf32>
    %c0_13 = arith.constant 0 : index
    %c0_14 = arith.constant 0 : index
    %17 = vector.load %arg6[%c0_13, %c0_14] : memref<2x4xf32, #tpu.memory_space<vmem>>, vector<2x4xf32>
    tpu.vector_store %arg6[%c0_13, %c0_14], %16 {strides = array<i32>} : memref<2x4xf32, #tpu.memory_space<vmem>>, vector<2x4xf32>,
    return
  }
  func.func @transform_0(%arg0: i32) -> (i32, i32) {
    %c0_i32 = arith.constant 0 : i32
    %c0_i32_0 = arith.constant 0 : i32
    %c0_i32_1 = arith.constant 0 : i32
    return %c0_i32, %c0_i32_0 : i32, i32
  }
  func.func @transform_1(%arg0: i32) -> (i32, i32) {
    %c0_i32 = arith.constant 0 : i32
    %c0_i32_0 = arith.constant 0 : i32
    %c0_i32_1 = arith.constant 0 : i32
    return %c0_i32, %c0_i32_0 : i32, i32
  }
  func.func @transform_2(%arg0: i32) -> (i32, i32) {
    %c0_i32 = arith.constant 0 : i32
    %c0_i32_0 = arith.constant 0 : i32
    %c0_i32_1 = arith.constant 0 : i32
    return %c0_i32, %c0_i32_0 : i32, i32
  }
  func.func @transform_3(%arg0: i32) -> (i32, i32) {
    %c0_i32 = arith.constant 0 : i32
    %c0_i32_0 = arith.constant 0 : i32
    %c0_i32_1 = arith.constant 0 : i32
    return %c0_i32, %c0_i32_0 : i32, i32
  }
  func.func @transform_4(%arg0: i32) -> (i32, i32) {
    %c0_i32 = arith.constant 0 : i32
    %c0_i32_0 = arith.constant 0 : i32
    %c0_i32_1 = arith.constant 0 : i32
    return %c0_i32, %c0_i32_0 : i32, i32
  }
  func.func @transform_5(%arg0: i32) -> (i32, i32) {
    %c0_i32 = arith.constant 0 : i32
    %c0_i32_0 = arith.constant 0 : i32
    %c0_i32_1 = arith.constant 0 : i32
    return %c0_i32, %c0_i32_0 : i32, i32
  }
}

module attributes {stable_mosaic.version = 11 : i64} {
  func.func @_feat_kernel(%arg0: i32, %arg1: i32, %arg2: memref<1x3x128xf32, #tpu.memory_space<vmem>>, %arg3: memref<1x64x3xbf16, #tpu.memory_space<vmem>>, %arg4: memref<64x1xf32, #tpu.memory_space<vmem>>, %arg5: memref<64x1xf32, #tpu.memory_space<vmem>>, %arg6: memref<64x64xbf16, #tpu.memory_space<vmem>>, %arg7: memref<64x1xf32, #tpu.memory_space<vmem>>, %arg8: memref<64x1xf32, #tpu.memory_space<vmem>>, %arg9: memref<64x64xbf16, #tpu.memory_space<vmem>>, %arg10: memref<64x1xf32, #tpu.memory_space<vmem>>, %arg11: memref<64x1xf32, #tpu.memory_space<vmem>>, %arg12: memref<64x64xbf16, #tpu.memory_space<vmem>>, %arg13: memref<64x1xf32, #tpu.memory_space<vmem>>, %arg14: memref<64x1xf32, #tpu.memory_space<vmem>>, %arg15: memref<64x64xbf16, #tpu.memory_space<vmem>>, %arg16: memref<64x1xf32, #tpu.memory_space<vmem>>, %arg17: memref<64x1xf32, #tpu.memory_space<vmem>>, %arg18: memref<1x64x128xf32, #tpu.memory_space<vmem>>) attributes {dimension_semantics = [#tpu.dimension_semantics<parallel>, #tpu.dimension_semantics<parallel>], iteration_bounds = array<i64: 2, 1>, scalar_prefetch = 0 : i64, scratch_operands = 0 : i64, tpu.core_type = #tpu.core_type<tc>, window_params = [{transform_indices = @transform_0, window_bounds = array<i64: 1, 3, 128>}, {transform_indices = @transform_1, window_bounds = array<i64: 1, 64, 3>}, {pipeline_mode = #tpu.pipeline_mode<synchronous>, transform_indices = @transform_2, window_bounds = array<i64: 64, 1>}, {pipeline_mode = #tpu.pipeline_mode<synchronous>, transform_indices = @transform_3, window_bounds = array<i64: 64, 1>}, {pipeline_mode = #tpu.pipeline_mode<synchronous>, transform_indices = @transform_4, window_bounds = array<i64: 64, 64>}, {pipeline_mode = #tpu.pipeline_mode<synchronous>, transform_indices = @transform_5, window_bounds = array<i64: 64, 1>}, {pipeline_mode = #tpu.pipeline_mode<synchronous>, transform_indices = @transform_6, window_bounds = array<i64: 64, 1>}, {pipeline_mode = #tpu.pipeline_mode<synchronous>, transform_indices = @transform_7, window_bounds = array<i64: 64, 64>}, {pipeline_mode = #tpu.pipeline_mode<synchronous>, transform_indices = @transform_8, window_bounds = array<i64: 64, 1>}, {pipeline_mode = #tpu.pipeline_mode<synchronous>, transform_indices = @transform_9, window_bounds = array<i64: 64, 1>}, {pipeline_mode = #tpu.pipeline_mode<synchronous>, transform_indices = @transform_10, window_bounds = array<i64: 64, 64>}, {pipeline_mode = #tpu.pipeline_mode<synchronous>, transform_indices = @transform_11, window_bounds = array<i64: 64, 1>}, {pipeline_mode = #tpu.pipeline_mode<synchronous>, transform_indices = @transform_12, window_bounds = array<i64: 64, 1>}, {pipeline_mode = #tpu.pipeline_mode<synchronous>, transform_indices = @transform_13, window_bounds = array<i64: 64, 64>}, {pipeline_mode = #tpu.pipeline_mode<synchronous>, transform_indices = @transform_14, window_bounds = array<i64: 64, 1>}, {pipeline_mode = #tpu.pipeline_mode<synchronous>, transform_indices = @transform_15, window_bounds = array<i64: 64, 1>}, {transform_indices = @transform_16, window_bounds = array<i64: 1, 64, 128>}]} {
    %c0 = arith.constant 0 : index
    %c0_0 = arith.constant 0 : index
    %c0_1 = arith.constant 0 : index
    %0 = vector.load %arg2[%c0, %c0_0, %c0_1] : memref<1x3x128xf32, #tpu.memory_space<vmem>>, vector<1x3x128xf32>
    %1 = vector.shape_cast %0 : vector<1x3x128xf32> to vector<3x128xf32>
    %2 = arith.truncf %1 : vector<3x128xf32> to vector<3x128xbf16>
    %c0_2 = arith.constant 0 : index
    %c0_3 = arith.constant 0 : index
    %c0_4 = arith.constant 0 : index
    %3 = vector.load %arg3[%c0_2, %c0_3, %c0_4] : memref<1x64x3xbf16, #tpu.memory_space<vmem>>, vector<1x64x3xbf16>
    %4 = vector.shape_cast %3 : vector<1x64x3xbf16> to vector<64x3xbf16>
    %cst = arith.constant dense<0.000000e+00> : vector<64x128xf32>
    %5 = tpu.matmul %4, %2, %cst {dimension_numbers = #tpu.dot_dimension_numbers<[1], [0], [0], [1], [0, 0, 1, 1], [], []>} : vector<64x3xbf16>, vector<3x128xbf16>, vector<64x128xf32> -> vector<64x128xf32>
    %c0_5 = arith.constant 0 : index
    %c0_6 = arith.constant 0 : index
    %6 = vector.load %arg4[%c0_5, %c0_6] : memref<64x1xf32, #tpu.memory_space<vmem>>, vector<64x1xf32>
    %7 = vector.broadcast %6 : vector<64x1xf32> to vector<64x128xf32>
    %8 = arith.mulf %5, %7 : vector<64x128xf32>
    %c0_7 = arith.constant 0 : index
    %c0_8 = arith.constant 0 : index
    %9 = vector.load %arg5[%c0_7, %c0_8] : memref<64x1xf32, #tpu.memory_space<vmem>>, vector<64x1xf32>
    %10 = vector.broadcast %9 : vector<64x1xf32> to vector<64x128xf32>
    %11 = arith.addf %8, %10 : vector<64x128xf32>
    %cst_9 = arith.constant 0.000000e+00 : f32
    %12 = vector.broadcast %cst_9 : f32 to vector<64x128xf32>
    %13 = arith.maximumf %11, %12 : vector<64x128xf32>
    %c0_10 = arith.constant 0 : index
    %c0_11 = arith.constant 0 : index
    %14 = vector.load %arg6[%c0_10, %c0_11] : memref<64x64xbf16, #tpu.memory_space<vmem>>, vector<64x64xbf16>
    %15 = arith.truncf %13 : vector<64x128xf32> to vector<64x128xbf16>
    %cst_12 = arith.constant dense<0.000000e+00> : vector<64x128xf32>
    %16 = tpu.matmul %14, %15, %cst_12 {dimension_numbers = #tpu.dot_dimension_numbers<[1], [0], [0], [1], [0, 0, 1, 1], [], []>} : vector<64x64xbf16>, vector<64x128xbf16>, vector<64x128xf32> -> vector<64x128xf32>
    %c0_13 = arith.constant 0 : index
    %c0_14 = arith.constant 0 : index
    %17 = vector.load %arg7[%c0_13, %c0_14] : memref<64x1xf32, #tpu.memory_space<vmem>>, vector<64x1xf32>
    %18 = vector.broadcast %17 : vector<64x1xf32> to vector<64x128xf32>
    %19 = arith.mulf %16, %18 : vector<64x128xf32>
    %c0_15 = arith.constant 0 : index
    %c0_16 = arith.constant 0 : index
    %20 = vector.load %arg8[%c0_15, %c0_16] : memref<64x1xf32, #tpu.memory_space<vmem>>, vector<64x1xf32>
    %21 = vector.broadcast %20 : vector<64x1xf32> to vector<64x128xf32>
    %22 = arith.addf %19, %21 : vector<64x128xf32>
    %cst_17 = arith.constant 0.000000e+00 : f32
    %23 = vector.broadcast %cst_17 : f32 to vector<64x128xf32>
    %24 = arith.maximumf %22, %23 : vector<64x128xf32>
    %c0_18 = arith.constant 0 : index
    %c0_19 = arith.constant 0 : index
    %25 = vector.load %arg9[%c0_18, %c0_19] : memref<64x64xbf16, #tpu.memory_space<vmem>>, vector<64x64xbf16>
    %26 = arith.truncf %24 : vector<64x128xf32> to vector<64x128xbf16>
    %cst_20 = arith.constant dense<0.000000e+00> : vector<64x128xf32>
    %27 = tpu.matmul %25, %26, %cst_20 {dimension_numbers = #tpu.dot_dimension_numbers<[1], [0], [0], [1], [0, 0, 1, 1], [], []>} : vector<64x64xbf16>, vector<64x128xbf16>, vector<64x128xf32> -> vector<64x128xf32>
    %c0_21 = arith.constant 0 : index
    %c0_22 = arith.constant 0 : index
    %28 = vector.load %arg10[%c0_21, %c0_22] : memref<64x1xf32, #tpu.memory_space<vmem>>, vector<64x1xf32>
    %29 = vector.broadcast %28 : vector<64x1xf32> to vector<64x128xf32>
    %30 = arith.mulf %27, %29 : vector<64x128xf32>
    %c0_23 = arith.constant 0 : index
    %c0_24 = arith.constant 0 : index
    %31 = vector.load %arg11[%c0_23, %c0_24] : memref<64x1xf32, #tpu.memory_space<vmem>>, vector<64x1xf32>
    %32 = vector.broadcast %31 : vector<64x1xf32> to vector<64x128xf32>
    %33 = arith.addf %30, %32 : vector<64x128xf32>
    %cst_25 = arith.constant 0.000000e+00 : f32
    %34 = vector.broadcast %cst_25 : f32 to vector<64x128xf32>
    %35 = arith.maximumf %33, %34 : vector<64x128xf32>
    %c0_26 = arith.constant 0 : index
    %c0_27 = arith.constant 0 : index
    %36 = vector.load %arg12[%c0_26, %c0_27] : memref<64x64xbf16, #tpu.memory_space<vmem>>, vector<64x64xbf16>
    %37 = arith.truncf %35 : vector<64x128xf32> to vector<64x128xbf16>
    %cst_28 = arith.constant dense<0.000000e+00> : vector<64x128xf32>
    %38 = tpu.matmul %36, %37, %cst_28 {dimension_numbers = #tpu.dot_dimension_numbers<[1], [0], [0], [1], [0, 0, 1, 1], [], []>} : vector<64x64xbf16>, vector<64x128xbf16>, vector<64x128xf32> -> vector<64x128xf32>
    %c0_29 = arith.constant 0 : index
    %c0_30 = arith.constant 0 : index
    %39 = vector.load %arg13[%c0_29, %c0_30] : memref<64x1xf32, #tpu.memory_space<vmem>>, vector<64x1xf32>
    %40 = vector.broadcast %39 : vector<64x1xf32> to vector<64x128xf32>
    %41 = arith.mulf %38, %40 : vector<64x128xf32>
    %c0_31 = arith.constant 0 : index
    %c0_32 = arith.constant 0 : index
    %42 = vector.load %arg14[%c0_31, %c0_32] : memref<64x1xf32, #tpu.memory_space<vmem>>, vector<64x1xf32>
    %43 = vector.broadcast %42 : vector<64x1xf32> to vector<64x128xf32>
    %44 = arith.addf %41, %43 : vector<64x128xf32>
    %cst_33 = arith.constant 0.000000e+00 : f32
    %45 = vector.broadcast %cst_33 : f32 to vector<64x128xf32>
    %46 = arith.maximumf %44, %45 : vector<64x128xf32>
    %c0_34 = arith.constant 0 : index
    %c0_35 = arith.constant 0 : index
    %47 = vector.load %arg15[%c0_34, %c0_35] : memref<64x64xbf16, #tpu.memory_space<vmem>>, vector<64x64xbf16>
    %48 = arith.truncf %46 : vector<64x128xf32> to vector<64x128xbf16>
    %cst_36 = arith.constant dense<0.000000e+00> : vector<64x128xf32>
    %49 = tpu.matmul %47, %48, %cst_36 {dimension_numbers = #tpu.dot_dimension_numbers<[1], [0], [0], [1], [0, 0, 1, 1], [], []>} : vector<64x64xbf16>, vector<64x128xbf16>, vector<64x128xf32> -> vector<64x128xf32>
    %c0_37 = arith.constant 0 : index
    %c0_38 = arith.constant 0 : index
    %50 = vector.load %arg16[%c0_37, %c0_38] : memref<64x1xf32, #tpu.memory_space<vmem>>, vector<64x1xf32>
    %51 = vector.broadcast %50 : vector<64x1xf32> to vector<64x128xf32>
    %52 = arith.mulf %49, %51 : vector<64x128xf32>
    %c0_39 = arith.constant 0 : index
    %c0_40 = arith.constant 0 : index
    %53 = vector.load %arg17[%c0_39, %c0_40] : memref<64x1xf32, #tpu.memory_space<vmem>>, vector<64x1xf32>
    %54 = vector.broadcast %53 : vector<64x1xf32> to vector<64x128xf32>
    %55 = arith.addf %52, %54 : vector<64x128xf32>
    %c0_41 = arith.constant 0 : index
    %c0_42 = arith.constant 0 : index
    %c0_43 = arith.constant 0 : index
    %56 = vector.load %arg18[%c0_41, %c0_42, %c0_43] : memref<1x64x128xf32, #tpu.memory_space<vmem>>, vector<1x64x128xf32>
    %57 = vector.shape_cast %56 : vector<1x64x128xf32> to vector<64x128xf32>
    %58 = vector.shape_cast %55 : vector<64x128xf32> to vector<1x64x128xf32>
    tpu.vector_store %arg18[%c0_41, %c0_42, %c0_43], %58 {strides = array<i32>} : memref<1x64x128xf32, #tpu.memory_space<vmem>>, vector<1x64x128xf32>,
    return
  }
  func.func @transform_0(%arg0: i32, %arg1: i32) -> (i32, i32, i32) {
    %c0_i32 = arith.constant 0 : i32
    %c0_i32_0 = arith.constant 0 : i32
    return %arg0, %c0_i32, %arg1 : i32, i32, i32
  }
  func.func @transform_1(%arg0: i32, %arg1: i32) -> (i32, i32, i32) {
    %c0_i32 = arith.constant 0 : i32
    %c0_i32_0 = arith.constant 0 : i32
    %c0_i32_1 = arith.constant 0 : i32
    return %arg0, %c0_i32, %c0_i32_0 : i32, i32, i32
  }
  func.func @transform_2(%arg0: i32, %arg1: i32) -> (i32, i32) {
    %c0_i32 = arith.constant 0 : i32
    %c0_i32_0 = arith.constant 0 : i32
    %c0_i32_1 = arith.constant 0 : i32
    return %c0_i32, %c0_i32_0 : i32, i32
  }
  func.func @transform_3(%arg0: i32, %arg1: i32) -> (i32, i32) {
    %c0_i32 = arith.constant 0 : i32
    %c0_i32_0 = arith.constant 0 : i32
    %c0_i32_1 = arith.constant 0 : i32
    return %c0_i32, %c0_i32_0 : i32, i32
  }
  func.func @transform_4(%arg0: i32, %arg1: i32) -> (i32, i32) {
    %c0_i32 = arith.constant 0 : i32
    %c0_i32_0 = arith.constant 0 : i32
    %c0_i32_1 = arith.constant 0 : i32
    return %c0_i32, %c0_i32_0 : i32, i32
  }
  func.func @transform_5(%arg0: i32, %arg1: i32) -> (i32, i32) {
    %c0_i32 = arith.constant 0 : i32
    %c0_i32_0 = arith.constant 0 : i32
    %c0_i32_1 = arith.constant 0 : i32
    return %c0_i32, %c0_i32_0 : i32, i32
  }
  func.func @transform_6(%arg0: i32, %arg1: i32) -> (i32, i32) {
    %c0_i32 = arith.constant 0 : i32
    %c0_i32_0 = arith.constant 0 : i32
    %c0_i32_1 = arith.constant 0 : i32
    return %c0_i32, %c0_i32_0 : i32, i32
  }
  func.func @transform_7(%arg0: i32, %arg1: i32) -> (i32, i32) {
    %c0_i32 = arith.constant 0 : i32
    %c0_i32_0 = arith.constant 0 : i32
    %c0_i32_1 = arith.constant 0 : i32
    return %c0_i32, %c0_i32_0 : i32, i32
  }
  func.func @transform_8(%arg0: i32, %arg1: i32) -> (i32, i32) {
    %c0_i32 = arith.constant 0 : i32
    %c0_i32_0 = arith.constant 0 : i32
    %c0_i32_1 = arith.constant 0 : i32
    return %c0_i32, %c0_i32_0 : i32, i32
  }
  func.func @transform_9(%arg0: i32, %arg1: i32) -> (i32, i32) {
    %c0_i32 = arith.constant 0 : i32
    %c0_i32_0 = arith.constant 0 : i32
    %c0_i32_1 = arith.constant 0 : i32
    return %c0_i32, %c0_i32_0 : i32, i32
  }
  func.func @transform_10(%arg0: i32, %arg1: i32) -> (i32, i32) {
    %c0_i32 = arith.constant 0 : i32
    %c0_i32_0 = arith.constant 0 : i32
    %c0_i32_1 = arith.constant 0 : i32
    return %c0_i32, %c0_i32_0 : i32, i32
  }
  func.func @transform_11(%arg0: i32, %arg1: i32) -> (i32, i32) {
    %c0_i32 = arith.constant 0 : i32
    %c0_i32_0 = arith.constant 0 : i32
    %c0_i32_1 = arith.constant 0 : i32
    return %c0_i32, %c0_i32_0 : i32, i32
  }
  func.func @transform_12(%arg0: i32, %arg1: i32) -> (i32, i32) {
    %c0_i32 = arith.constant 0 : i32
    %c0_i32_0 = arith.constant 0 : i32
    %c0_i32_1 = arith.constant 0 : i32
    return %c0_i32, %c0_i32_0 : i32, i32
  }
  func.func @transform_13(%arg0: i32, %arg1: i32) -> (i32, i32) {
    %c0_i32 = arith.constant 0 : i32
    %c0_i32_0 = arith.constant 0 : i32
    %c0_i32_1 = arith.constant 0 : i32
    return %c0_i32, %c0_i32_0 : i32, i32
  }
  func.func @transform_14(%arg0: i32, %arg1: i32) -> (i32, i32) {
    %c0_i32 = arith.constant 0 : i32
    %c0_i32_0 = arith.constant 0 : i32
    %c0_i32_1 = arith.constant 0 : i32
    return %c0_i32, %c0_i32_0 : i32, i32
  }
  func.func @transform_15(%arg0: i32, %arg1: i32) -> (i32, i32) {
    %c0_i32 = arith.constant 0 : i32
    %c0_i32_0 = arith.constant 0 : i32
    %c0_i32_1 = arith.constant 0 : i32
    return %c0_i32, %c0_i32_0 : i32, i32
  }
  func.func @transform_16(%arg0: i32, %arg1: i32) -> (i32, i32, i32) {
    %c0_i32 = arith.constant 0 : i32
    %c0_i32_0 = arith.constant 0 : i32
    return %arg0, %c0_i32, %arg1 : i32, i32, i32
  }
}

</mosaic_0001>

<llo_original>
// kernel: _lambda_.3
$region0: #{_lambda_.3}
  #allocation0 [shape = 'u32[]', space=smem, size = 0x4, offset = 0x4, fixed_abs, tag = 'smem constant byte address 0x4 - core index']
  #allocation1 [shape = 'u32[144,128]{1,0:T(1,128)}', space=vmem, size = 0x12000, scoped, tag = 'internal scratch']
  %s0 = inlined_call_operand.vmem [shape: f32[2,128,3], index: 0, kind: input, shape index: {}]
  %s1 = inlined_call_operand.vmem [shape: bf16[3,64], index: 1, kind: input, shape index: {}]
  %s2 = inlined_call_operand.vmem [shape: f32[1,64], index: 2, kind: input, shape index: {}]
  %s3 = inlined_call_operand.vmem [shape: f32[1,64], index: 3, kind: input, shape index: {}]
  %s4 = inlined_call_operand.vmem [shape: bf16[64,128], index: 4, kind: input, shape index: {}]
  %s5 = inlined_call_operand.vmem [shape: f32[1,128], index: 5, kind: input, shape index: {}]
  %s6 = inlined_call_operand.vmem [shape: f32[1,128], index: 6, kind: input, shape index: {}]
  %s7 = inlined_call_operand.vmem [shape: bf16[128,1024], index: 7, kind: input, shape index: {}]
  %s8 = inlined_call_operand.hbm [shape: f32[1,1024], index: 8, kind: input, shape index: {}]
  %s9 = inlined_call_operand.hbm [shape: f32[1,1024], index: 9, kind: input, shape index: {}]
  %s10 = inlined_call_operand.vmem [shape: f32[2,1,1024], index: 10, kind: output, shape index: {}]
  %s11 = sld [smem:[#allocation0]]
  $region85: #{_lambda_.3} parent=0
    _
  %s13 = ssub.s32 1, %s11
  %s14 = scalar_select 0, %s13, %s11
  $region1: #{_lambda_.3} parent=0
    #allocation2 [shape = 'u8[4096]{0}', space=vmem, size = 0x1000, scoped, tag = 'input window, operand 8, single buffered']
    #allocation3 [shape = 's32[2]{0}', space=sflag, size = 0x8, scoped, tag = 'scoped memory for _lambda_.3']
    #allocation4 [shape = 'u8[4096]{0}', space=vmem, size = 0x1000, scoped, tag = 'input window, operand 9, single buffered']
    #allocation5 [shape = 's32[1]{0}', space=sflag, size = 0x4, scoped, tag = 'scoped memory for _lambda_.3']
    %15 = vsyncpa [#allocation3], 0
    %16 = vsyncpa [#allocation5], 0
    loop: start=0, step=1, limit=4
    $region2: #{_lambda_.3} parent=1 // loop_pre_header
      _
    $region3: #{_lambda_.3} parent=1 // loop_header
      %s18 = sphi 0, %s22
      %p19 = scmp.ge.s32.totalorder %s18, 4
      %s25 = sphi 0, %s37
      %s26 = sphi 0, %s33
      %s27 = sphi 0, %s25
      %s28 = sphi 0, %s26
      %s29 = sphi 0, %s27
      %s30 = sphi 0, %s28
      %s42 = sphi 0, %s44
      %s45 = sphi 0, %s42
      %s46 = sphi 0, %s45
      %s62 = sphi 0, %s46
      %s66 = sphi 0, %s66
      %s68 = sphi 0, %s66
      %s69 = sphi 0, %s68
      %s83 = sphi 0, %s69
      %s87 = sphi 0, %s87
      %s89 = sphi 0, %s87
      %s90 = sphi 0, %s89
      %s104 = sphi 0, %s90
      %s108 = sphi 0, %s108
      %s110 = sphi 0, %s108
      %s111 = sphi 0, %s110
      %s125 = sphi 0, %s111
      %s129 = sphi 0, %s129
      %s131 = sphi 0, %s129
      %s132 = sphi 0, %s131
      %s146 = sphi 0, %s132
      %s150 = sphi 0, %s150
      %s152 = sphi 0, %s150
      %s153 = sphi 0, %s152
      %s167 = sphi 0, %s153
      %s171 = sphi 0, %s171
      %s173 = sphi 0, %s171
      %s174 = sphi 0, %s173
      %s188 = sphi 0, %s174
      %s192 = sphi 0, %s192
      %s194 = sphi 0, %s192
      %s195 = sphi 0, %s194
      %s209 = sphi 0, %s195
      %s213 = sphi 0, %s213
      %s215 = sphi 0, %s213
      %s216 = sphi 0, %s215
      %s230 = sphi 0, %s216
      %s234 = sphi 0, %s234
      %s236 = sphi 0, %s234
      %s237 = sphi 0, %s236
      %s251 = sphi 0, %s237
      %s257 = sphi 0, %s259
      %s260 = sphi 0, %s257
      %s261 = sphi 0, %s260
      %s277 = sphi 0, %s261
    $region4: #{_lambda_.3} parent=1 // loop_header_branch
      %21 = sbr.rel (%p19) target = $region8
    $region5: #{_lambda_.3} parent=1 // loop_body
      %s23 = ssub.s32 %s18, 1
      %s24 = ssub.s32 %s18, 2
      %s31 = sadd.s32 1, %s26
      %p32 = scmp.ge.s32.totalorder %s31, 1
      %s33 = scalar_select %p32, 0, %s31
      %s34 = sadd.s32 1, %s25
      %s35 = scalar_select %p32, %s34, %s25
      %p36 = scmp.ge.s32.totalorder %s35, 2
      %s37 = scalar_select %p36, 0, %s35
      %s38 = ssub.s32 %s25, %s37
      %s39 = ssub.s32 %s26, %s33
      %s40 = sor.u32 %s38, %s39
      %p41 = scmp.eq.s32.totalorder %s40, 0
      %s43 = sadd.s32 %s42, 1
      %s44 = scalar_select %p41, %s42, %s43
      %p47 = pneg %p41
      %p48 = scmp.eq.s32.totalorder %s18, 1
      %p49 = por %p47, %p48
      %p50 = scmp.ne.s32.totalorder %s42, %s45
      %p51 = scmp.eq.s32.totalorder %s18, 0
      %p52 = por %p50, %p51
      %p53 = scmp.ne.s32.totalorder %s42, %s45
      %p54 = scmp.eq.s32.totalorder %s23, 1
      %p55 = por %p53, %p54
      %p56 = scmp.ne.s32.totalorder %s45, %s46
      %p57 = scmp.eq.s32.totalorder %s23, 0
      %p58 = por %p56, %p57
      %p59 = scmp.ne.s32.totalorder %s45, %s46
      %p60 = scmp.eq.s32.totalorder %s24, 1
      %p61 = por %p59, %p60
      %p63 = scmp.ne.s32.totalorder %s46, %s62
      %p64 = scmp.eq.s32.totalorder %s24, 0
      %p65 = por %p63, %p64
      %s67 = sadd.s32 %s66, 1
      %p70 = scmp.eq.s32.totalorder %s18, 1
      %p71 = scmp.ne.s32.totalorder %s66, %s68
      %p72 = scmp.eq.s32.totalorder %s18, 0
      %p73 = por %p71, %p72
      %p74 = scmp.ne.s32.totalorder %s66, %s68
      %p75 = scmp.eq.s32.totalorder %s23, 1
      %p76 = por %p74, %p75
      %p77 = scmp.ne.s32.totalorder %s68, %s69
      %p78 = scmp.eq.s32.totalorder %s23, 0
      %p79 = por %p77, %p78
      %p80 = scmp.ne.s32.totalorder %s68, %s69
      %p81 = scmp.eq.s32.totalorder %s24, 1
      %p82 = por %p80, %p81
      %p84 = scmp.ne.s32.totalorder %s69, %s83
      %p85 = scmp.eq.s32.totalorder %s24, 0
      %p86 = por %p84, %p85
      %s88 = sadd.s32 %s87, 1
      %p91 = scmp.eq.s32.totalorder %s18, 1
      %p92 = scmp.ne.s32.totalorder %s87, %s89
      %p93 = scmp.eq.s32.totalorder %s18, 0
      %p94 = por %p92, %p93
      %p95 = scmp.ne.s32.totalorder %s87, %s89
      %p96 = scmp.eq.s32.totalorder %s23, 1
      %p97 = por %p95, %p96
      %p98 = scmp.ne.s32.totalorder %s89, %s90
      %p99 = scmp.eq.s32.totalorder %s23, 0
      %p100 = por %p98, %p99
      %p101 = scmp.ne.s32.totalorder %s89, %s90
      %p102 = scmp.eq.s32.totalorder %s24, 1
      %p103 = por %p101, %p102
      %p105 = scmp.ne.s32.totalorder %s90, %s104
      %p106 = scmp.eq.s32.totalorder %s24, 0
      %p107 = por %p105, %p106
      %s109 = sadd.s32 %s108, 1
      %p112 = scmp.eq.s32.totalorder %s18, 1
      %p113 = scmp.ne.s32.totalorder %s108, %s110
      %p114 = scmp.eq.s32.totalorder %s18, 0
      %p115 = por %p113, %p114
      %p116 = scmp.ne.s32.totalorder %s108, %s110
      %p117 = scmp.eq.s32.totalorder %s23, 1
      %p118 = por %p116, %p117
      %p119 = scmp.ne.s32.totalorder %s110, %s111
      %p120 = scmp.eq.s32.totalorder %s23, 0
      %p121 = por %p119, %p120
      %p122 = scmp.ne.s32.totalorder %s110, %s111
      %p123 = scmp.eq.s32.totalorder %s24, 1
      %p124 = por %p122, %p123
      %p126 = scmp.ne.s32.totalorder %s111, %s125
      %p127 = scmp.eq.s32.totalorder %s24, 0
      %p128 = por %p126, %p127
      %s130 = sadd.s32 %s129, 1
      %p133 = scmp.eq.s32.totalorder %s18, 1
      %p134 = scmp.ne.s32.totalorder %s129, %s131
      %p135 = scmp.eq.s32.totalorder %s18, 0
      %p136 = por %p134, %p135
      %p137 = scmp.ne.s32.totalorder %s129, %s131
      %p138 = scmp.eq.s32.totalorder %s23, 1
      %p139 = por %p137, %p138
      %p140 = scmp.ne.s32.totalorder %s131, %s132
      %p141 = scmp.eq.s32.totalorder %s23, 0
      %p142 = por %p140, %p141
      %p143 = scmp.ne.s32.totalorder %s131, %s132
      %p144 = scmp.eq.s32.totalorder %s24, 1
      %p145 = por %p143, %p144
      %p147 = scmp.ne.s32.totalorder %s132, %s146
      %p148 = scmp.eq.s32.totalorder %s24, 0
      %p149 = por %p147, %p148
      %s151 = sadd.s32 %s150, 1
      %p154 = scmp.eq.s32.totalorder %s18, 1
      %p155 = scmp.ne.s32.totalorder %s150, %s152
      %p156 = scmp.eq.s32.totalorder %s18, 0
      %p157 = por %p155, %p156
      %p158 = scmp.ne.s32.totalorder %s150, %s152
      %p159 = scmp.eq.s32.totalorder %s23, 1
      %p160 = por %p158, %p159
      %p161 = scmp.ne.s32.totalorder %s152, %s153
      %p162 = scmp.eq.s32.totalorder %s23, 0
      %p163 = por %p161, %p162
      %p164 = scmp.ne.s32.totalorder %s152, %s153
      %p165 = scmp.eq.s32.totalorder %s24, 1
      %p166 = por %p164, %p165
      %p168 = scmp.ne.s32.totalorder %s153, %s167
      %p169 = scmp.eq.s32.totalorder %s24, 0
      %p170 = por %p168, %p169
      %s172 = sadd.s32 %s171, 1
      %p175 = scmp.eq.s32.totalorder %s18, 1
      %p176 = scmp.ne.s32.totalorder %s171, %s173
      %p177 = scmp.eq.s32.totalorder %s18, 0
      %p178 = por %p176, %p177
      %p179 = scmp.ne.s32.totalorder %s171, %s173
      %p180 = scmp.eq.s32.totalorder %s23, 1
      %p181 = por %p179, %p180
      %p182 = scmp.ne.s32.totalorder %s173, %s174
      %p183 = scmp.eq.s32.totalorder %s23, 0
      %p184 = por %p182, %p183
      %p185 = scmp.ne.s32.totalorder %s173, %s174
      %p186 = scmp.eq.s32.totalorder %s24, 1
      %p187 = por %p185, %p186
      %p189 = scmp.ne.s32.totalorder %s174, %s188
      %p190 = scmp.eq.s32.totalorder %s24, 0
      %p191 = por %p189, %p190
      %s193 = sadd.s32 %s192, 1
      %p196 = scmp.eq.s32.totalorder %s18, 1
      %p197 = scmp.ne.s32.totalorder %s192, %s194
      %p198 = scmp.eq.s32.totalorder %s18, 0
      %p199 = por %p197, %p198
      %p200 = scmp.ne.s32.totalorder %s192, %s194
      %p201 = scmp.eq.s32.totalorder %s23, 1
      %p202 = por %p200, %p201
      %p203 = scmp.ne.s32.totalorder %s194, %s195
      %p204 = scmp.eq.s32.totalorder %s23, 0
      %p205 = por %p203, %p204
      %p206 = scmp.ne.s32.totalorder %s194, %s195
      %p207 = scmp.eq.s32.totalorder %s24, 1
      %p208 = por %p206, %p207
      %p210 = scmp.ne.s32.totalorder %s195, %s209
      %p211 = scmp.eq.s32.totalorder %s24, 0
      %p212 = por %p210, %p211
      %s214 = sadd.s32 %s213, 1
      %p217 = scmp.eq.s32.totalorder %s18, 1
      %p218 = scmp.ne.s32.totalorder %s213, %s215
      %p219 = scmp.eq.s32.totalorder %s18, 0
      %p220 = por %p218, %p219
      %p221 = scmp.ne.s32.totalorder %s213, %s215
      %p222 = scmp.eq.s32.totalorder %s23, 1
      %p223 = por %p221, %p222
      %p224 = scmp.ne.s32.totalorder %s215, %s216
      %p225 = scmp.eq.s32.totalorder %s23, 0
      %p226 = por %p224, %p225
      %p227 = scmp.ne.s32.totalorder %s215, %s216
      %p228 = scmp.eq.s32.totalorder %s24, 1
      %p229 = por %p227, %p228
      %p231 = scmp.ne.s32.totalorder %s216, %s230
      %p232 = scmp.eq.s32.totalorder %s24, 0
      %p233 = por %p231, %p232
      %s235 = sadd.s32 %s234, 1
      %p238 = scmp.eq.s32.totalorder %s18, 1
      %p239 = scmp.ne.s32.totalorder %s234, %s236
      %p240 = scmp.eq.s32.totalorder %s18, 0
      %p241 = por %p239, %p240
      %p242 = scmp.ne.s32.totalorder %s234, %s236
      %p243 = scmp.eq.s32.totalorder %s23, 1
      %p244 = por %p242, %p243
      %p245 = scmp.ne.s32.totalorder %s236, %s237
      %p246 = scmp.eq.s32.totalorder %s23, 0
      %p247 = por %p245, %p246
      %p248 = scmp.ne.s32.totalorder %s236, %s237
      %p249 = scmp.eq.s32.totalorder %s24, 1
      %p250 = por %p248, %p249
      %p252 = scmp.ne.s32.totalorder %s237, %s251
      %p253 = scmp.eq.s32.totalorder %s24, 0
      %p254 = por %p252, %p253
      %s255 = ssub.s32 %s25, %s37
      %p256 = scmp.eq.s32.totalorder %s255, 0
      %s258 = sadd.s32 %s257, 1
      %s259 = scalar_select %p256, %s257, %s258
      %p262 = pneg %p256
      %p263 = scmp.eq.s32.totalorder %s18, 1
      %p264 = por %p262, %p263
      %p265 = scmp.ne.s32.totalorder %s257, %s260
      %p266 = scmp.eq.s32.totalorder %s18, 0
      %p267 = por %p265, %p266
      %p268 = scmp.ne.s32.totalorder %s257, %s260
      %p269 = scmp.eq.s32.totalorder %s23, 1
      %p270 = por %p268, %p269
      %p271 = scmp.ne.s32.totalorder %s260, %s261
      %p272 = scmp.eq.s32.totalorder %s23, 0
      %p273 = por %p271, %p272
      %p274 = scmp.ne.s32.totalorder %s260, %s261
      %p275 = scmp.eq.s32.totalorder %s24, 1
      %p276 = por %p274, %p275
      %p278 = scmp.ne.s32.totalorder %s261, %s277
      %p279 = scmp.eq.s32.totalorder %s24, 0
      %p280 = por %p278, %p279
      %p281 = scmp.le.s32.totalorder 1, %s18
      %p282 = scmp.lt.s32.totalorder %s18, 3
      %p283 = pnand %p281, %p282
      %p284 = pneg %p283
      // Predicated region
      $region9: #{_lambda_.3} parent=5 // pred_check
        _
      $region10: #{_lambda_.3} parent=5 // pred_check_branch
        %286 = sbr.rel (%p283) target = $region12
      $region11: #{_lambda_.3} parent=5 // pred_region
        %s287 = ssub.s32 %s18, 1
        // Predicated region
        $region13: #{_lambda_.3} parent=11 // pred_check
          %p288 = pneg %p79
        $region14: #{_lambda_.3} parent=11 // pred_check_branch
          %290 = sbr.rel (%p288) target = $region16
        $region15: #{_lambda_.3} parent=11 // pred_region
          _
        $region16: #{_lambda_.3} parent=11 // pred_fallthru
          _
        // Predicated region
        $region17: #{_lambda_.3} parent=11 // pred_check
          %p291 = pneg %p100
        $region18: #{_lambda_.3} parent=11 // pred_check_branch
          %293 = sbr.rel (%p291) target = $region20
        $region19: #{_lambda_.3} parent=11 // pred_region
          _
        $region20: #{_lambda_.3} parent=11 // pred_fallthru
          _
        // Predicated region
        $region21: #{_lambda_.3} parent=11 // pred_check
          %p294 = pneg %p121
        $region22: #{_lambda_.3} parent=11 // pred_check_branch
          %296 = sbr.rel (%p294) target = $region24
        $region23: #{_lambda_.3} parent=11 // pred_region
          _
        $region24: #{_lambda_.3} parent=11 // pred_fallthru
          _
        // Predicated region
        $region25: #{_lambda_.3} parent=11 // pred_check
          %p297 = pneg %p142
        $region26: #{_lambda_.3} parent=11 // pred_check_branch
          %299 = sbr.rel (%p297) target = $region28
        $region27: #{_lambda_.3} parent=11 // pred_region
          _
        $region28: #{_lambda_.3} parent=11 // pred_fallthru
          _
        // Predicated region
        $region29: #{_lambda_.3} parent=11 // pred_check
          %p300 = pneg %p163
        $region30: #{_lambda_.3} parent=11 // pred_check_branch
          %302 = sbr.rel (%p300) target = $region32
        $region31: #{_lambda_.3} parent=11 // pred_region
          _
        $region32: #{_lambda_.3} parent=11 // pred_fallthru
          _
        // Predicated region
        $region33: #{_lambda_.3} parent=11 // pred_check
          %p303 = pneg %p184
        $region34: #{_lambda_.3} parent=11 // pred_check_branch
          %305 = sbr.rel (%p303) target = $region36
        $region35: #{_lambda_.3} parent=11 // pred_region
          _
        $region36: #{_lambda_.3} parent=11 // pred_fallthru
          _
        // Predicated region
        $region37: #{_lambda_.3} parent=11 // pred_check
          %p306 = pneg %p205
        $region38: #{_lambda_.3} parent=11 // pred_check_branch
          %308 = sbr.rel (%p306) target = $region40
        $region39: #{_lambda_.3} parent=11 // pred_region
          _
        $region40: #{_lambda_.3} parent=11 // pred_fallthru
          _
        // Predicated region
        $region41: #{_lambda_.3} parent=11 // pred_check
          %p309 = pneg %p226
        $region42: #{_lambda_.3} parent=11 // pred_check_branch
          %311 = sbr.rel (%p309) target = $region44
        $region43: #{_lambda_.3} parent=11 // pred_region
          %s313 = ssub.s32 128, 128
          %314 = vsyncadd [#allocation3], %s313
          %s316 = sshll.u32 [#allocation2], 4
          %s317 = int_to_ptr.vmem [resolvable:$true] %s316
          %319 = dma.hbm_to_vmem [thread:$0]  %s8, 128, %s317, [#allocation3]
        $region44: #{_lambda_.3} parent=11 // pred_fallthru
          _
        // Predicated region
        $region45: #{_lambda_.3} parent=11 // pred_check
          %p320 = pneg %p247
        $region46: #{_lambda_.3} parent=11 // pred_check_branch
          %322 = sbr.rel (%p320) target = $region48
        $region47: #{_lambda_.3} parent=11 // pred_region
          %s324 = ssub.s32 128, 128
          %325 = vsyncadd [#allocation5], %s324
          %s327 = sshll.u32 [#allocation4], 4
          %s328 = int_to_ptr.vmem [resolvable:$true] %s327
          %330 = dma.hbm_to_vmem [thread:$0]  %s9, 128, %s328, [#allocation5]
        $region48: #{_lambda_.3} parent=11 // pred_fallthru
          _
      $region12: #{_lambda_.3} parent=5 // pred_fallthru
        _
      %p331 = scmp.lt.s32.totalorder %s18, 2
      // Predicated region
      $region49: #{_lambda_.3} parent=5 // pred_check
        %p332 = pneg %p331
      $region50: #{_lambda_.3} parent=5 // pred_check_branch
        %334 = sbr.rel (%p332) target = $region52
      $region51: #{_lambda_.3} parent=5 // pred_region
        // Predicated region
        $region53: #{_lambda_.3} parent=51 // pred_check
          %p335 = pneg %p52
        $region54: #{_lambda_.3} parent=51 // pred_check_branch
          %337 = sbr.rel (%p335) target = $region56
        $region55: #{_lambda_.3} parent=51 // pred_region
          %s338 = smul.u32 16, %s26
          %p339 = scmp.lt.s32.totalorder %s25, 1
          %s340 = scalar_select %p339, %s25, 1
          %p341 = scmp.lt.s32.totalorder %s338, 15
          %s342 = scalar_select %p341, %s338, 15
          %s343 = smul.addr %s340, 16
          %s344 = sadd.s32 %s342, %s343
          %s345 = smul.addr %s344, 8
          %s346 = scalar_lea.vmem %s0, %s345
          %s347 = smul.u32 16, %s26
        $region56: #{_lambda_.3} parent=51 // pred_fallthru
          _
      $region52: #{_lambda_.3} parent=5 // pred_fallthru
        _
      %p348 = scmp.le.s32.totalorder 1, %s18
      %p349 = scmp.lt.s32.totalorder %s18, 3
      %p350 = pnand %p348, %p349
      %p351 = pneg %p350
      // Predicated region
      $region57: #{_lambda_.3} parent=5 // pred_check
        _
      $region58: #{_lambda_.3} parent=5 // pred_check_branch
        %353 = sbr.rel (%p350) target = $region60
      $region59: #{_lambda_.3} parent=5 // pred_region
        %s354 = ssub.s32 %s18, 1
        // Predicated region
        $region61: #{_lambda_.3} parent=59 // pred_check
          %p355 = pneg %p226
        $region62: #{_lambda_.3} parent=59 // pred_check_branch
          %357 = sbr.rel (%p355) target = $region64
        $region63: #{_lambda_.3} parent=59 // pred_region
          %358 = dma.done [#allocation3], 128
        $region64: #{_lambda_.3} parent=59 // pred_fallthru
          _
        // Predicated region
        $region65: #{_lambda_.3} parent=59 // pred_check
          %p359 = pneg %p247
        $region66: #{_lambda_.3} parent=59 // pred_check_branch
          %361 = sbr.rel (%p359) target = $region68
        $region67: #{_lambda_.3} parent=59 // pred_region
          %362 = dma.done [#allocation5], 128
        $region68: #{_lambda_.3} parent=59 // pred_fallthru
          _
        %s363 = smul.u32 16, %s28
        %p364 = scmp.lt.s32.totalorder %s27, 1
        %s365 = scalar_select %p364, %s27, 1
        %p366 = scmp.lt.s32.totalorder %s363, 15
        %s367 = scalar_select %p366, %s363, 15
        %s368 = smul.addr %s365, 16
        %s369 = sadd.s32 %s367, %s368
        %s370 = smul.addr %s369, 8
        %s371 = scalar_lea.vmem %s0, %s370
        %p372 = pneg %p58
        %p373 = pneg %p55
        %p374 = pneg %p79
        %p375 = pneg %p76
        %p376 = pneg %p100
        %p377 = pneg %p97
        %p378 = pneg %p121
        %p379 = pneg %p118
        %p380 = pneg %p142
        %p381 = pneg %p139
        %p382 = pneg %p163
        %p383 = pneg %p160
        %p384 = pneg %p184
        %p385 = pneg %p181
        %p386 = pneg %p205
        %p387 = pneg %p202
        %p388 = pneg %p226
        %p389 = pneg %p223
        %p390 = pneg %p247
        %p391 = pneg %p244
        %p392 = pneg %p273
        %p393 = pneg %p270
        %p394 = scmp.lt.s32.totalorder %s27, 1
        %s395 = scalar_select %p394, %s27, 1
        %s396 = smul.addr %s395, 8
        %s397 = scalar_lea.vmem %s10, %s396
        %s398 = smul.u32 16, %s28
        %p399 = scmp.lt.s32.totalorder %s27, 1
        %s400 = scalar_select %p399, %s27, 1
        %p401 = scmp.lt.s32.totalorder %s398, 15
        %s402 = scalar_select %p401, %s398, 15
        %s403 = smul.addr %s400, 16
        %s404 = sadd.s32 %s402, %s403
        %s405 = smul.addr %s404, 8
        %s406 = scalar_lea.vmem %s0, %s405
        %s407 = smul.u32 16, %s28
        %p408 = scmp.lt.s32.totalorder %s27, 1
        %s409 = scalar_select %p408, %s27, 1
        %s410 = smul.addr %s409, 8
        %s411 = scalar_lea.vmem %s10, %s410
        %p413 = scmp.eq.s32.totalorder %s28, 0
        // Predicated region
        $region69: #{_lambda_.3} parent=59 // pred_check
          %p414 = pneg %p413
        $region70: #{_lambda_.3} parent=59 // pred_check_branch
          %416 = sbr.rel (%p414) target = $region72
        $region71: #{_lambda_.3} parent=59 // pred_region
          %417 = vst [vmem:[%s411] sm:$0xff] -inf
        $region72: #{_lambda_.3} parent=59 // pred_fallthru
          _
        %v418 = vld [vmem:[%s406] sm:$0xff]
        %v419 = vld [vmem:[%s406 + $0x8] sm:$0xff]
        %v420 = vld [vmem:[%s406 + $0x10] sm:$0xff]
        %v421 = vld [vmem:[%s406 + $0x18] sm:$0xff]
        %v422 = vld [vmem:[%s406 + $0x20] sm:$0xff]
        %v423 = vld [vmem:[%s406 + $0x28] sm:$0xff]
        %v424 = vld [vmem:[%s406 + $0x30] sm:$0xff]
        %v425 = vld [vmem:[%s406 + $0x38] sm:$0xff]
        %v426 = vld [vmem:[%s406 + $0x40] sm:$0xff]
        %v427 = vld [vmem:[%s406 + $0x48] sm:$0xff]
        %v428 = vld [vmem:[%s406 + $0x50] sm:$0xff]
        %v429 = vld [vmem:[%s406 + $0x58] sm:$0xff]
        %v430 = vld [vmem:[%s406 + $0x60] sm:$0xff]
        %v431 = vld [vmem:[%s406 + $0x68] sm:$0xff]
        %v432 = vld [vmem:[%s406 + $0x70] sm:$0xff]
        %v433 = vld [vmem:[%s406 + $0x78] sm:$0xff]
        %v434 = vpack.c.bf16 %v419, %v418
        %v435 = vpack.c.bf16 %v421, %v420
        %v436 = vpack.c.bf16 %v423, %v422
        %v437 = vpack.c.bf16 %v425, %v424
        %v438 = vpack.c.bf16 %v427, %v426
        %v439 = vpack.c.bf16 %v429, %v428
        %v440 = vpack.c.bf16 %v431, %v430
        %v441 = vpack.c.bf16 %v433, %v432
        %v442 = vld [vmem:[%s1] sm:$0x3]
        %vm443 = vcmask 23552
        %v445 = vsel %vm443, %v434, 0
        %v448 = vsel %vm443, %v435, 0
        %v451 = vsel %vm443, %v436, 0
        %v454 = vsel %vm443, %v437, 0
        %v457 = vsel %vm443, %v438, 0
        %v460 = vsel %vm443, %v439, 0
        %v463 = vsel %vm443, %v440, 0
        %v466 = vsel %vm443, %v441, 0
        %vm468 = vcmask 1040384
        %vm469 = vcmask 1041408
        %v470 = vsel %vm468, 4294967295, 65535
        %v471 = vsel %vm469, %v470, 0
        %v473 = vand.u32 %v442, %v471
        %475 = vmatprep.subr.bf16.mxu0 0
        %476 = vmatpush1.bf16.msra.mxu0 %v473
        %477 = vmatprep.subr.bf16.mxu0 0
        %478 = vmatpush1.bf16.msra.mxu0 0
        %479 = vmatprep.subr.bf16.mxu0 0
        %480 = vmatpush1.bf16.msra.mxu0 0
        %481 = vmatprep.subr.bf16.mxu0 0
        %482 = vmatpush1.bf16.msra.mxu0 0
        %483 = vmatprep.subr.bf16.mxu0 0
        %484 = vmatpush1.bf16.msra.mxu0 0
        %485 = vmatprep.subr.bf16.mxu0 0
        %486 = vmatpush1.bf16.msra.mxu0 0
        %487 = vmatprep.subr.bf16.mxu0 0
        %488 = vmatpush1.bf16.msra.mxu0 0
        %489 = vmatprep.subr.bf16.mxu0 0
        %490 = vmatpush1.bf16.msra.mxu0 0
        %491 = vmatprep.subr.bf16.mxu0 0
        %492 = vmatpush1.bf16.msra.mxu0 0
        %493 = vmatprep.subr.bf16.mxu0 0
        %494 = vmatpush1.bf16.msra.mxu0 0
        %495 = vmatprep.subr.bf16.mxu0 0
        %496 = vmatpush1.bf16.msra.mxu0 0
        %497 = vmatprep.subr.bf16.mxu0 0
        %498 = vmatpush1.bf16.msra.mxu0 0
        %499 = vmatprep.subr.bf16.mxu0 0
        %500 = vmatpush1.bf16.msra.mxu0 0
        %501 = vmatprep.subr.bf16.mxu0 0
        %502 = vmatpush1.bf16.msra.mxu0 0
        %503 = vmatprep.subr.bf16.mxu0 0
        %504 = vmatpush1.bf16.msra.mxu0 0
        %505 = vmatprep.subr.bf16.mxu0 0
        %506 = vmatpush1.bf16.msra.mxu0 0
        %507 = vmatprep.mubr.bf16.mxu0 0
        %508 = vmatmul.mubr.bf16.gmra.mrb[0].mxu0 %v445
        %v509 = vpop.f32.mrb[0].mxu0
        %v510 = vadd.f32 0.0, %v509
        %v511 = vpop.f32.mrb[0].mxu0
        %v512 = vpop.f32.mrb[0].mxu0
        %v513 = vadd.f32 0.0, %v512
        %v514 = vpop.f32.mrb[0].mxu0
        %515 = vmatprep.mubr.bf16.mxu0 0
        %516 = vmatmul.mubr.bf16.gmra.mrb[0].mxu0 %v448
        %v517 = vpop.f32.mrb[0].mxu0
        %v518 = vadd.f32 0.0, %v517
        %v519 = vpop.f32.mrb[0].mxu0
        %v520 = vpop.f32.mrb[0].mxu0
        %v521 = vadd.f32 0.0, %v520
        %v522 = vpop.f32.mrb[0].mxu0
        %523 = vmatprep.mubr.bf16.mxu0 0
        %524 = vmatmul.mubr.bf16.gmra.mrb[0].mxu0 %v451
        %v525 = vpop.f32.mrb[0].mxu0
        %v526 = vadd.f32 0.0, %v525
        %v527 = vpop.f32.mrb[0].mxu0
        %v528 = vpop.f32.mrb[0].mxu0
        %v529 = vadd.f32 0.0, %v528
        %v530 = vpop.f32.mrb[0].mxu0
        %531 = vmatprep.mubr.bf16.mxu0 0
        %532 = vmatmul.mubr.bf16.gmra.mrb[0].mxu0 %v454
        %v533 = vpop.f32.mrb[0].mxu0
        %v534 = vadd.f32 0.0, %v533
        %v535 = vpop.f32.mrb[0].mxu0
        %v536 = vpop.f32.mrb[0].mxu0
        %v537 = vadd.f32 0.0, %v536
        %v538 = vpop.f32.mrb[0].mxu0
        %539 = vmatprep.mubr.bf16.mxu0 0
        %540 = vmatmul.mubr.bf16.gmra.mrb[0].mxu0 %v457
        %v541 = vpop.f32.mrb[0].mxu0
        %v542 = vadd.f32 0.0, %v541
        %v543 = vpop.f32.mrb[0].mxu0
        %v544 = vpop.f32.mrb[0].mxu0
        %v545 = vadd.f32 0.0, %v544
        %v546 = vpop.f32.mrb[0].mxu0
        %547 = vmatprep.mubr.bf16.mxu0 0
        %548 = vmatmul.mubr.bf16.gmra.mrb[0].mxu0 %v460
        %v549 = vpop.f32.mrb[0].mxu0
        %v550 = vadd.f32 0.0, %v549
        %v551 = vpop.f32.mrb[0].mxu0
        %v552 = vpop.f32.mrb[0].mxu0
        %v553 = vadd.f32 0.0, %v552
        %v554 = vpop.f32.mrb[0].mxu0
        %555 = vmatprep.mubr.bf16.mxu0 0
        %556 = vmatmul.mubr.bf16.gmra.mrb[0].mxu0 %v463
        %v557 = vpop.f32.mrb[0].mxu0
        %v558 = vadd.f32 0.0, %v557
        %v559 = vpop.f32.mrb[0].mxu0
        %v560 = vpop.f32.mrb[0].mxu0
        %v561 = vadd.f32 0.0, %v560
        %v562 = vpop.f32.mrb[0].mxu0
        %563 = vmatprep.mubr.bf16.mxu0 0
        %564 = vmatmul.mubr.bf16.gmra.mrb[0].mxu0 %v466
        %v565 = vpop.f32.mrb[0].mxu0
        %v566 = vadd.f32 0.0, %v565
        %v567 = vpop.f32.mrb[0].mxu0
        %v568 = vpop.f32.mrb[0].mxu0
        %v569 = vadd.f32 0.0, %v568
        %v570 = vpop.f32.mrb[0].mxu0
        %571 = vdwg.mxu0
        %v572 = vld [vmem:[%s2] sm:$0x1]
        %v574 = vlaneseq
        %v575 = vshrl.u32 %v574, 7
        %v576 = vsub.s32 0, %v575
        %v577 = vrot.slane %v572, %v576
        %v579 = vmul.f32 %v510, %v577
        %v580 = vmul.f32 %v513, %v577
        %v581 = vmul.f32 %v518, %v577
        %v582 = vmul.f32 %v521, %v577
        %v583 = vmul.f32 %v526, %v577
        %v584 = vmul.f32 %v529, %v577
        %v585 = vmul.f32 %v534, %v577
        %v586 = vmul.f32 %v537, %v577
        %v587 = vmul.f32 %v542, %v577
        %v588 = vmul.f32 %v545, %v577
        %v589 = vmul.f32 %v550, %v577
        %v590 = vmul.f32 %v553, %v577
        %v591 = vmul.f32 %v558, %v577
        %v592 = vmul.f32 %v561, %v577
        %v593 = vmul.f32 %v566, %v577
        %v594 = vmul.f32 %v569, %v577
        %v595 = vld [vmem:[%s3] sm:$0x1]
        %v597 = vlaneseq
        %v598 = vshrl.u32 %v597, 7
        %v599 = vsub.s32 0, %v598
        %v600 = vrot.slane %v595, %v599
        %v602 = vadd.f32 %v579, %v600
        %v603 = vadd.f32 %v580, %v600
        %v604 = vadd.f32 %v581, %v600
        %v605 = vadd.f32 %v582, %v600
        %v606 = vadd.f32 %v583, %v600
        %v607 = vadd.f32 %v584, %v600
        %v608 = vadd.f32 %v585, %v600
        %v609 = vadd.f32 %v586, %v600
        %v610 = vadd.f32 %v587, %v600
        %v611 = vadd.f32 %v588, %v600
        %v612 = vadd.f32 %v589, %v600
        %v613 = vadd.f32 %v590, %v600
        %v614 = vadd.f32 %v591, %v600
        %v615 = vadd.f32 %v592, %v600
        %v616 = vadd.f32 %v593, %v600
        %v617 = vadd.f32 %v594, %v600
        %v618 = vmax.f32 %v602, 0.0
        %v619 = vmax.f32 %v603, 0.0
        %v620 = vmax.f32 %v604, 0.0
        %v621 = vmax.f32 %v605, 0.0
        %v622 = vmax.f32 %v606, 0.0
        %v623 = vmax.f32 %v607, 0.0
        %v624 = vmax.f32 %v608, 0.0
        %v625 = vmax.f32 %v609, 0.0
        %v626 = vmax.f32 %v610, 0.0
        %v627 = vmax.f32 %v611, 0.0
        %v628 = vmax.f32 %v612, 0.0
        %v629 = vmax.f32 %v613, 0.0
        %v630 = vmax.f32 %v614, 0.0
        %v631 = vmax.f32 %v615, 0.0
        %v632 = vmax.f32 %v616, 0.0
        %v633 = vmax.f32 %v617, 0.0
        %v634 = vpack.c.bf16 %v619, %v618
        %v635 = vpack.c.bf16 %v621, %v620
        %v636 = vpack.c.bf16 %v623, %v622
        %v637 = vpack.c.bf16 %v625, %v624
        %v638 = vpack.c.bf16 %v627, %v626
        %v639 = vpack.c.bf16 %v629, %v628
        %v640 = vpack.c.bf16 %v631, %v630
        %v641 = vpack.c.bf16 %v633, %v632
        %v642 = vld [vmem:[%s4] sm:$0xf]
        %v643 = vld [vmem:[%s4 + $0x4] sm:$0xf]
        %v644 = vld [vmem:[%s4 + $0x8] sm:$0xf]
        %v645 = vld [vmem:[%s4 + $0xc] sm:$0xf]
        %v646 = vld [vmem:[%s4 + $0x10] sm:$0xf]
        %v647 = vld [vmem:[%s4 + $0x14] sm:$0xf]
        %v648 = vld [vmem:[%s4 + $0x18] sm:$0xf]
        %v649 = vld [vmem:[%s4 + $0x1c] sm:$0xf]
        %v658 = vunpack.c.l.b16 %v642
        %v659 = vunpack.c.l.b16 %v643
        %v660 = vunpack.c.l.b16 %v644
        %v661 = vunpack.c.l.b16 %v645
        %v662 = vunpack.c.l.b16 %v646
        %v663 = vunpack.c.l.b16 %v647
        %v664 = vunpack.c.l.b16 %v648
        %v665 = vunpack.c.l.b16 %v649
        %v666 = vpack.c.b16 %v659, %v658
        %v667 = vpack.c.b16 %v661, %v660
        %v668 = vpack.c.b16 %v663, %v662
        %v669 = vpack.c.b16 %v665, %v664
        %vm674 = vcmask 523264
        %v676 = vsel %vm674, %v634, 0
        %v679 = vsel %vm674, %v635, 0
        %v682 = vsel %vm674, %v636, 0
        %v685 = vsel %vm674, %v637, 0
        %v688 = vsel %vm674, %v638, 0
        %v691 = vsel %vm674, %v639, 0
        %v694 = vsel %vm674, %v640, 0
        %v697 = vsel %vm674, %v641, 0
        %699 = vmatprep.subr.bf16.mxu0 0
        %700 = vmatpush1.bf16.msra.mxu0 %v666
        %701 = vmatprep.subr.bf16.mxu0 0
        %702 = vmatpush1.bf16.msra.mxu0 %v667
        %703 = vmatprep.subr.bf16.mxu0 0
        %704 = vmatpush1.bf16.msra.mxu0 %v668
        %705 = vmatprep.subr.bf16.mxu0 0
        %706 = vmatpush1.bf16.msra.mxu0 %v669
        %707 = vmatprep.subr.bf16.mxu0 0
        %708 = vmatpush1.bf16.msra.mxu0 0
        %709 = vmatprep.subr.bf16.mxu0 0
        %710 = vmatpush1.bf16.msra.mxu0 0
        %711 = vmatprep.subr.bf16.mxu0 0
        %712 = vmatpush1.bf16.msra.mxu0 0
        %713 = vmatprep.subr.bf16.mxu0 0
        %714 = vmatpush1.bf16.msra.mxu0 0
        %715 = vmatprep.subr.bf16.mxu0 0
        %716 = vmatpush1.bf16.msra.mxu0 0
        %717 = vmatprep.subr.bf16.mxu0 0
        %718 = vmatpush1.bf16.msra.mxu0 0
        %719 = vmatprep.subr.bf16.mxu0 0
        %720 = vmatpush1.bf16.msra.mxu0 0
        %721 = vmatprep.subr.bf16.mxu0 0
        %722 = vmatpush1.bf16.msra.mxu0 0
        %723 = vmatprep.subr.bf16.mxu0 0
        %724 = vmatpush1.bf16.msra.mxu0 0
        %725 = vmatprep.subr.bf16.mxu0 0
        %726 = vmatpush1.bf16.msra.mxu0 0
        %727 = vmatprep.subr.bf16.mxu0 0
        %728 = vmatpush1.bf16.msra.mxu0 0
        %729 = vmatprep.subr.bf16.mxu0 0
        %730 = vmatpush1.bf16.msra.mxu0 0
        %731 = vmatprep.mubr.bf16.mxu0 0
        %732 = vmatmul.mubr.bf16.gmra.mrb[0].mxu0 %v676
        %v733 = vpop.f32.mrb[0].mxu0
        %v734 = vadd.f32 0.0, %v733
        %v735 = vpop.f32.mrb[0].mxu0
        %v736 = vpop.f32.mrb[0].mxu0
        %v737 = vadd.f32 0.0, %v736
        %v738 = vpop.f32.mrb[0].mxu0
        %739 = vmatprep.mubr.bf16.mxu0 0
        %740 = vmatmul.mubr.bf16.gmra.mrb[0].mxu0 %v679
        %v741 = vpop.f32.mrb[0].mxu0
        %v742 = vadd.f32 0.0, %v741
        %v743 = vpop.f32.mrb[0].mxu0
        %v744 = vpop.f32.mrb[0].mxu0
        %v745 = vadd.f32 0.0, %v744
        %v746 = vpop.f32.mrb[0].mxu0
        %747 = vmatprep.mubr.bf16.mxu0 0
        %748 = vmatmul.mubr.bf16.gmra.mrb[0].mxu0 %v682
        %v749 = vpop.f32.mrb[0].mxu0
        %v750 = vadd.f32 0.0, %v749
        %v751 = vpop.f32.mrb[0].mxu0
        %v752 = vpop.f32.mrb[0].mxu0
        %v753 = vadd.f32 0.0, %v752
        %v754 = vpop.f32.mrb[0].mxu0
        %755 = vmatprep.mubr.bf16.mxu0 0
        %756 = vmatmul.mubr.bf16.gmra.mrb[0].mxu0 %v685
        %v757 = vpop.f32.mrb[0].mxu0
        %v758 = vadd.f32 0.0, %v757
        %v759 = vpop.f32.mrb[0].mxu0
        %v760 = vpop.f32.mrb[0].mxu0
        %v761 = vadd.f32 0.0, %v760
        %v762 = vpop.f32.mrb[0].mxu0
        %763 = vmatprep.mubr.bf16.mxu0 0
        %764 = vmatmul.mubr.bf16.gmra.mrb[0].mxu0 %v688
        %v765 = vpop.f32.mrb[0].mxu0
        %v766 = vadd.f32 0.0, %v765
        %v767 = vpop.f32.mrb[0].mxu0
        %v768 = vpop.f32.mrb[0].mxu0
        %v769 = vadd.f32 0.0, %v768
        %v770 = vpop.f32.mrb[0].mxu0
        %771 = vmatprep.mubr.bf16.mxu0 0
        %772 = vmatmul.mubr.bf16.gmra.mrb[0].mxu0 %v691
        %v773 = vpop.f32.mrb[0].mxu0
        %v774 = vadd.f32 0.0, %v773
        %v775 = vpop.f32.mrb[0].mxu0
        %v776 = vpop.f32.mrb[0].mxu0
        %v777 = vadd.f32 0.0, %v776
        %v778 = vpop.f32.mrb[0].mxu0
        %779 = vmatprep.mubr.bf16.mxu0 0
        %780 = vmatmul.mubr.bf16.gmra.mrb[0].mxu0 %v694
        %v781 = vpop.f32.mrb[0].mxu0
        %v782 = vadd.f32 0.0, %v781
        %v783 = vpop.f32.mrb[0].mxu0
        %v784 = vpop.f32.mrb[0].mxu0
        %v785 = vadd.f32 0.0, %v784
        %v786 = vpop.f32.mrb[0].mxu0
        %787 = vmatprep.mubr.bf16.mxu0 0
        %788 = vmatmul.mubr.bf16.gmra.mrb[0].mxu0 %v697
        %v789 = vpop.f32.mrb[0].mxu0
        %v790 = vadd.f32 0.0, %v789
        %v791 = vpop.f32.mrb[0].mxu0
        %v792 = vpop.f32.mrb[0].mxu0
        %v793 = vadd.f32 0.0, %v792
        %v794 = vpop.f32.mrb[0].mxu0
        %795 = vdwg.mxu0
        %v796 = vld [vmem:[%s5] sm:$0x1]
        %v798 = vlaneseq
        %v799 = vshrl.u32 %v798, 7
        %v800 = vsub.s32 0, %v799
        %v801 = vrot.slane %v796, %v800
        %v803 = vmul.f32 %v734, %v801
        %v804 = vmul.f32 %v737, %v801
        %v805 = vmul.f32 %v742, %v801
        %v806 = vmul.f32 %v745, %v801
        %v807 = vmul.f32 %v750, %v801
        %v808 = vmul.f32 %v753, %v801
        %v809 = vmul.f32 %v758, %v801
        %v810 = vmul.f32 %v761, %v801
        %v811 = vmul.f32 %v766, %v801
        %v812 = vmul.f32 %v769, %v801
        %v813 = vmul.f32 %v774, %v801
        %v814 = vmul.f32 %v777, %v801
        %v815 = vmul.f32 %v782, %v801
        %v816 = vmul.f32 %v785, %v801
        %v817 = vmul.f32 %v790, %v801
        %v818 = vmul.f32 %v793, %v801
        %v819 = vld [vmem:[%s6] sm:$0x1]
        %v821 = vlaneseq
        %v822 = vshrl.u32 %v821, 7
        %v823 = vsub.s32 0, %v822
        %v824 = vrot.slane %v819, %v823
        %v826 = vadd.f32 %v803, %v824
        %v827 = vadd.f32 %v804, %v824
        %v828 = vadd.f32 %v805, %v824
        %v829 = vadd.f32 %v806, %v824
        %v830 = vadd.f32 %v807, %v824
        %v831 = vadd.f32 %v808, %v824
        %v832 = vadd.f32 %v809, %v824
        %v833 = vadd.f32 %v810, %v824
        %v834 = vadd.f32 %v811, %v824
        %v835 = vadd.f32 %v812, %v824
        %v836 = vadd.f32 %v813, %v824
        %v837 = vadd.f32 %v814, %v824
        %v838 = vadd.f32 %v815, %v824
        %v839 = vadd.f32 %v816, %v824
        %v840 = vadd.f32 %v817, %v824
        %v841 = vadd.f32 %v818, %v824
        %v842 = vmax.f32 %v826, 0.0
        %v843 = vmax.f32 %v827, 0.0
        %v844 = vmax.f32 %v828, 0.0
        %v845 = vmax.f32 %v829, 0.0
        %v846 = vmax.f32 %v830, 0.0
        %v847 = vmax.f32 %v831, 0.0
        %v848 = vmax.f32 %v832, 0.0
        %v849 = vmax.f32 %v833, 0.0
        %v850 = vmax.f32 %v834, 0.0
        %v851 = vmax.f32 %v835, 0.0
        %v852 = vmax.f32 %v836, 0.0
        %v853 = vmax.f32 %v837, 0.0
        %v854 = vmax.f32 %v838, 0.0
        %v855 = vmax.f32 %v839, 0.0
        %v856 = vmax.f32 %v840, 0.0
        %v857 = vmax.f32 %v841, 0.0
        %v858 = vpack.c.bf16 %v843, %v842
        %v859 = vpack.c.bf16 %v845, %v844
        %v860 = vpack.c.bf16 %v847, %v846
        %v861 = vpack.c.bf16 %v849, %v848
        %v862 = vpack.c.bf16 %v851, %v850
        %v863 = vpack.c.bf16 %v853, %v852
        %v864 = vpack.c.bf16 %v855, %v854
        %v865 = vpack.c.bf16 %v857, %v856
        %v866 = vld [vmem:[%s7] sm:$0xff]
        %v867 = vld [vmem:[%s7 + $0x8] sm:$0xff]
        %v868 = vld [vmem:[%s7 + $0x10] sm:$0xff]
        %v869 = vld [vmem:[%s7 + $0x18] sm:$0xff]
        %v870 = vld [vmem:[%s7 + $0x20] sm:$0xff]
        %v871 = vld [vmem:[%s7 + $0x28] sm:$0xff]
        %v872 = vld [vmem:[%s7 + $0x30] sm:$0xff]
        %v873 = vld [vmem:[%s7 + $0x38] sm:$0xff]
        %v874 = vld [vmem:[%s7 + $0x40] sm:$0xff]
        %v875 = vld [vmem:[%s7 + $0x48] sm:$0xff]
        %v876 = vld [vmem:[%s7 + $0x50] sm:$0xff]
        %v877 = vld [vmem:[%s7 + $0x58] sm:$0xff]
        %v878 = vld [vmem:[%s7 + $0x60] sm:$0xff]
        %v879 = vld [vmem:[%s7 + $0x68] sm:$0xff]
        %v880 = vld [vmem:[%s7 + $0x70] sm:$0xff]
        %v881 = vld [vmem:[%s7 + $0x78] sm:$0xff]
        %v882 = vld [vmem:[%s7 + $0x80] sm:$0xff]
        %v883 = vld [vmem:[%s7 + $0x88] sm:$0xff]
        %v884 = vld [vmem:[%s7 + $0x90] sm:$0xff]
        %v885 = vld [vmem:[%s7 + $0x98] sm:$0xff]
        %v886 = vld [vmem:[%s7 + $0xa0] sm:$0xff]
        %v887 = vld [vmem:[%s7 + $0xa8] sm:$0xff]
        %v888 = vld [vmem:[%s7 + $0xb0] sm:$0xff]
        %v889 = vld [vmem:[%s7 + $0xb8] sm:$0xff]
        %v890 = vld [vmem:[%s7 + $0xc0] sm:$0xff]
        %v891 = vld [vmem:[%s7 + $0xc8] sm:$0xff]
        %v892 = vld [vmem:[%s7 + $0xd0] sm:$0xff]
        %v893 = vld [vmem:[%s7 + $0xd8] sm:$0xff]
        %v894 = vld [vmem:[%s7 + $0xe0] sm:$0xff]
        %v895 = vld [vmem:[%s7 + $0xe8] sm:$0xff]
        %v896 = vld [vmem:[%s7 + $0xf0] sm:$0xff]
        %v897 = vld [vmem:[%s7 + $0xf8] sm:$0xff]
        %v898 = vld [vmem:[%s7 + $0x100] sm:$0xff]
        %v899 = vld [vmem:[%s7 + $0x108] sm:$0xff]
        %v900 = vld [vmem:[%s7 + $0x110] sm:$0xff]
        %v901 = vld [vmem:[%s7 + $0x118] sm:$0xff]
        %v902 = vld [vmem:[%s7 + $0x120] sm:$0xff]
        %v903 = vld [vmem:[%s7 + $0x128] sm:$0xff]
        %v904 = vld [vmem:[%s7 + $0x130] sm:$0xff]
        %v905 = vld [vmem:[%s7 + $0x138] sm:$0xff]
        %v906 = vld [vmem:[%s7 + $0x140] sm:$0xff]
        %v907 = vld [vmem:[%s7 + $0x148] sm:$0xff]
        %v908 = vld [vmem:[%s7 + $0x150] sm:$0xff]
        %v909 = vld [vmem:[%s7 + $0x158] sm:$0xff]
        %v910 = vld [vmem:[%s7 + $0x160] sm:$0xff]
        %v911 = vld [vmem:[%s7 + $0x168] sm:$0xff]
        %v912 = vld [vmem:[%s7 + $0x170] sm:$0xff]
        %v913 = vld [vmem:[%s7 + $0x178] sm:$0xff]
        %v914 = vld [vmem:[%s7 + $0x180] sm:$0xff]
        %v915 = vld [vmem:[%s7 + $0x188] sm:$0xff]
        %v916 = vld [vmem:[%s7 + $0x190] sm:$0xff]
        %v917 = vld [vmem:[%s7 + $0x198] sm:$0xff]
        %v918 = vld [vmem:[%s7 + $0x1a0] sm:$0xff]
        %v919 = vld [vmem:[%s7 + $0x1a8] sm:$0xff]
        %v920 = vld [vmem:[%s7 + $0x1b0] sm:$0xff]
        %v921 = vld [vmem:[%s7 + $0x1b8] sm:$0xff]
        %v922 = vld [vmem:[%s7 + $0x1c0] sm:$0xff]
        %v923 = vld [vmem:[%s7 + $0x1c8] sm:$0xff]
        %v924 = vld [vmem:[%s7 + $0x1d0] sm:$0xff]
        %v925 = vld [vmem:[%s7 + $0x1d8] sm:$0xff]
        %v926 = vld [vmem:[%s7 + $0x1e0] sm:$0xff]
        %v927 = vld [vmem:[%s7 + $0x1e8] sm:$0xff]
        %v928 = vld [vmem:[%s7 + $0x1f0] sm:$0xff]
        %v929 = vld [vmem:[%s7 + $0x1f8] sm:$0xff]
        %v994 = vunpack.c.l.b16 %v866
        %v995 = vunpack.c.h.b16 %v866
        %v996 = vunpack.c.l.b16 %v867
        %v997 = vunpack.c.h.b16 %v867
        %v998 = vunpack.c.l.b16 %v868
        %v999 = vunpack.c.h.b16 %v868
        %v1000 = vunpack.c.l.b16 %v869
        %v1001 = vunpack.c.h.b16 %v869
        %v1002 = vunpack.c.l.b16 %v870
        %v1003 = vunpack.c.h.b16 %v870
        %v1004 = vunpack.c.l.b16 %v871
        %v1005 = vunpack.c.h.b16 %v871
        %v1006 = vunpack.c.l.b16 %v872
        %v1007 = vunpack.c.h.b16 %v872
        %v1008 = vunpack.c.l.b16 %v873
        %v1009 = vunpack.c.h.b16 %v873
        %v1010 = vunpack.c.l.b16 %v874
        %v1011 = vunpack.c.h.b16 %v874
        %v1012 = vunpack.c.l.b16 %v875
        %v1013 = vunpack.c.h.b16 %v875
        %v1014 = vunpack.c.l.b16 %v876
        %v1015 = vunpack.c.h.b16 %v876
        %v1016 = vunpack.c.l.b16 %v877
        %v1017 = vunpack.c.h.b16 %v877
        %v1018 = vunpack.c.l.b16 %v878
        %v1019 = vunpack.c.h.b16 %v878
        %v1020 = vunpack.c.l.b16 %v879
        %v1021 = vunpack.c.h.b16 %v879
        %v1022 = vunpack.c.l.b16 %v880
        %v1023 = vunpack.c.h.b16 %v880
        %v1024 = vunpack.c.l.b16 %v881
        %v1025 = vunpack.c.h.b16 %v881
        %v1026 = vunpack.c.l.b16 %v882
        %v1027 = vunpack.c.h.b16 %v882
        %v1028 = vunpack.c.l.b16 %v883
        %v1029 = vunpack.c.h.b16 %v883
        %v1030 = vunpack.c.l.b16 %v884
        %v1031 = vunpack.c.h.b16 %v884
        %v1032 = vunpack.c.l.b16 %v885
        %v1033 = vunpack.c.h.b16 %v885
        %v1034 = vunpack.c.l.b16 %v886
        %v1035 = vunpack.c.h.b16 %v886
        %v1036 = vunpack.c.l.b16 %v887
        %v1037 = vunpack.c.h.b16 %v887
        %v1038 = vunpack.c.l.b16 %v888
        %v1039 = vunpack.c.h.b16 %v888
        %v1040 = vunpack.c.l.b16 %v889
        %v1041 = vunpack.c.h.b16 %v889
        %v1042 = vunpack.c.l.b16 %v890
        %v1043 = vunpack.c.h.b16 %v890
        %v1044 = vunpack.c.l.b16 %v891
        %v1045 = vunpack.c.h.b16 %v891
        %v1046 = vunpack.c.l.b16 %v892
        %v1047 = vunpack.c.h.b16 %v892
        %v1048 = vunpack.c.l.b16 %v893
        %v1049 = vunpack.c.h.b16 %v893
        %v1050 = vunpack.c.l.b16 %v894
        %v1051 = vunpack.c.h.b16 %v894
        %v1052 = vunpack.c.l.b16 %v895
        %v1053 = vunpack.c.h.b16 %v895
        %v1054 = vunpack.c.l.b16 %v896
        %v1055 = vunpack.c.h.b16 %v896
        %v1056 = vunpack.c.l.b16 %v897
        %v1057 = vunpack.c.h.b16 %v897
        %v1058 = vunpack.c.l.b16 %v898
        %v1059 = vunpack.c.h.b16 %v898
        %v1060 = vunpack.c.l.b16 %v899
        %v1061 = vunpack.c.h.b16 %v899
        %v1062 = vunpack.c.l.b16 %v900
        %v1063 = vunpack.c.h.b16 %v900
        %v1064 = vunpack.c.l.b16 %v901
        %v1065 = vunpack.c.h.b16 %v901
        %v1066 = vunpack.c.l.b16 %v902
        %v1067 = vunpack.c.h.b16 %v902
        %v1068 = vunpack.c.l.b16 %v903
        %v1069 = vunpack.c.h.b16 %v903
        %v1070 = vunpack.c.l.b16 %v904
        %v1071 = vunpack.c.h.b16 %v904
        %v1072 = vunpack.c.l.b16 %v905
        %v1073 = vunpack.c.h.b16 %v905
        %v1074 = vunpack.c.l.b16 %v906
        %v1075 = vunpack.c.h.b16 %v906
        %v1076 = vunpack.c.l.b16 %v907
        %v1077 = vunpack.c.h.b16 %v907
        %v1078 = vunpack.c.l.b16 %v908
        %v1079 = vunpack.c.h.b16 %v908
        %v1080 = vunpack.c.l.b16 %v909
        %v1081 = vunpack.c.h.b16 %v909
        %v1082 = vunpack.c.l.b16 %v910
        %v1083 = vunpack.c.h.b16 %v910
        %v1084 = vunpack.c.l.b16 %v911
        %v1085 = vunpack.c.h.b16 %v911
        %v1086 = vunpack.c.l.b16 %v912
        %v1087 = vunpack.c.h.b16 %v912
        %v1088 = vunpack.c.l.b16 %v913
        %v1089 = vunpack.c.h.b16 %v913
        %v1090 = vunpack.c.l.b16 %v914
        %v1091 = vunpack.c.h.b16 %v914
        %v1092 = vunpack.c.l.b16 %v915
        %v1093 = vunpack.c.h.b16 %v915
        %v1094 = vunpack.c.l.b16 %v916
        %v1095 = vunpack.c.h.b16 %v916
        %v1096 = vunpack.c.l.b16 %v917
        %v1097 = vunpack.c.h.b16 %v917
        %v1098 = vunpack.c.l.b16 %v918
        %v1099 = vunpack.c.h.b16 %v918
        %v1100 = vunpack.c.l.b16 %v919
        %v1101 = vunpack.c.h.b16 %v919
        %v1102 = vunpack.c.l.b16 %v920
        %v1103 = vunpack.c.h.b16 %v920
        %v1104 = vunpack.c.l.b16 %v921
        %v1105 = vunpack.c.h.b16 %v921
        %v1106 = vunpack.c.l.b16 %v922
        %v1107 = vunpack.c.h.b16 %v922
        %v1108 = vunpack.c.l.b16 %v923
        %v1109 = vunpack.c.h.b16 %v923
        %v1110 = vunpack.c.l.b16 %v924
        %v1111 = vunpack.c.h.b16 %v924
        %v1112 = vunpack.c.l.b16 %v925
        %v1113 = vunpack.c.h.b16 %v925
        %v1114 = vunpack.c.l.b16 %v926
        %v1115 = vunpack.c.h.b16 %v926
        %v1116 = vunpack.c.l.b16 %v927
        %v1117 = vunpack.c.h.b16 %v927
        %v1118 = vunpack.c.l.b16 %v928
        %v1119 = vunpack.c.h.b16 %v928
        %v1120 = vunpack.c.l.b16 %v929
        %v1121 = vunpack.c.h.b16 %v929
        %v1122 = vpack.c.b16 %v1002, %v994
        %v1123 = vpack.c.b16 %v1003, %v995
        %v1124 = vpack.c.b16 %v1004, %v996
        %v1125 = vpack.c.b16 %v1005, %v997
        %v1126 = vpack.c.b16 %v1006, %v998
        %v1127 = vpack.c.b16 %v1007, %v999
        %v1128 = vpack.c.b16 %v1008, %v1000
        %v1129 = vpack.c.b16 %v1009, %v1001
        %v1130 = vpack.c.b16 %v1018, %v1010
        %v1131 = vpack.c.b16 %v1019, %v1011
        %v1132 = vpack.c.b16 %v1020, %v1012
        %v1133 = vpack.c.b16 %v1021, %v1013
        %v1134 = vpack.c.b16 %v1022, %v1014
        %v1135 = vpack.c.b16 %v1023, %v1015
        %v1136 = vpack.c.b16 %v1024, %v1016
        %v1137 = vpack.c.b16 %v1025, %v1017
        %v1138 = vpack.c.b16 %v1034, %v1026
        %v1139 = vpack.c.b16 %v1035, %v1027
        %v1140 = vpack.c.b16 %v1036, %v1028
        %v1141 = vpack.c.b16 %v1037, %v1029
        %v1142 = vpack.c.b16 %v1038, %v1030
        %v1143 = vpack.c.b16 %v1039, %v1031
        %v1144 = vpack.c.b16 %v1040, %v1032
        %v1145 = vpack.c.b16 %v1041, %v1033
        %v1146 = vpack.c.b16 %v1050, %v1042
        %v1147 = vpack.c.b16 %v1051, %v1043
        %v1148 = vpack.c.b16 %v1052, %v1044
        %v1149 = vpack.c.b16 %v1053, %v1045
        %v1150 = vpack.c.b16 %v1054, %v1046
        %v1151 = vpack.c.b16 %v1055, %v1047
        %v1152 = vpack.c.b16 %v1056, %v1048
        %v1153 = vpack.c.b16 %v1057, %v1049
        %v1154 = vpack.c.b16 %v1066, %v1058
        %v1155 = vpack.c.b16 %v1067, %v1059
        %v1156 = vpack.c.b16 %v1068, %v1060
        %v1157 = vpack.c.b16 %v1069, %v1061
        %v1158 = vpack.c.b16 %v1070, %v1062
        %v1159 = vpack.c.b16 %v1071, %v1063
        %v1160 = vpack.c.b16 %v1072, %v1064
        %v1161 = vpack.c.b16 %v1073, %v1065
        %v1162 = vpack.c.b16 %v1082, %v1074
        %v1163 = vpack.c.b16 %v1083, %v1075
        %v1164 = vpack.c.b16 %v1084, %v1076
        %v1165 = vpack.c.b16 %v1085, %v1077
        %v1166 = vpack.c.b16 %v1086, %v1078
        %v1167 = vpack.c.b16 %v1087, %v1079
        %v1168 = vpack.c.b16 %v1088, %v1080
        %v1169 = vpack.c.b16 %v1089, %v1081
        %v1170 = vpack.c.b16 %v1098, %v1090
        %v1171 = vpack.c.b16 %v1099, %v1091
        %v1172 = vpack.c.b16 %v1100, %v1092
        %v1173 = vpack.c.b16 %v1101, %v1093
        %v1174 = vpack.c.b16 %v1102, %v1094
        %v1175 = vpack.c.b16 %v1103, %v1095
        %v1176 = vpack.c.b16 %v1104, %v1096
        %v1177 = vpack.c.b16 %v1105, %v1097
        %v1178 = vpack.c.b16 %v1114, %v1106
        %v1179 = vpack.c.b16 %v1115, %v1107
        %v1180 = vpack.c.b16 %v1116, %v1108
        %v1181 = vpack.c.b16 %v1117, %v1109
        %v1182 = vpack.c.b16 %v1118, %v1110
        %v1183 = vpack.c.b16 %v1119, %v1111
        %v1184 = vpack.c.b16 %v1120, %v1112
        %v1185 = vpack.c.b16 %v1121, %v1113
        %1250 = vmatprep.subr.bf16.mxu0 %v1123
        %1251 = vmatpush1.bf16.msra.mxu0 %v1122
        %1252 = vmatprep.subr.bf16.mxu0 %v1131
        %1253 = vmatpush1.bf16.msra.mxu0 %v1130
        %1254 = vmatprep.subr.bf16.mxu0 %v1139
        %1255 = vmatpush1.bf16.msra.mxu0 %v1138
        %1256 = vmatprep.subr.bf16.mxu0 %v1147
        %1257 = vmatpush1.bf16.msra.mxu0 %v1146
        %1258 = vmatprep.subr.bf16.mxu0 %v1155
        %1259 = vmatpush1.bf16.msra.mxu0 %v1154
        %1260 = vmatprep.subr.bf16.mxu0 %v1163
        %1261 = vmatpush1.bf16.msra.mxu0 %v1162
        %1262 = vmatprep.subr.bf16.mxu0 %v1171
        %1263 = vmatpush1.bf16.msra.mxu0 %v1170
        %1264 = vmatprep.subr.bf16.mxu0 %v1179
        %1265 = vmatpush1.bf16.msra.mxu0 %v1178
        %1266 = vmatprep.subr.bf16.mxu0 0
        %1267 = vmatpush1.bf16.msra.mxu0 0
        %1268 = vmatprep.subr.bf16.mxu0 0
        %1269 = vmatpush1.bf16.msra.mxu0 0
        %1270 = vmatprep.subr.bf16.mxu0 0
        %1271 = vmatpush1.bf16.msra.mxu0 0
        %1272 = vmatprep.subr.bf16.mxu0 0
        %1273 = vmatpush1.bf16.msra.mxu0 0
        %1274 = vmatprep.subr.bf16.mxu0 0
        %1275 = vmatpush1.bf16.msra.mxu0 0
        %1276 = vmatprep.subr.bf16.mxu0 0
        %1277 = vmatpush1.bf16.msra.mxu0 0
        %1278 = vmatprep.subr.bf16.mxu0 0
        %1279 = vmatpush1.bf16.msra.mxu0 0
        %1280 = vmatprep.subr.bf16.mxu0 0
        %1281 = vmatpush1.bf16.msra.mxu0 0
        %1282 = vmatprep.mubr.bf16.mxu0 0
        %1283 = vmatmul.mubr.bf16.gmra.mrb[0].mxu0 %v858
        %v1284 = vpop.f32.mrb[0].mxu0
        %v1285 = vadd.f32 0.0, %v1284
        %v1286 = vpop.f32.mrb[0].mxu0
        %v1287 = vadd.f32 0.0, %v1286
        %v1288 = vpop.f32.mrb[0].mxu0
        %v1289 = vadd.f32 0.0, %v1288
        %v1290 = vpop.f32.mrb[0].mxu0
        %v1291 = vadd.f32 0.0, %v1290
        %1292 = vmatprep.mubr.bf16.mxu0 0
        %1293 = vmatmul.mubr.bf16.gmra.mrb[0].mxu0 %v859
        %v1294 = vpop.f32.mrb[0].mxu0
        %v1295 = vadd.f32 0.0, %v1294
        %v1296 = vpop.f32.mrb[0].mxu0
        %v1297 = vadd.f32 0.0, %v1296
        %v1298 = vpop.f32.mrb[0].mxu0
        %v1299 = vadd.f32 0.0, %v1298
        %v1300 = vpop.f32.mrb[0].mxu0
        %v1301 = vadd.f32 0.0, %v1300
        %1302 = vmatprep.mubr.bf16.mxu0 0
        %1303 = vmatmul.mubr.bf16.gmra.mrb[0].mxu0 %v860
        %v1304 = vpop.f32.mrb[0].mxu0
        %v1305 = vadd.f32 0.0, %v1304
        %v1306 = vpop.f32.mrb[0].mxu0
        %v1307 = vadd.f32 0.0, %v1306
        %v1308 = vpop.f32.mrb[0].mxu0
        %v1309 = vadd.f32 0.0, %v1308
        %v1310 = vpop.f32.mrb[0].mxu0
        %v1311 = vadd.f32 0.0, %v1310
        %1312 = vmatprep.mubr.bf16.mxu0 0
        %1313 = vmatmul.mubr.bf16.gmra.mrb[0].mxu0 %v861
        %v1314 = vpop.f32.mrb[0].mxu0
        %v1315 = vadd.f32 0.0, %v1314
        %v1316 = vpop.f32.mrb[0].mxu0
        %v1317 = vadd.f32 0.0, %v1316
        %v1318 = vpop.f32.mrb[0].mxu0
        %v1319 = vadd.f32 0.0, %v1318
        %v1320 = vpop.f32.mrb[0].mxu0
        %v1321 = vadd.f32 0.0, %v1320
        %1322 = vmatprep.mubr.bf16.mxu0 0
        %1323 = vmatmul.mubr.bf16.gmra.mrb[0].mxu0 %v862
        %v1324 = vpop.f32.mrb[0].mxu0
        %v1325 = vadd.f32 0.0, %v1324
        %v1326 = vpop.f32.mrb[0].mxu0
        %v1327 = vadd.f32 0.0, %v1326
        %v1328 = vpop.f32.mrb[0].mxu0
        %v1329 = vadd.f32 0.0, %v1328
        %v1330 = vpop.f32.mrb[0].mxu0
        %v1331 = vadd.f32 0.0, %v1330
        %1332 = vmatprep.mubr.bf16.mxu0 0
        %1333 = vmatmul.mubr.bf16.gmra.mrb[0].mxu0 %v863
        %v1334 = vpop.f32.mrb[0].mxu0
        %v1335 = vadd.f32 0.0, %v1334
        %v1336 = vpop.f32.mrb[0].mxu0
        %v1337 = vadd.f32 0.0, %v1336
        %v1338 = vpop.f32.mrb[0].mxu0
        %v1339 = vadd.f32 0.0, %v1338
        %v1340 = vpop.f32.mrb[0].mxu0
        %v1341 = vadd.f32 0.0, %v1340
        %1342 = vmatprep.mubr.bf16.mxu0 0
        %1343 = vmatmul.mubr.bf16.gmra.mrb[0].mxu0 %v864
        %v1344 = vpop.f32.mrb[0].mxu0
        %v1345 = vadd.f32 0.0, %v1344
        %v1346 = vpop.f32.mrb[0].mxu0
        %v1347 = vadd.f32 0.0, %v1346
        %v1348 = vpop.f32.mrb[0].mxu0
        %v1349 = vadd.f32 0.0, %v1348
        %v1350 = vpop.f32.mrb[0].mxu0
        %v1351 = vadd.f32 0.0, %v1350
        %1352 = vmatprep.mubr.bf16.mxu0 0
        %1353 = vmatmul.mubr.bf16.gmra.mrb[0].mxu0 %v865
        %v1354 = vpop.f32.mrb[0].mxu0
        %v1355 = vadd.f32 0.0, %v1354
        %v1356 = vpop.f32.mrb[0].mxu0
        %v1357 = vadd.f32 0.0, %v1356
        %v1358 = vpop.f32.mrb[0].mxu0
        %v1359 = vadd.f32 0.0, %v1358
        %v1360 = vpop.f32.mrb[0].mxu0
        %v1361 = vadd.f32 0.0, %v1360
        %1362 = vdwg.mxu0
        %1363 = vmatprep.subr.bf16.mxu0 %v1125
        %1364 = vmatpush1.bf16.msra.mxu0 %v1124
        %1365 = vmatprep.subr.bf16.mxu0 %v1133
        %1366 = vmatpush1.bf16.msra.mxu0 %v1132
        %1367 = vmatprep.subr.bf16.mxu0 %v1141
        %1368 = vmatpush1.bf16.msra.mxu0 %v1140
        %1369 = vmatprep.subr.bf16.mxu0 %v1149
        %1370 = vmatpush1.bf16.msra.mxu0 %v1148
        %1371 = vmatprep.subr.bf16.mxu0 %v1157
        %1372 = vmatpush1.bf16.msra.mxu0 %v1156
        %1373 = vmatprep.subr.bf16.mxu0 %v1165
        %1374 = vmatpush1.bf16.msra.mxu0 %v1164
        %1375 = vmatprep.subr.bf16.mxu0 %v1173
        %1376 = vmatpush1.bf16.msra.mxu0 %v1172
        %1377 = vmatprep.subr.bf16.mxu0 %v1181
        %1378 = vmatpush1.bf16.msra.mxu0 %v1180
        %1379 = vmatprep.subr.bf16.mxu0 0
        %1380 = vmatpush1.bf16.msra.mxu0 0
        %1381 = vmatprep.subr.bf16.mxu0 0
        %1382 = vmatpush1.bf16.msra.mxu0 0
        %1383 = vmatprep.subr.bf16.mxu0 0
        %1384 = vmatpush1.bf16.msra.mxu0 0
        %1385 = vmatprep.subr.bf16.mxu0 0
        %1386 = vmatpush1.bf16.msra.mxu0 0
        %1387 = vmatprep.subr.bf16.mxu0 0
        %1388 = vmatpush1.bf16.msra.mxu0 0
        %1389 = vmatprep.subr.bf16.mxu0 0
        %1390 = vmatpush1.bf16.msra.mxu0 0
        %1391 = vmatprep.subr.bf16.mxu0 0
        %1392 = vmatpush1.bf16.msra.mxu0 0
        %1393 = vmatprep.subr.bf16.mxu0 0
        %1394 = vmatpush1.bf16.msra.mxu0 0
        %1395 = vmatprep.mubr.bf16.mxu0 0
        %1396 = vmatmul.mubr.bf16.gmra.mrb[0].mxu0 %v858
        %v1397 = vpop.f32.mrb[0].mxu0
        %v1398 = vadd.f32 0.0, %v1397
        %v1399 = vpop.f32.mrb[0].mxu0
        %v1400 = vadd.f32 0.0, %v1399
        %v1401 = vpop.f32.mrb[0].mxu0
        %v1402 = vadd.f32 0.0, %v1401
        %v1403 = vpop.f32.mrb[0].mxu0
        %v1404 = vadd.f32 0.0, %v1403
        %1405 = vmatprep.mubr.bf16.mxu0 0
        %1406 = vmatmul.mubr.bf16.gmra.mrb[0].mxu0 %v859
        %v1407 = vpop.f32.mrb[0].mxu0
        %v1408 = vadd.f32 0.0, %v1407
        %v1409 = vpop.f32.mrb[0].mxu0
        %v1410 = vadd.f32 0.0, %v1409
        %v1411 = vpop.f32.mrb[0].mxu0
        %v1412 = vadd.f32 0.0, %v1411
        %v1413 = vpop.f32.mrb[0].mxu0
        %v1414 = vadd.f32 0.0, %v1413
        %1415 = vmatprep.mubr.bf16.mxu0 0
        %1416 = vmatmul.mubr.bf16.gmra.mrb[0].mxu0 %v860
        %v1417 = vpop.f32.mrb[0].mxu0
        %v1418 = vadd.f32 0.0, %v1417
        %v1419 = vpop.f32.mrb[0].mxu0
        %v1420 = vadd.f32 0.0, %v1419
        %v1421 = vpop.f32.mrb[0].mxu0
        %v1422 = vadd.f32 0.0, %v1421
        %v1423 = vpop.f32.mrb[0].mxu0
        %v1424 = vadd.f32 0.0, %v1423
        %1425 = vmatprep.mubr.bf16.mxu0 0
        %1426 = vmatmul.mubr.bf16.gmra.mrb[0].mxu0 %v861
        %v1427 = vpop.f32.mrb[0].mxu0
        %v1428 = vadd.f32 0.0, %v1427
        %v1429 = vpop.f32.mrb[0].mxu0
        %v1430 = vadd.f32 0.0, %v1429
        %v1431 = vpop.f32.mrb[0].mxu0
        %v1432 = vadd.f32 0.0, %v1431
        %v1433 = vpop.f32.mrb[0].mxu0
        %v1434 = vadd.f32 0.0, %v1433
        %1435 = vmatprep.mubr.bf16.mxu0 0
        %1436 = vmatmul.mubr.bf16.gmra.mrb[0].mxu0 %v862
        %v1437 = vpop.f32.mrb[0].mxu0
        %v1438 = vadd.f32 0.0, %v1437
        %v1439 = vpop.f32.mrb[0].mxu0
        %v1440 = vadd.f32 0.0, %v1439
        %v1441 = vpop.f32.mrb[0].mxu0
        %v1442 = vadd.f32 0.0, %v1441
        %v1443 = vpop.f32.mrb[0].mxu0
        %v1444 = vadd.f32 0.0, %v1443
        %1445 = vmatprep.mubr.bf16.mxu0 0
        %1446 = vmatmul.mubr.bf16.gmra.mrb[0].mxu0 %v863
        %v1447 = vpop.f32.mrb[0].mxu0
        %v1448 = vadd.f32 0.0, %v1447
        %v1449 = vpop.f32.mrb[0].mxu0
        %v1450 = vadd.f32 0.0, %v1449
        %v1451 = vpop.f32.mrb[0].mxu0
        %v1452 = vadd.f32 0.0, %v1451
        %v1453 = vpop.f32.mrb[0].mxu0
        %v1454 = vadd.f32 0.0, %v1453
        %1455 = vmatprep.mubr.bf16.mxu0 0
        %1456 = vmatmul.mubr.bf16.gmra.mrb[0].mxu0 %v864
        %v1457 = vpop.f32.mrb[0].mxu0
        %v1458 = vadd.f32 0.0, %v1457
        %v1459 = vpop.f32.mrb[0].mxu0
        %v1460 = vadd.f32 0.0, %v1459
        %v1461 = vpop.f32.mrb[0].mxu0
        %v1462 = vadd.f32 0.0, %v1461
        %v1463 = vpop.f32.mrb[0].mxu0
        %v1464 = vadd.f32 0.0, %v1463
        %1465 = vmatprep.mubr.bf16.mxu0 0
        %1466 = vmatmul.mubr.bf16.gmra.mrb[0].mxu0 %v865
        %v1467 = vpop.f32.mrb[0].mxu0
        %v1468 = vadd.f32 0.0, %v1467
        %v1469 = vpop.f32.mrb[0].mxu0
        %v1470 = vadd.f32 0.0, %v1469
        %v1471 = vpop.f32.mrb[0].mxu0
        %v1472 = vadd.f32 0.0, %v1471
        %v1473 = vpop.f32.mrb[0].mxu0
        %v1474 = vadd.f32 0.0, %v1473
        %1475 = vdwg.mxu0
        %1476 = vmatprep.subr.bf16.mxu0 %v1127
        %1477 = vmatpush1.bf16.msra.mxu0 %v1126
        %1478 = vmatprep.subr.bf16.mxu0 %v1135
        %1479 = vmatpush1.bf16.msra.mxu0 %v1134
        %1480 = vmatprep.subr.bf16.mxu0 %v1143
        %1481 = vmatpush1.bf16.msra.mxu0 %v1142
        %1482 = vmatprep.subr.bf16.mxu0 %v1151
        %1483 = vmatpush1.bf16.msra.mxu0 %v1150
        %1484 = vmatprep.subr.bf16.mxu0 %v1159
        %1485 = vmatpush1.bf16.msra.mxu0 %v1158
        %1486 = vmatprep.subr.bf16.mxu0 %v1167
        %1487 = vmatpush1.bf16.msra.mxu0 %v1166
        %1488 = vmatprep.subr.bf16.mxu0 %v1175
        %1489 = vmatpush1.bf16.msra.mxu0 %v1174
        %1490 = vmatprep.subr.bf16.mxu0 %v1183
        %1491 = vmatpush1.bf16.msra.mxu0 %v1182
        %1492 = vmatprep.subr.bf16.mxu0 0
        %1493 = vmatpush1.bf16.msra.mxu0 0
        %1494 = vmatprep.subr.bf16.mxu0 0
        %1495 = vmatpush1.bf16.msra.mxu0 0
        %1496 = vmatprep.subr.bf16.mxu0 0
        %1497 = vmatpush1.bf16.msra.mxu0 0
        %1498 = vmatprep.subr.bf16.mxu0 0
        %1499 = vmatpush1.bf16.msra.mxu0 0
        %1500 = vmatprep.subr.bf16.mxu0 0
        %1501 = vmatpush1.bf16.msra.mxu0 0
        %1502 = vmatprep.subr.bf16.mxu0 0
        %1503 = vmatpush1.bf16.msra.mxu0 0
        %1504 = vmatprep.subr.bf16.mxu0 0
        %1505 = vmatpush1.bf16.msra.mxu0 0
        %1506 = vmatprep.subr.bf16.mxu0 0
        %1507 = vmatpush1.bf16.msra.mxu0 0
        %1508 = vmatprep.mubr.bf16.mxu0 0
        %1509 = vmatmul.mubr.bf16.gmra.mrb[0].mxu0 %v858
        %v1510 = vpop.f32.mrb[0].mxu0
        %v1511 = vadd.f32 0.0, %v1510
        %v1512 = vpop.f32.mrb[0].mxu0
        %v1513 = vadd.f32 0.0, %v1512
        %v1514 = vpop.f32.mrb[0].mxu0
        %v1515 = vadd.f32 0.0, %v1514
        %v1516 = vpop.f32.mrb[0].mxu0
        %v1517 = vadd.f32 0.0, %v1516
        %1518 = vmatprep.mubr.bf16.mxu0 0
        %1519 = vmatmul.mubr.bf16.gmra.mrb[0].mxu0 %v859
        %v1520 = vpop.f32.mrb[0].mxu0
        %v1521 = vadd.f32 0.0, %v1520
        %v1522 = vpop.f32.mrb[0].mxu0
        %v1523 = vadd.f32 0.0, %v1522
        %v1524 = vpop.f32.mrb[0].mxu0
        %v1525 = vadd.f32 0.0, %v1524
        %v1526 = vpop.f32.mrb[0].mxu0
        %v1527 = vadd.f32 0.0, %v1526
        %1528 = vmatprep.mubr.bf16.mxu0 0
        %1529 = vmatmul.mubr.bf16.gmra.mrb[0].mxu0 %v860
        %v1530 = vpop.f32.mrb[0].mxu0
        %v1531 = vadd.f32 0.0, %v1530
        %v1532 = vpop.f32.mrb[0].mxu0
        %v1533 = vadd.f32 0.0, %v1532
        %v1534 = vpop.f32.mrb[0].mxu0
        %v1535 = vadd.f32 0.0, %v1534
        %v1536 = vpop.f32.mrb[0].mxu0
        %v1537 = vadd.f32 0.0, %v1536
        %1538 = vmatprep.mubr.bf16.mxu0 0
        %1539 = vmatmul.mubr.bf16.gmra.mrb[0].mxu0 %v861
        %v1540 = vpop.f32.mrb[0].mxu0
        %v1541 = vadd.f32 0.0, %v1540
        %v1542 = vpop.f32.mrb[0].mxu0
        %v1543 = vadd.f32 0.0, %v1542
        %v1544 = vpop.f32.mrb[0].mxu0
        %v1545 = vadd.f32 0.0, %v1544
        %v1546 = vpop.f32.mrb[0].mxu0
        %v1547 = vadd.f32 0.0, %v1546
        %1548 = vmatprep.mubr.bf16.mxu0 0
        %1549 = vmatmul.mubr.bf16.gmra.mrb[0].mxu0 %v862
        %v1550 = vpop.f32.mrb[0].mxu0
        %v1551 = vadd.f32 0.0, %v1550
        %v1552 = vpop.f32.mrb[0].mxu0
        %v1553 = vadd.f32 0.0, %v1552
        %v1554 = vpop.f32.mrb[0].mxu0
        %v1555 = vadd.f32 0.0, %v1554
        %v1556 = vpop.f32.mrb[0].mxu0
        %v1557 = vadd.f32 0.0, %v1556
        %1558 = vmatprep.mubr.bf16.mxu0 0
        %1559 = vmatmul.mubr.bf16.gmra.mrb[0].mxu0 %v863
        %v1560 = vpop.f32.mrb[0].mxu0
        %v1561 = vadd.f32 0.0, %v1560
        %v1562 = vpop.f32.mrb[0].mxu0
        %v1563 = vadd.f32 0.0, %v1562
        %v1564 = vpop.f32.mrb[0].mxu0
        %v1565 = vadd.f32 0.0, %v1564
        %v1566 = vpop.f32.mrb[0].mxu0
        %v1567 = vadd.f32 0.0, %v1566
        %1568 = vmatprep.mubr.bf16.mxu0 0
        %1569 = vmatmul.mubr.bf16.gmra.mrb[0].mxu0 %v864
        %v1570 = vpop.f32.mrb[0].mxu0
        %v1571 = vadd.f32 0.0, %v1570
        %v1572 = vpop.f32.mrb[0].mxu0
        %v1573 = vadd.f32 0.0, %v1572
        %v1574 = vpop.f32.mrb[0].mxu0
        %v1575 = vadd.f32 0.0, %v1574
        %v1576 = vpop.f32.mrb[0].mxu0
        %v1577 = vadd.f32 0.0, %v1576
        %1578 = vmatprep.mubr.bf16.mxu0 0
        %1579 = vmatmul.mubr.bf16.gmra.mrb[0].mxu0 %v865
        %v1580 = vpop.f32.mrb[0].mxu0
        %v1581 = vadd.f32 0.0, %v1580
        %v1582 = vpop.f32.mrb[0].mxu0
        %v1583 = vadd.f32 0.0, %v1582
        %v1584 = vpop.f32.mrb[0].mxu0
        %v1585 = vadd.f32 0.0, %v1584
        %v1586 = vpop.f32.mrb[0].mxu0
        %v1587 = vadd.f32 0.0, %v1586
        %1588 = vdwg.mxu0
        %1589 = vmatprep.subr.bf16.mxu0 %v1129
        %1590 = vmatpush1.bf16.msra.mxu0 %v1128
        %1591 = vmatprep.subr.bf16.mxu0 %v1137
        %1592 = vmatpush1.bf16.msra.mxu0 %v1136
        %1593 = vmatprep.subr.bf16.mxu0 %v1145
        %1594 = vmatpush1.bf16.msra.mxu0 %v1144
        %1595 = vmatprep.subr.bf16.mxu0 %v1153
        %1596 = vmatpush1.bf16.msra.mxu0 %v1152
        %1597 = vmatprep.subr.bf16.mxu0 %v1161
        %1598 = vmatpush1.bf16.msra.mxu0 %v1160
        %1599 = vmatprep.subr.bf16.mxu0 %v1169
        %1600 = vmatpush1.bf16.msra.mxu0 %v1168
        %1601 = vmatprep.subr.bf16.mxu0 %v1177
        %1602 = vmatpush1.bf16.msra.mxu0 %v1176
        %1603 = vmatprep.subr.bf16.mxu0 %v1185
        %1604 = vmatpush1.bf16.msra.mxu0 %v1184
        %1605 = vmatprep.subr.bf16.mxu0 0
        %1606 = vmatpush1.bf16.msra.mxu0 0
        %1607 = vmatprep.subr.bf16.mxu0 0
        %1608 = vmatpush1.bf16.msra.mxu0 0
        %1609 = vmatprep.subr.bf16.mxu0 0
        %1610 = vmatpush1.bf16.msra.mxu0 0
        %1611 = vmatprep.subr.bf16.mxu0 0
        %1612 = vmatpush1.bf16.msra.mxu0 0
        %1613 = vmatprep.subr.bf16.mxu0 0
        %1614 = vmatpush1.bf16.msra.mxu0 0
        %1615 = vmatprep.subr.bf16.mxu0 0
        %1616 = vmatpush1.bf16.msra.mxu0 0
        %1617 = vmatprep.subr.bf16.mxu0 0
        %1618 = vmatpush1.bf16.msra.mxu0 0
        %1619 = vmatprep.subr.bf16.mxu0 0
        %1620 = vmatpush1.bf16.msra.mxu0 0
        %1621 = vmatprep.mubr.bf16.mxu0 0
        %1622 = vmatmul.mubr.bf16.gmra.mrb[0].mxu0 %v858
        %v1623 = vpop.f32.mrb[0].mxu0
        %v1624 = vadd.f32 0.0, %v1623
        %v1625 = vpop.f32.mrb[0].mxu0
        %v1626 = vadd.f32 0.0, %v1625
        %v1627 = vpop.f32.mrb[0].mxu0
        %v1628 = vadd.f32 0.0, %v1627
        %v1629 = vpop.f32.mrb[0].mxu0
        %v1630 = vadd.f32 0.0, %v1629
        %1631 = vmatprep.mubr.bf16.mxu0 0
        %1632 = vmatmul.mubr.bf16.gmra.mrb[0].mxu0 %v859
        %v1633 = vpop.f32.mrb[0].mxu0
        %v1634 = vadd.f32 0.0, %v1633
        %v1635 = vpop.f32.mrb[0].mxu0
        %v1636 = vadd.f32 0.0, %v1635
        %v1637 = vpop.f32.mrb[0].mxu0
        %v1638 = vadd.f32 0.0, %v1637
        %v1639 = vpop.f32.mrb[0].mxu0
        %v1640 = vadd.f32 0.0, %v1639
        %1641 = vmatprep.mubr.bf16.mxu0 0
        %1642 = vmatmul.mubr.bf16.gmra.mrb[0].mxu0 %v860
        %v1643 = vpop.f32.mrb[0].mxu0
        %v1644 = vadd.f32 0.0, %v1643
        %v1645 = vpop.f32.mrb[0].mxu0
        %v1646 = vadd.f32 0.0, %v1645
        %v1647 = vpop.f32.mrb[0].mxu0
        %v1648 = vadd.f32 0.0, %v1647
        %v1649 = vpop.f32.mrb[0].mxu0
        %v1650 = vadd.f32 0.0, %v1649
        %1651 = vmatprep.mubr.bf16.mxu0 0
        %1652 = vmatmul.mubr.bf16.gmra.mrb[0].mxu0 %v861
        %v1653 = vpop.f32.mrb[0].mxu0
        %v1654 = vadd.f32 0.0, %v1653
        %v1655 = vpop.f32.mrb[0].mxu0
        %v1656 = vadd.f32 0.0, %v1655
        %v1657 = vpop.f32.mrb[0].mxu0
        %v1658 = vadd.f32 0.0, %v1657
        %v1659 = vpop.f32.mrb[0].mxu0
        %v1660 = vadd.f32 0.0, %v1659
        %1661 = vmatprep.mubr.bf16.mxu0 0
        %1662 = vmatmul.mubr.bf16.gmra.mrb[0].mxu0 %v862
        %v1663 = vpop.f32.mrb[0].mxu0
        %v1664 = vadd.f32 0.0, %v1663
        %v1665 = vpop.f32.mrb[0].mxu0
        %v1666 = vadd.f32 0.0, %v1665
        %v1667 = vpop.f32.mrb[0].mxu0
        %v1668 = vadd.f32 0.0, %v1667
        %v1669 = vpop.f32.mrb[0].mxu0
        %v1670 = vadd.f32 0.0, %v1669
        %1671 = vmatprep.mubr.bf16.mxu0 0
        %1672 = vmatmul.mubr.bf16.gmra.mrb[0].mxu0 %v863
        %v1673 = vpop.f32.mrb[0].mxu0
        %v1674 = vadd.f32 0.0, %v1673
        %v1675 = vpop.f32.mrb[0].mxu0
        %v1676 = vadd.f32 0.0, %v1675
        %v1677 = vpop.f32.mrb[0].mxu0
        %v1678 = vadd.f32 0.0, %v1677
        %v1679 = vpop.f32.mrb[0].mxu0
        %v1680 = vadd.f32 0.0, %v1679
        %1681 = vmatprep.mubr.bf16.mxu0 0
        %1682 = vmatmul.mubr.bf16.gmra.mrb[0].mxu0 %v864
        %v1683 = vpop.f32.mrb[0].mxu0
        %v1684 = vadd.f32 0.0, %v1683
        %v1685 = vpop.f32.mrb[0].mxu0
        %v1686 = vadd.f32 0.0, %v1685
        %v1687 = vpop.f32.mrb[0].mxu0
        %v1688 = vadd.f32 0.0, %v1687
        %v1689 = vpop.f32.mrb[0].mxu0
        %v1690 = vadd.f32 0.0, %v1689
        %1691 = vmatprep.mubr.bf16.mxu0 0
        %1692 = vmatmul.mubr.bf16.gmra.mrb[0].mxu0 %v865
        %v1693 = vpop.f32.mrb[0].mxu0
        %v1694 = vadd.f32 0.0, %v1693
        %v1695 = vpop.f32.mrb[0].mxu0
        %v1696 = vadd.f32 0.0, %v1695
        %v1697 = vpop.f32.mrb[0].mxu0
        %v1698 = vadd.f32 0.0, %v1697
        %v1699 = vpop.f32.mrb[0].mxu0
        %v1700 = vadd.f32 0.0, %v1699
        %1701 = vdwg.mxu0
        %v1702 = vld [vmem:[#allocation2] sm:$0xff]
        %v1704 = vlaneseq
        %v1705 = vshrl.u32 %v1704, 7
        %v1706 = vsub.s32 0, %v1705
        %v1707 = vrot.slane %v1702, %v1706
        %v1708 = vlaneseq
        %v1709 = vshrl.u32 %v1708, 7
        %v1710 = vsub.s32 1, %v1709
        %v1711 = vrot.slane %v1702, %v1710
        %v1712 = vlaneseq
        %v1713 = vshrl.u32 %v1712, 7
        %v1714 = vsub.s32 2, %v1713
        %v1715 = vrot.slane %v1702, %v1714
        %v1716 = vlaneseq
        %v1717 = vshrl.u32 %v1716, 7
        %v1718 = vsub.s32 3, %v1717
        %v1719 = vrot.slane %v1702, %v1718
        %v1720 = vlaneseq
        %v1721 = vshrl.u32 %v1720, 7
        %v1722 = vsub.s32 4, %v1721
        %v1723 = vrot.slane %v1702, %v1722
        %v1724 = vlaneseq
        %v1725 = vshrl.u32 %v1724, 7
        %v1726 = vsub.s32 5, %v1725
        %v1727 = vrot.slane %v1702, %v1726
        %v1728 = vlaneseq
        %v1729 = vshrl.u32 %v1728, 7
        %v1730 = vsub.s32 6, %v1729
        %v1731 = vrot.slane %v1702, %v1730
        %v1732 = vlaneseq
        %v1733 = vshrl.u32 %v1732, 7
        %v1734 = vsub.s32 7, %v1733
        %v1735 = vrot.slane %v1702, %v1734
        %v1744 = vmul.f32 %v1285, %v1707
        %v1745 = vmul.f32 %v1287, %v1711
        %v1746 = vmul.f32 %v1398, %v1715
        %v1747 = vmul.f32 %v1400, %v1719
        %v1748 = vmul.f32 %v1511, %v1723
        %v1749 = vmul.f32 %v1513, %v1727
        %v1750 = vmul.f32 %v1624, %v1731
        %v1751 = vmul.f32 %v1626, %v1735
        %v1752 = vmul.f32 %v1289, %v1707
        %v1753 = vmul.f32 %v1291, %v1711
        %v1754 = vmul.f32 %v1402, %v1715
        %v1755 = vmul.f32 %v1404, %v1719
        %v1756 = vmul.f32 %v1515, %v1723
        %v1757 = vmul.f32 %v1517, %v1727
        %v1758 = vmul.f32 %v1628, %v1731
        %v1759 = vmul.f32 %v1630, %v1735
        %v1760 = vmul.f32 %v1295, %v1707
        %v1761 = vmul.f32 %v1297, %v1711
        %v1762 = vmul.f32 %v1408, %v1715
        %v1763 = vmul.f32 %v1410, %v1719
        %v1764 = vmul.f32 %v1521, %v1723
        %v1765 = vmul.f32 %v1523, %v1727
        %v1766 = vmul.f32 %v1634, %v1731
        %v1767 = vmul.f32 %v1636, %v1735
        %v1768 = vmul.f32 %v1299, %v1707
        %v1769 = vmul.f32 %v1301, %v1711
        %v1770 = vmul.f32 %v1412, %v1715
        %v1771 = vmul.f32 %v1414, %v1719
        %v1772 = vmul.f32 %v1525, %v1723
        %v1773 = vmul.f32 %v1527, %v1727
        %v1774 = vmul.f32 %v1638, %v1731
        %v1775 = vmul.f32 %v1640, %v1735
        %v1776 = vmul.f32 %v1305, %v1707
        %v1777 = vmul.f32 %v1307, %v1711
        %v1778 = vmul.f32 %v1418, %v1715
        %v1779 = vmul.f32 %v1420, %v1719
        %v1780 = vmul.f32 %v1531, %v1723
        %v1781 = vmul.f32 %v1533, %v1727
        %v1782 = vmul.f32 %v1644, %v1731
        %v1783 = vmul.f32 %v1646, %v1735
        %v1784 = vmul.f32 %v1309, %v1707
        %v1785 = vmul.f32 %v1311, %v1711
        %v1786 = vmul.f32 %v1422, %v1715
        %v1787 = vmul.f32 %v1424, %v1719
        %v1788 = vmul.f32 %v1535, %v1723
        %v1789 = vmul.f32 %v1537, %v1727
        %v1790 = vmul.f32 %v1648, %v1731
        %v1791 = vmul.f32 %v1650, %v1735
        %v1792 = vmul.f32 %v1315, %v1707
        %v1793 = vmul.f32 %v1317, %v1711
        %v1794 = vmul.f32 %v1428, %v1715
        %v1795 = vmul.f32 %v1430, %v1719
        %v1796 = vmul.f32 %v1541, %v1723
        %v1797 = vmul.f32 %v1543, %v1727
        %v1798 = vmul.f32 %v1654, %v1731
        %v1799 = vmul.f32 %v1656, %v1735
        %v1800 = vmul.f32 %v1319, %v1707
        %v1801 = vmul.f32 %v1321, %v1711
        %v1802 = vmul.f32 %v1432, %v1715
        %v1803 = vmul.f32 %v1434, %v1719
        %v1804 = vmul.f32 %v1545, %v1723
        %v1805 = vmul.f32 %v1547, %v1727
        %v1806 = vmul.f32 %v1658, %v1731
        %v1807 = vmul.f32 %v1660, %v1735
        %v1808 = vmul.f32 %v1325, %v1707
        %v1809 = vmul.f32 %v1327, %v1711
        %v1810 = vmul.f32 %v1438, %v1715
        %v1811 = vmul.f32 %v1440, %v1719
        %v1812 = vmul.f32 %v1551, %v1723
        %v1813 = vmul.f32 %v1553, %v1727
        %v1814 = vmul.f32 %v1664, %v1731
        %v1815 = vmul.f32 %v1666, %v1735
        %v1816 = vmul.f32 %v1329, %v1707
        %v1817 = vmul.f32 %v1331, %v1711
        %v1818 = vmul.f32 %v1442, %v1715
        %v1819 = vmul.f32 %v1444, %v1719
        %v1820 = vmul.f32 %v1555, %v1723
        %v1821 = vmul.f32 %v1557, %v1727
        %v1822 = vmul.f32 %v1668, %v1731
        %v1823 = vmul.f32 %v1670, %v1735
        %v1824 = vmul.f32 %v1335, %v1707
        %v1825 = vmul.f32 %v1337, %v1711
        %v1826 = vmul.f32 %v1448, %v1715
        %v1827 = vmul.f32 %v1450, %v1719
        %v1828 = vmul.f32 %v1561, %v1723
        %v1829 = vmul.f32 %v1563, %v1727
        %v1830 = vmul.f32 %v1674, %v1731
        %v1831 = vmul.f32 %v1676, %v1735
        %v1832 = vmul.f32 %v1339, %v1707
        %v1833 = vmul.f32 %v1341, %v1711
        %v1834 = vmul.f32 %v1452, %v1715
        %v1835 = vmul.f32 %v1454, %v1719
        %v1836 = vmul.f32 %v1565, %v1723
        %v1837 = vmul.f32 %v1567, %v1727
        %v1838 = vmul.f32 %v1678, %v1731
        %v1839 = vmul.f32 %v1680, %v1735
        %v1840 = vmul.f32 %v1345, %v1707
        %v1841 = vmul.f32 %v1347, %v1711
        %v1842 = vmul.f32 %v1458, %v1715
        %v1843 = vmul.f32 %v1460, %v1719
        %v1844 = vmul.f32 %v1571, %v1723
        %v1845 = vmul.f32 %v1573, %v1727
        %v1846 = vmul.f32 %v1684, %v1731
        %v1847 = vmul.f32 %v1686, %v1735
        %v1848 = vmul.f32 %v1349, %v1707
        %v1849 = vmul.f32 %v1351, %v1711
        %v1850 = vmul.f32 %v1462, %v1715
        %v1851 = vmul.f32 %v1464, %v1719
        %v1852 = vmul.f32 %v1575, %v1723
        %v1853 = vmul.f32 %v1577, %v1727
        %v1854 = vmul.f32 %v1688, %v1731
        %v1855 = vmul.f32 %v1690, %v1735
        %v1856 = vmul.f32 %v1355, %v1707
        %v1857 = vmul.f32 %v1357, %v1711
        %v1858 = vmul.f32 %v1468, %v1715
        %v1859 = vmul.f32 %v1470, %v1719
        %v1860 = vmul.f32 %v1581, %v1723
        %v1861 = vmul.f32 %v1583, %v1727
        %v1862 = vmul.f32 %v1694, %v1731
        %v1863 = vmul.f32 %v1696, %v1735
        %v1864 = vmul.f32 %v1359, %v1707
        %v1865 = vmul.f32 %v1361, %v1711
        %v1866 = vmul.f32 %v1472, %v1715
        %v1867 = vmul.f32 %v1474, %v1719
        %v1868 = vmul.f32 %v1585, %v1723
        %v1869 = vmul.f32 %v1587, %v1727
        %v1870 = vmul.f32 %v1698, %v1731
        %v1871 = vmul.f32 %v1700, %v1735
        %v1872 = vld [vmem:[#allocation4] sm:$0xff]
        %v1874 = vlaneseq
        %v1875 = vshrl.u32 %v1874, 7
        %v1876 = vsub.s32 0, %v1875
        %v1877 = vrot.slane %v1872, %v1876
        %v1878 = vlaneseq
        %v1879 = vshrl.u32 %v1878, 7
        %v1880 = vsub.s32 1, %v1879
        %v1881 = vrot.slane %v1872, %v1880
        %v1882 = vlaneseq
        %v1883 = vshrl.u32 %v1882, 7
        %v1884 = vsub.s32 2, %v1883
        %v1885 = vrot.slane %v1872, %v1884
        %v1886 = vlaneseq
        %v1887 = vshrl.u32 %v1886, 7
        %v1888 = vsub.s32 3, %v1887
        %v1889 = vrot.slane %v1872, %v1888
        %v1890 = vlaneseq
        %v1891 = vshrl.u32 %v1890, 7
        %v1892 = vsub.s32 4, %v1891
        %v1893 = vrot.slane %v1872, %v1892
        %v1894 = vlaneseq
        %v1895 = vshrl.u32 %v1894, 7
        %v1896 = vsub.s32 5, %v1895
        %v1897 = vrot.slane %v1872, %v1896
        %v1898 = vlaneseq
        %v1899 = vshrl.u32 %v1898, 7
        %v1900 = vsub.s32 6, %v1899
        %v1901 = vrot.slane %v1872, %v1900
        %v1902 = vlaneseq
        %v1903 = vshrl.u32 %v1902, 7
        %v1904 = vsub.s32 7, %v1903
        %v1905 = vrot.slane %v1872, %v1904
        %v1914 = vadd.f32 %v1744, %v1877
        %v1915 = vadd.f32 %v1745, %v1881
        %v1916 = vadd.f32 %v1746, %v1885
        %v1917 = vadd.f32 %v1747, %v1889
        %v1918 = vadd.f32 %v1748, %v1893
        %v1919 = vadd.f32 %v1749, %v1897
        %v1920 = vadd.f32 %v1750, %v1901
        %v1921 = vadd.f32 %v1751, %v1905
        %v1922 = vadd.f32 %v1752, %v1877
        %v1923 = vadd.f32 %v1753, %v1881
        %v1924 = vadd.f32 %v1754, %v1885
        %v1925 = vadd.f32 %v1755, %v1889
        %v1926 = vadd.f32 %v1756, %v1893
        %v1927 = vadd.f32 %v1757, %v1897
        %v1928 = vadd.f32 %v1758, %v1901
        %v1929 = vadd.f32 %v1759, %v1905
        %v1930 = vadd.f32 %v1760, %v1877
        %v1931 = vadd.f32 %v1761, %v1881
        %v1932 = vadd.f32 %v1762, %v1885
        %v1933 = vadd.f32 %v1763, %v1889
        %v1934 = vadd.f32 %v1764, %v1893
        %v1935 = vadd.f32 %v1765, %v1897
        %v1936 = vadd.f32 %v1766, %v1901
        %v1937 = vadd.f32 %v1767, %v1905
        %v1938 = vadd.f32 %v1768, %v1877
        %v1939 = vadd.f32 %v1769, %v1881
        %v1940 = vadd.f32 %v1770, %v1885
        %v1941 = vadd.f32 %v1771, %v1889
        %v1942 = vadd.f32 %v1772, %v1893
        %v1943 = vadd.f32 %v1773, %v1897
        %v1944 = vadd.f32 %v1774, %v1901
        %v1945 = vadd.f32 %v1775, %v1905
        %v1946 = vadd.f32 %v1776, %v1877
        %v1947 = vadd.f32 %v1777, %v1881
        %v1948 = vadd.f32 %v1778, %v1885
        %v1949 = vadd.f32 %v1779, %v1889
        %v1950 = vadd.f32 %v1780, %v1893
        %v1951 = vadd.f32 %v1781, %v1897
        %v1952 = vadd.f32 %v1782, %v1901
        %v1953 = vadd.f32 %v1783, %v1905
        %v1954 = vadd.f32 %v1784, %v1877
        %v1955 = vadd.f32 %v1785, %v1881
        %v1956 = vadd.f32 %v1786, %v1885
        %v1957 = vadd.f32 %v1787, %v1889
        %v1958 = vadd.f32 %v1788, %v1893
        %v1959 = vadd.f32 %v1789, %v1897
        %v1960 = vadd.f32 %v1790, %v1901
        %v1961 = vadd.f32 %v1791, %v1905
        %v1962 = vadd.f32 %v1792, %v1877
        %v1963 = vadd.f32 %v1793, %v1881
        %v1964 = vadd.f32 %v1794, %v1885
        %v1965 = vadd.f32 %v1795, %v1889
        %v1966 = vadd.f32 %v1796, %v1893
        %v1967 = vadd.f32 %v1797, %v1897
        %v1968 = vadd.f32 %v1798, %v1901
        %v1969 = vadd.f32 %v1799, %v1905
        %v1970 = vadd.f32 %v1800, %v1877
        %v1971 = vadd.f32 %v1801, %v1881
        %v1972 = vadd.f32 %v1802, %v1885
        %v1973 = vadd.f32 %v1803, %v1889
        %v1974 = vadd.f32 %v1804, %v1893
        %v1975 = vadd.f32 %v1805, %v1897
        %v1976 = vadd.f32 %v1806, %v1901
        %v1977 = vadd.f32 %v1807, %v1905
        %v1978 = vadd.f32 %v1808, %v1877
        %v1979 = vadd.f32 %v1809, %v1881
        %v1980 = vadd.f32 %v1810, %v1885
        %v1981 = vadd.f32 %v1811, %v1889
        %v1982 = vadd.f32 %v1812, %v1893
        %v1983 = vadd.f32 %v1813, %v1897
        %v1984 = vadd.f32 %v1814, %v1901
        %v1985 = vadd.f32 %v1815, %v1905
        %v1986 = vadd.f32 %v1816, %v1877
        %v1987 = vadd.f32 %v1817, %v1881
        %v1988 = vadd.f32 %v1818, %v1885
        %v1989 = vadd.f32 %v1819, %v1889
        %v1990 = vadd.f32 %v1820, %v1893
        %v1991 = vadd.f32 %v1821, %v1897
        %v1992 = vadd.f32 %v1822, %v1901
        %v1993 = vadd.f32 %v1823, %v1905
        %v1994 = vadd.f32 %v1824, %v1877
        %v1995 = vadd.f32 %v1825, %v1881
        %v1996 = vadd.f32 %v1826, %v1885
        %v1997 = vadd.f32 %v1827, %v1889
        %v1998 = vadd.f32 %v1828, %v1893
        %v1999 = vadd.f32 %v1829, %v1897
        %v2000 = vadd.f32 %v1830, %v1901
        %v2001 = vadd.f32 %v1831, %v1905
        %v2002 = vadd.f32 %v1832, %v1877
        %v2003 = vadd.f32 %v1833, %v1881
        %v2004 = vadd.f32 %v1834, %v1885
        %v2005 = vadd.f32 %v1835, %v1889
        %v2006 = vadd.f32 %v1836, %v1893
        %v2007 = vadd.f32 %v1837, %v1897
        %v2008 = vadd.f32 %v1838, %v1901
        %v2009 = vadd.f32 %v1839, %v1905
        %v2010 = vadd.f32 %v1840, %v1877
        %v2011 = vadd.f32 %v1841, %v1881
        %v2012 = vadd.f32 %v1842, %v1885
        %v2013 = vadd.f32 %v1843, %v1889
        %v2014 = vadd.f32 %v1844, %v1893
        %v2015 = vadd.f32 %v1845, %v1897
        %v2016 = vadd.f32 %v1846, %v1901
        %v2017 = vadd.f32 %v1847, %v1905
        %v2018 = vadd.f32 %v1848, %v1877
        %v2019 = vadd.f32 %v1849, %v1881
        %v2020 = vadd.f32 %v1850, %v1885
        %v2021 = vadd.f32 %v1851, %v1889
        %v2022 = vadd.f32 %v1852, %v1893
        %v2023 = vadd.f32 %v1853, %v1897
        %v2024 = vadd.f32 %v1854, %v1901
        %v2025 = vadd.f32 %v1855, %v1905
        %v2026 = vadd.f32 %v1856, %v1877
        %v2027 = vadd.f32 %v1857, %v1881
        %v2028 = vadd.f32 %v1858, %v1885
        %v2029 = vadd.f32 %v1859, %v1889
        %v2030 = vadd.f32 %v1860, %v1893
        %v2031 = vadd.f32 %v1861, %v1897
        %v2032 = vadd.f32 %v1862, %v1901
        %v2033 = vadd.f32 %v1863, %v1905
        %v2034 = vadd.f32 %v1864, %v1877
        %v2035 = vadd.f32 %v1865, %v1881
        %v2036 = vadd.f32 %v1866, %v1885
        %v2037 = vadd.f32 %v1867, %v1889
        %v2038 = vadd.f32 %v1868, %v1893
        %v2039 = vadd.f32 %v1869, %v1897
        %v2040 = vadd.f32 %v1870, %v1901
        %v2041 = vadd.f32 %v1871, %v1905
        %v2042 = vmax.f32 %v1914, 0.0
        %v2043 = vmax.f32 %v1915, 0.0
        %v2044 = vmax.f32 %v1916, 0.0
        %v2045 = vmax.f32 %v1917, 0.0
        %v2046 = vmax.f32 %v1918, 0.0
        %v2047 = vmax.f32 %v1919, 0.0
        %v2048 = vmax.f32 %v1920, 0.0
        %v2049 = vmax.f32 %v1921, 0.0
        %v2050 = vmax.f32 %v1922, 0.0
        %v2051 = vmax.f32 %v1923, 0.0
        %v2052 = vmax.f32 %v1924, 0.0
        %v2053 = vmax.f32 %v1925, 0.0
        %v2054 = vmax.f32 %v1926, 0.0
        %v2055 = vmax.f32 %v1927, 0.0
        %v2056 = vmax.f32 %v1928, 0.0
        %v2057 = vmax.f32 %v1929, 0.0
        %v2058 = vmax.f32 %v1930, 0.0
        %v2059 = vmax.f32 %v1931, 0.0
        %v2060 = vmax.f32 %v1932, 0.0
        %v2061 = vmax.f32 %v1933, 0.0
        %v2062 = vmax.f32 %v1934, 0.0
        %v2063 = vmax.f32 %v1935, 0.0
        %v2064 = vmax.f32 %v1936, 0.0
        %v2065 = vmax.f32 %v1937, 0.0
        %v2066 = vmax.f32 %v1938, 0.0
        %v2067 = vmax.f32 %v1939, 0.0
        %v2068 = vmax.f32 %v1940, 0.0
        %v2069 = vmax.f32 %v1941, 0.0
        %v2070 = vmax.f32 %v1942, 0.0
        %v2071 = vmax.f32 %v1943, 0.0
        %v2072 = vmax.f32 %v1944, 0.0
        %v2073 = vmax.f32 %v1945, 0.0
        %v2074 = vmax.f32 %v1946, 0.0
        %v2075 = vmax.f32 %v1947, 0.0
        %v2076 = vmax.f32 %v1948, 0.0
        %v2077 = vmax.f32 %v1949, 0.0
        %v2078 = vmax.f32 %v1950, 0.0
        %v2079 = vmax.f32 %v1951, 0.0
        %v2080 = vmax.f32 %v1952, 0.0
        %v2081 = vmax.f32 %v1953, 0.0
        %v2082 = vmax.f32 %v1954, 0.0
        %v2083 = vmax.f32 %v1955, 0.0
        %v2084 = vmax.f32 %v1956, 0.0
        %v2085 = vmax.f32 %v1957, 0.0
        %v2086 = vmax.f32 %v1958, 0.0
        %v2087 = vmax.f32 %v1959, 0.0
        %v2088 = vmax.f32 %v1960, 0.0
        %v2089 = vmax.f32 %v1961, 0.0
        %v2090 = vmax.f32 %v1962, 0.0
        %v2091 = vmax.f32 %v1963, 0.0
        %v2092 = vmax.f32 %v1964, 0.0
        %v2093 = vmax.f32 %v1965, 0.0
        %v2094 = vmax.f32 %v1966, 0.0
        %v2095 = vmax.f32 %v1967, 0.0
        %v2096 = vmax.f32 %v1968, 0.0
        %v2097 = vmax.f32 %v1969, 0.0
        %v2098 = vmax.f32 %v1970, 0.0
        %v2099 = vmax.f32 %v1971, 0.0
        %v2100 = vmax.f32 %v1972, 0.0
        %v2101 = vmax.f32 %v1973, 0.0
        %v2102 = vmax.f32 %v1974, 0.0
        %v2103 = vmax.f32 %v1975, 0.0
        %v2104 = vmax.f32 %v1976, 0.0
        %v2105 = vmax.f32 %v1977, 0.0
        %v2106 = vmax.f32 %v1978, 0.0
        %v2107 = vmax.f32 %v1979, 0.0
        %v2108 = vmax.f32 %v1980, 0.0
        %v2109 = vmax.f32 %v1981, 0.0
        %v2110 = vmax.f32 %v1982, 0.0
        %v2111 = vmax.f32 %v1983, 0.0
        %v2112 = vmax.f32 %v1984, 0.0
        %v2113 = vmax.f32 %v1985, 0.0
        %v2114 = vmax.f32 %v1986, 0.0
        %v2115 = vmax.f32 %v1987, 0.0
        %v2116 = vmax.f32 %v1988, 0.0
        %v2117 = vmax.f32 %v1989, 0.0
        %v2118 = vmax.f32 %v1990, 0.0
        %v2119 = vmax.f32 %v1991, 0.0
        %v2120 = vmax.f32 %v1992, 0.0
        %v2121 = vmax.f32 %v1993, 0.0
        %v2122 = vmax.f32 %v1994, 0.0
        %v2123 = vmax.f32 %v1995, 0.0
        %v2124 = vmax.f32 %v1996, 0.0
        %v2125 = vmax.f32 %v1997, 0.0
        %v2126 = vmax.f32 %v1998, 0.0
        %v2127 = vmax.f32 %v1999, 0.0
        %v2128 = vmax.f32 %v2000, 0.0
        %v2129 = vmax.f32 %v2001, 0.0
        %v2130 = vmax.f32 %v2002, 0.0
        %v2131 = vmax.f32 %v2003, 0.0
        %v2132 = vmax.f32 %v2004, 0.0
        %v2133 = vmax.f32 %v2005, 0.0
        %v2134 = vmax.f32 %v2006, 0.0
        %v2135 = vmax.f32 %v2007, 0.0
        %v2136 = vmax.f32 %v2008, 0.0
        %v2137 = vmax.f32 %v2009, 0.0
        %v2138 = vmax.f32 %v2010, 0.0
        %v2139 = vmax.f32 %v2011, 0.0
        %v2140 = vmax.f32 %v2012, 0.0
        %v2141 = vmax.f32 %v2013, 0.0
        %v2142 = vmax.f32 %v2014, 0.0
        %v2143 = vmax.f32 %v2015, 0.0
        %v2144 = vmax.f32 %v2016, 0.0
        %v2145 = vmax.f32 %v2017, 0.0
        %v2146 = vmax.f32 %v2018, 0.0
        %v2147 = vmax.f32 %v2019, 0.0
        %v2148 = vmax.f32 %v2020, 0.0
        %v2149 = vmax.f32 %v2021, 0.0
        %v2150 = vmax.f32 %v2022, 0.0
        %v2151 = vmax.f32 %v2023, 0.0
        %v2152 = vmax.f32 %v2024, 0.0
        %v2153 = vmax.f32 %v2025, 0.0
        %v2154 = vmax.f32 %v2026, 0.0
        %v2155 = vmax.f32 %v2027, 0.0
        %v2156 = vmax.f32 %v2028, 0.0
        %v2157 = vmax.f32 %v2029, 0.0
        %v2158 = vmax.f32 %v2030, 0.0
        %v2159 = vmax.f32 %v2031, 0.0
        %v2160 = vmax.f32 %v2032, 0.0
        %v2161 = vmax.f32 %v2033, 0.0
        %v2162 = vmax.f32 %v2034, 0.0
        %v2163 = vmax.f32 %v2035, 0.0
        %v2164 = vmax.f32 %v2036, 0.0
        %v2165 = vmax.f32 %v2037, 0.0
        %v2166 = vmax.f32 %v2038, 0.0
        %v2167 = vmax.f32 %v2039, 0.0
        %v2168 = vmax.f32 %v2040, 0.0
        %v2169 = vmax.f32 %v2041, 0.0
        %v2170 = vld [vmem:[%s411] sm:$0xff]
        %v2171 = vmax.f32 %v2042, %v2050
        %v2172 = vmax.f32 %v2171, %v2058
        %v2173 = vmax.f32 %v2172, %v2066
        %v2174 = vmax.f32 %v2173, %v2074
        %v2175 = vmax.f32 %v2174, %v2082
        %v2176 = vmax.f32 %v2175, %v2090
        %v2177 = vmax.f32 %v2176, %v2098
        %v2178 = vmax.f32 %v2177, %v2106
        %v2179 = vmax.f32 %v2178, %v2114
        %v2180 = vmax.f32 %v2179, %v2122
        %v2181 = vmax.f32 %v2180, %v2130
        %v2182 = vmax.f32 %v2181, %v2138
        %v2183 = vmax.f32 %v2182, %v2146
        %v2184 = vmax.f32 %v2183, %v2154
        %v2185 = vmax.f32 %v2184, %v2162
        %v2186 = vrot.slane %v2185, 4
        %v2187 = vmax.f32 %v2185, %v2186
        %v2188 = vrot.slane %v2187, 2
        %v2189 = vmax.f32 %v2187, %v2188
        %v2190 = vrot.slane %v2189, 1
        %v2191 = vmax.f32 %v2189, %v2190
        %v2192 = vmax.f32 %v2043, %v2051
        %v2193 = vmax.f32 %v2192, %v2059
        %v2194 = vmax.f32 %v2193, %v2067
        %v2195 = vmax.f32 %v2194, %v2075
        %v2196 = vmax.f32 %v2195, %v2083
        %v2197 = vmax.f32 %v2196, %v2091
        %v2198 = vmax.f32 %v2197, %v2099
        %v2199 = vmax.f32 %v2198, %v2107
        %v2200 = vmax.f32 %v2199, %v2115
        %v2201 = vmax.f32 %v2200, %v2123
        %v2202 = vmax.f32 %v2201, %v2131
        %v2203 = vmax.f32 %v2202, %v2139
        %v2204 = vmax.f32 %v2203, %v2147
        %v2205 = vmax.f32 %v2204, %v2155
        %v2206 = vmax.f32 %v2205, %v2163
        %v2207 = vrot.slane %v2206, 4
        %v2208 = vmax.f32 %v2206, %v2207
        %v2209 = vrot.slane %v2208, 2
        %v2210 = vmax.f32 %v2208, %v2209
        %v2211 = vrot.slane %v2210, 1
        %v2212 = vmax.f32 %v2210, %v2211
        %v2213 = vmax.f32 %v2044, %v2052
        %v2214 = vmax.f32 %v2213, %v2060
        %v2215 = vmax.f32 %v2214, %v2068
        %v2216 = vmax.f32 %v2215, %v2076
        %v2217 = vmax.f32 %v2216, %v2084
        %v2218 = vmax.f32 %v2217, %v2092
        %v2219 = vmax.f32 %v2218, %v2100
        %v2220 = vmax.f32 %v2219, %v2108
        %v2221 = vmax.f32 %v2220, %v2116
        %v2222 = vmax.f32 %v2221, %v2124
        %v2223 = vmax.f32 %v2222, %v2132
        %v2224 = vmax.f32 %v2223, %v2140
        %v2225 = vmax.f32 %v2224, %v2148
        %v2226 = vmax.f32 %v2225, %v2156
        %v2227 = vmax.f32 %v2226, %v2164
        %v2228 = vrot.slane %v2227, 4
        %v2229 = vmax.f32 %v2227, %v2228
        %v2230 = vrot.slane %v2229, 2
        %v2231 = vmax.f32 %v2229, %v2230
        %v2232 = vrot.slane %v2231, 1
        %v2233 = vmax.f32 %v2231, %v2232
        %v2234 = vmax.f32 %v2045, %v2053
        %v2235 = vmax.f32 %v2234, %v2061
        %v2236 = vmax.f32 %v2235, %v2069
        %v2237 = vmax.f32 %v2236, %v2077
        %v2238 = vmax.f32 %v2237, %v2085
        %v2239 = vmax.f32 %v2238, %v2093
        %v2240 = vmax.f32 %v2239, %v2101
        %v2241 = vmax.f32 %v2240, %v2109
        %v2242 = vmax.f32 %v2241, %v2117
        %v2243 = vmax.f32 %v2242, %v2125
        %v2244 = vmax.f32 %v2243, %v2133
        %v2245 = vmax.f32 %v2244, %v2141
        %v2246 = vmax.f32 %v2245, %v2149
        %v2247 = vmax.f32 %v2246, %v2157
        %v2248 = vmax.f32 %v2247, %v2165
        %v2249 = vrot.slane %v2248, 4
        %v2250 = vmax.f32 %v2248, %v2249
        %v2251 = vrot.slane %v2250, 2
        %v2252 = vmax.f32 %v2250, %v2251
        %v2253 = vrot.slane %v2252, 1
        %v2254 = vmax.f32 %v2252, %v2253
        %v2255 = vmax.f32 %v2046, %v2054
        %v2256 = vmax.f32 %v2255, %v2062
        %v2257 = vmax.f32 %v2256, %v2070
        %v2258 = vmax.f32 %v2257, %v2078
        %v2259 = vmax.f32 %v2258, %v2086
        %v2260 = vmax.f32 %v2259, %v2094
        %v2261 = vmax.f32 %v2260, %v2102
        %v2262 = vmax.f32 %v2261, %v2110
        %v2263 = vmax.f32 %v2262, %v2118
        %v2264 = vmax.f32 %v2263, %v2126
        %v2265 = vmax.f32 %v2264, %v2134
        %v2266 = vmax.f32 %v2265, %v2142
        %v2267 = vmax.f32 %v2266, %v2150
        %v2268 = vmax.f32 %v2267, %v2158
        %v2269 = vmax.f32 %v2268, %v2166
        %v2270 = vrot.slane %v2269, 4
        %v2271 = vmax.f32 %v2269, %v2270
        %v2272 = vrot.slane %v2271, 2
        %v2273 = vmax.f32 %v2271, %v2272
        %v2274 = vrot.slane %v2273, 1
        %v2275 = vmax.f32 %v2273, %v2274
        %v2276 = vmax.f32 %v2047, %v2055
        %v2277 = vmax.f32 %v2276, %v2063
        %v2278 = vmax.f32 %v2277, %v2071
        %v2279 = vmax.f32 %v2278, %v2079
        %v2280 = vmax.f32 %v2279, %v2087
        %v2281 = vmax.f32 %v2280, %v2095
        %v2282 = vmax.f32 %v2281, %v2103
        %v2283 = vmax.f32 %v2282, %v2111
        %v2284 = vmax.f32 %v2283, %v2119
        %v2285 = vmax.f32 %v2284, %v2127
        %v2286 = vmax.f32 %v2285, %v2135
        %v2287 = vmax.f32 %v2286, %v2143
        %v2288 = vmax.f32 %v2287, %v2151
        %v2289 = vmax.f32 %v2288, %v2159
        %v2290 = vmax.f32 %v2289, %v2167
        %v2291 = vrot.slane %v2290, 4
        %v2292 = vmax.f32 %v2290, %v2291
        %v2293 = vrot.slane %v2292, 2
        %v2294 = vmax.f32 %v2292, %v2293
        %v2295 = vrot.slane %v2294, 1
        %v2296 = vmax.f32 %v2294, %v2295
        %v2297 = vmax.f32 %v2048, %v2056
        %v2298 = vmax.f32 %v2297, %v2064
        %v2299 = vmax.f32 %v2298, %v2072
        %v2300 = vmax.f32 %v2299, %v2080
        %v2301 = vmax.f32 %v2300, %v2088
        %v2302 = vmax.f32 %v2301, %v2096
        %v2303 = vmax.f32 %v2302, %v2104
        %v2304 = vmax.f32 %v2303, %v2112
        %v2305 = vmax.f32 %v2304, %v2120
        %v2306 = vmax.f32 %v2305, %v2128
        %v2307 = vmax.f32 %v2306, %v2136
        %v2308 = vmax.f32 %v2307, %v2144
        %v2309 = vmax.f32 %v2308, %v2152
        %v2310 = vmax.f32 %v2309, %v2160
        %v2311 = vmax.f32 %v2310, %v2168
        %v2312 = vrot.slane %v2311, 4
        %v2313 = vmax.f32 %v2311, %v2312
        %v2314 = vrot.slane %v2313, 2
        %v2315 = vmax.f32 %v2313, %v2314
        %v2316 = vrot.slane %v2315, 1
        %v2317 = vmax.f32 %v2315, %v2316
        %v2318 = vmax.f32 %v2049, %v2057
        %v2319 = vmax.f32 %v2318, %v2065
        %v2320 = vmax.f32 %v2319, %v2073
        %v2321 = vmax.f32 %v2320, %v2081
        %v2322 = vmax.f32 %v2321, %v2089
        %v2323 = vmax.f32 %v2322, %v2097
        %v2324 = vmax.f32 %v2323, %v2105
        %v2325 = vmax.f32 %v2324, %v2113
        %v2326 = vmax.f32 %v2325, %v2121
        %v2327 = vmax.f32 %v2326, %v2129
        %v2328 = vmax.f32 %v2327, %v2137
        %v2329 = vmax.f32 %v2328, %v2145
        %v2330 = vmax.f32 %v2329, %v2153
        %v2331 = vmax.f32 %v2330, %v2161
        %v2332 = vmax.f32 %v2331, %v2169
        %v2333 = vrot.slane %v2332, 4
        %v2334 = vmax.f32 %v2332, %v2333
        %v2335 = vrot.slane %v2334, 2
        %v2336 = vmax.f32 %v2334, %v2335
        %v2337 = vrot.slane %v2336, 1
        %v2338 = vmax.f32 %v2336, %v2337
        %v2347 = vcombine.low %v2191, %v2212
        %v2348 = vcombine.low %v2233, %v2254
        %v2349 = vcombine.low %v2275, %v2296
        %v2350 = vcombine.low %v2317, %v2338
        %v2352 = vunpack.c.l.s4 1966171168
        %v2353 = vunpack.c.0.s8 %v2352
        %v2354 = vlaneseq
        %v2355 = vshrl.u32 %v2354, 7
        %v2356 = vsub.s32 %v2353, %v2355
        %v2357 = vrot.slane %v2347, %v2356
        %v2359 = vunpack.c.l.s4 1966171168
        %v2360 = vunpack.c.0.s8 %v2359
        %v2361 = vlaneseq
        %v2362 = vshrl.u32 %v2361, 7
        %v2363 = vsub.s32 %v2360, %v2362
        %v2364 = vrot.slane %v2348, %v2363
        %v2366 = vunpack.c.l.s4 1966171168
        %v2367 = vunpack.c.0.s8 %v2366
        %v2368 = vlaneseq
        %v2369 = vshrl.u32 %v2368, 7
        %v2370 = vsub.s32 %v2367, %v2369
        %v2371 = vrot.slane %v2349, %v2370
        %v2373 = vunpack.c.l.s4 1966171168
        %v2374 = vunpack.c.0.s8 %v2373
        %v2375 = vlaneseq
        %v2376 = vshrl.u32 %v2375, 7
        %v2377 = vsub.s32 %v2374, %v2376
        %v2378 = vrot.slane %v2350, %v2377
        %v2379 = vcombine.low %v2357, %v2364
        %v2380 = vcombine.low %v2371, %v2378
        %v2382 = vunpack.c.l.s4 1966171168
        %v2383 = vunpack.c.0.s8 %v2382
        %v2384 = vlaneseq
        %v2385 = vshrl.u32 %v2384, 7
        %v2386 = vsub.s32 %v2383, %v2385
        %v2387 = vrot.slane %v2379, %v2386
        %v2389 = vunpack.c.l.s4 1966171168
        %v2390 = vunpack.c.0.s8 %v2389
        %v2391 = vlaneseq
        %v2392 = vshrl.u32 %v2391, 7
        %v2393 = vsub.s32 %v2390, %v2392
        %v2394 = vrot.slane %v2380, %v2393
        %v2395 = vcombine.low %v2387, %v2394
        %v2397 = vmax.f32 %v2170, %v2395
        %2398 = vst [vmem:[%s411] sm:$0xff] %v2397
        %p2399 = scmp.lt.s32.totalorder %s27, 1
        %s2400 = scalar_select %p2399, %s27, 1
        %s2401 = smul.addr %s2400, 8
        %s2402 = scalar_lea.vmem %s10, %s2401
        // Predicated region
        $region73: #{_lambda_.3} parent=59 // pred_check
          %p2403 = pneg %p270
        $region74: #{_lambda_.3} parent=59 // pred_check_branch
          %2405 = sbr.rel (%p2403) target = $region76
        $region75: #{_lambda_.3} parent=59 // pred_region
          _
        $region76: #{_lambda_.3} parent=59 // pred_fallthru
          _
      $region60: #{_lambda_.3} parent=5 // pred_fallthru
        _
      %p2406 = scmp.le.s32.totalorder 2, %s18
      // Predicated region
      $region77: #{_lambda_.3} parent=5 // pred_check
        %p2407 = pneg %p2406
      $region78: #{_lambda_.3} parent=5 // pred_check_branch
        %2409 = sbr.rel (%p2407) target = $region80
      $region79: #{_lambda_.3} parent=5 // pred_region
        %s2410 = ssub.s32 %s18, 2
        // Predicated region
        $region81: #{_lambda_.3} parent=79 // pred_check
          %p2411 = pneg %p276
        $region82: #{_lambda_.3} parent=79 // pred_check_branch
          %2413 = sbr.rel (%p2411) target = $region84
        $region83: #{_lambda_.3} parent=79 // pred_region
          %p2414 = scmp.lt.s32.totalorder %s29, 1
          %s2415 = scalar_select %p2414, %s29, 1
          %s2416 = smul.addr %s2415, 8
          %s2417 = scalar_lea.vmem %s10, %s2416
        $region84: #{_lambda_.3} parent=79 // pred_fallthru
          _
      $region80: #{_lambda_.3} parent=5 // pred_fallthru
        _
    $region6: #{_lambda_.3} parent=1 // loop_footer
      %s22 = sadd.s32 1, %s18
    $region7: #{_lambda_.3} parent=1 // loop_footer_branch
      %17 = sbr.rel target = $region3
    $region8: #{_lambda_.3} parent=1 // loop_exit
      _
    %2418 = vsyncpa [#allocation3], 1
    %s2419 = scalar_lea.sflag [#allocation3], 1
    %2420 = vsyncpa %s2419, 1
    %2421 = vsyncpa [#allocation5], 1

// kernel: _lambda_.5
$region0: #{_lambda_.5}
  #allocation0 [shape = 'u32[]', space=smem, size = 0x4, offset = 0x4, fixed_abs, tag = 'smem constant byte address 0x4 - core index']
  #allocation1 [shape = 'u32[144,128]{1,0:T(1,128)}', space=vmem, size = 0x12000, scoped, tag = 'internal scratch']
  %s0 = inlined_call_operand.vmem [shape: f32[2,3,128], index: 0, kind: input, shape index: {}]
  %s1 = inlined_call_operand.vmem [shape: bf16[2,64,3], index: 1, kind: input, shape index: {}]
  %s2 = inlined_call_operand.vmem [shape: f32[64,1], index: 2, kind: input, shape index: {}]
  %s3 = inlined_call_operand.vmem [shape: f32[64,1], index: 3, kind: input, shape index: {}]
  %s4 = inlined_call_operand.vmem [shape: bf16[64,64], index: 4, kind: input, shape index: {}]
  %s5 = inlined_call_operand.vmem [shape: f32[64,1], index: 5, kind: input, shape index: {}]
  %s6 = inlined_call_operand.vmem [shape: f32[64,1], index: 6, kind: input, shape index: {}]
  %s7 = inlined_call_operand.vmem [shape: bf16[64,64], index: 7, kind: input, shape index: {}]
  %s8 = inlined_call_operand.vmem [shape: f32[64,1], index: 8, kind: input, shape index: {}]
  %s9 = inlined_call_operand.vmem [shape: f32[64,1], index: 9, kind: input, shape index: {}]
  %s10 = inlined_call_operand.vmem [shape: bf16[64,64], index: 10, kind: input, shape index: {}]
  %s11 = inlined_call_operand.vmem [shape: f32[64,1], index: 11, kind: input, shape index: {}]
  %s12 = inlined_call_operand.vmem [shape: f32[64,1], index: 12, kind: input, shape index: {}]
  %s13 = inlined_call_operand.vmem [shape: bf16[64,64], index: 13, kind: input, shape index: {}]
  %s14 = inlined_call_operand.vmem [shape: f32[64,1], index: 14, kind: input, shape index: {}]
  %s15 = inlined_call_operand.vmem [shape: f32[64,1], index: 15, kind: input, shape index: {}]
  %s16 = inlined_call_operand.vmem [shape: f32[2,64,128], index: 16, kind: output, shape index: {}]
  %s17 = sld [smem:[#allocation0]]
  $region97: #{_lambda_.5} parent=0
    _
  %s19 = ssub.s32 1, %s17
  %s20 = scalar_select 0, %s19, %s17
  loop: start=0, step=1, limit=4
  $region2: #{_lambda_.5} parent=0 // loop_pre_header
    _
  $region3: #{_lambda_.5} parent=0 // loop_header
    %s22 = sphi 0, %s26
    %p23 = scmp.ge.s32.totalorder %s22, 4
    %s29 = sphi 0, %s41
    %s30 = sphi 0, %s37
    %s31 = sphi 0, %s29
    %s32 = sphi 0, %s30
    %s33 = sphi 0, %s31
    %s34 = sphi 0, %s32
    %s46 = sphi 0, %s48
    %s49 = sphi 0, %s46
    %s50 = sphi 0, %s49
    %s66 = sphi 0, %s50
    %s72 = sphi 0, %s74
    %s75 = sphi 0, %s72
    %s76 = sphi 0, %s75
    %s92 = sphi 0, %s76
    %s96 = sphi 0, %s96
    %s98 = sphi 0, %s96
    %s99 = sphi 0, %s98
    %s113 = sphi 0, %s99
    %s117 = sphi 0, %s117
    %s119 = sphi 0, %s117
    %s120 = sphi 0, %s119
    %s134 = sphi 0, %s120
    %s138 = sphi 0, %s138
    %s140 = sphi 0, %s138
    %s141 = sphi 0, %s140
    %s155 = sphi 0, %s141
    %s159 = sphi 0, %s159
    %s161 = sphi 0, %s159
    %s162 = sphi 0, %s161
    %s176 = sphi 0, %s162
    %s180 = sphi 0, %s180
    %s182 = sphi 0, %s180
    %s183 = sphi 0, %s182
    %s197 = sphi 0, %s183
    %s201 = sphi 0, %s201
    %s203 = sphi 0, %s201
    %s204 = sphi 0, %s203
    %s218 = sphi 0, %s204
    %s222 = sphi 0, %s222
    %s224 = sphi 0, %s222
    %s225 = sphi 0, %s224
    %s239 = sphi 0, %s225
    %s243 = sphi 0, %s243
    %s245 = sphi 0, %s243
    %s246 = sphi 0, %s245
    %s260 = sphi 0, %s246
    %s264 = sphi 0, %s264
    %s266 = sphi 0, %s264
    %s267 = sphi 0, %s266
    %s281 = sphi 0, %s267
    %s285 = sphi 0, %s285
    %s287 = sphi 0, %s285
    %s288 = sphi 0, %s287
    %s302 = sphi 0, %s288
    %s306 = sphi 0, %s306
    %s308 = sphi 0, %s306
    %s309 = sphi 0, %s308
    %s323 = sphi 0, %s309
    %s327 = sphi 0, %s327
    %s329 = sphi 0, %s327
    %s330 = sphi 0, %s329
    %s344 = sphi 0, %s330
    %s348 = sphi 0, %s348
    %s350 = sphi 0, %s348
    %s351 = sphi 0, %s350
    %s365 = sphi 0, %s351
    %s369 = sphi 0, %s369
    %s371 = sphi 0, %s369
    %s372 = sphi 0, %s371
    %s386 = sphi 0, %s372
    %s394 = sphi 0, %s396
    %s397 = sphi 0, %s394
    %s398 = sphi 0, %s397
    %s414 = sphi 0, %s398
  $region4: #{_lambda_.5} parent=0 // loop_header_branch
    %25 = sbr.rel (%p23) target = $region8
  $region5: #{_lambda_.5} parent=0 // loop_body
    %s27 = ssub.s32 %s22, 1
    %s28 = ssub.s32 %s22, 2
    %s35 = sadd.s32 1, %s30
    %p36 = scmp.ge.s32.totalorder %s35, 1
    %s37 = scalar_select %p36, 0, %s35
    %s38 = sadd.s32 1, %s29
    %s39 = scalar_select %p36, %s38, %s29
    %p40 = scmp.ge.s32.totalorder %s39, 2
    %s41 = scalar_select %p40, 0, %s39
    %s42 = ssub.s32 %s29, %s41
    %s43 = ssub.s32 %s30, %s37
    %s44 = sor.u32 %s42, %s43
    %p45 = scmp.eq.s32.totalorder %s44, 0
    %s47 = sadd.s32 %s46, 1
    %s48 = scalar_select %p45, %s46, %s47
    %p51 = pneg %p45
    %p52 = scmp.eq.s32.totalorder %s22, 1
    %p53 = por %p51, %p52
    %p54 = scmp.ne.s32.totalorder %s46, %s49
    %p55 = scmp.eq.s32.totalorder %s22, 0
    %p56 = por %p54, %p55
    %p57 = scmp.ne.s32.totalorder %s46, %s49
    %p58 = scmp.eq.s32.totalorder %s27, 1
    %p59 = por %p57, %p58
    %p60 = scmp.ne.s32.totalorder %s49, %s50
    %p61 = scmp.eq.s32.totalorder %s27, 0
    %p62 = por %p60, %p61
    %p63 = scmp.ne.s32.totalorder %s49, %s50
    %p64 = scmp.eq.s32.totalorder %s28, 1
    %p65 = por %p63, %p64
    %p67 = scmp.ne.s32.totalorder %s50, %s66
    %p68 = scmp.eq.s32.totalorder %s28, 0
    %p69 = por %p67, %p68
    %s70 = ssub.s32 %s29, %s41
    %p71 = scmp.eq.s32.totalorder %s70, 0
    %s73 = sadd.s32 %s72, 1
    %s74 = scalar_select %p71, %s72, %s73
    %p77 = pneg %p71
    %p78 = scmp.eq.s32.totalorder %s22, 1
    %p79 = por %p77, %p78
    %p80 = scmp.ne.s32.totalorder %s72, %s75
    %p81 = scmp.eq.s32.totalorder %s22, 0
    %p82 = por %p80, %p81
    %p83 = scmp.ne.s32.totalorder %s72, %s75
    %p84 = scmp.eq.s32.totalorder %s27, 1
    %p85 = por %p83, %p84
    %p86 = scmp.ne.s32.totalorder %s75, %s76
    %p87 = scmp.eq.s32.totalorder %s27, 0
    %p88 = por %p86, %p87
    %p89 = scmp.ne.s32.totalorder %s75, %s76
    %p90 = scmp.eq.s32.totalorder %s28, 1
    %p91 = por %p89, %p90
    %p93 = scmp.ne.s32.totalorder %s76, %s92
    %p94 = scmp.eq.s32.totalorder %s28, 0
    %p95 = por %p93, %p94
    %s97 = sadd.s32 %s96, 1
    %p100 = scmp.eq.s32.totalorder %s22, 1
    %p101 = scmp.ne.s32.totalorder %s96, %s98
    %p102 = scmp.eq.s32.totalorder %s22, 0
    %p103 = por %p101, %p102
    %p104 = scmp.ne.s32.totalorder %s96, %s98
    %p105 = scmp.eq.s32.totalorder %s27, 1
    %p106 = por %p104, %p105
    %p107 = scmp.ne.s32.totalorder %s98, %s99
    %p108 = scmp.eq.s32.totalorder %s27, 0
    %p109 = por %p107, %p108
    %p110 = scmp.ne.s32.totalorder %s98, %s99
    %p111 = scmp.eq.s32.totalorder %s28, 1
    %p112 = por %p110, %p111
    %p114 = scmp.ne.s32.totalorder %s99, %s113
    %p115 = scmp.eq.s32.totalorder %s28, 0
    %p116 = por %p114, %p115
    %s118 = sadd.s32 %s117, 1
    %p121 = scmp.eq.s32.totalorder %s22, 1
    %p122 = scmp.ne.s32.totalorder %s117, %s119
    %p123 = scmp.eq.s32.totalorder %s22, 0
    %p124 = por %p122, %p123
    %p125 = scmp.ne.s32.totalorder %s117, %s119
    %p126 = scmp.eq.s32.totalorder %s27, 1
    %p127 = por %p125, %p126
    %p128 = scmp.ne.s32.totalorder %s119, %s120
    %p129 = scmp.eq.s32.totalorder %s27, 0
    %p130 = por %p128, %p129
    %p131 = scmp.ne.s32.totalorder %s119, %s120
    %p132 = scmp.eq.s32.totalorder %s28, 1
    %p133 = por %p131, %p132
    %p135 = scmp.ne.s32.totalorder %s120, %s134
    %p136 = scmp.eq.s32.totalorder %s28, 0
    %p137 = por %p135, %p136
    %s139 = sadd.s32 %s138, 1
    %p142 = scmp.eq.s32.totalorder %s22, 1
    %p143 = scmp.ne.s32.totalorder %s138, %s140
    %p144 = scmp.eq.s32.totalorder %s22, 0
    %p145 = por %p143, %p144
    %p146 = scmp.ne.s32.totalorder %s138, %s140
    %p147 = scmp.eq.s32.totalorder %s27, 1
    %p148 = por %p146, %p147
    %p149 = scmp.ne.s32.totalorder %s140, %s141
    %p150 = scmp.eq.s32.totalorder %s27, 0
    %p151 = por %p149, %p150
    %p152 = scmp.ne.s32.totalorder %s140, %s141
    %p153 = scmp.eq.s32.totalorder %s28, 1
    %p154 = por %p152, %p153
    %p156 = scmp.ne.s32.totalorder %s141, %s155
    %p157 = scmp.eq.s32.totalorder %s28, 0
    %p158 = por %p156, %p157
    %s160 = sadd.s32 %s159, 1
    %p163 = scmp.eq.s32.totalorder %s22, 1
    %p164 = scmp.ne.s32.totalorder %s159, %s161
    %p165 = scmp.eq.s32.totalorder %s22, 0
    %p166 = por %p164, %p165
    %p167 = scmp.ne.s32.totalorder %s159, %s161
    %p168 = scmp.eq.s32.totalorder %s27, 1
    %p169 = por %p167, %p168
    %p170 = scmp.ne.s32.totalorder %s161, %s162
    %p171 = scmp.eq.s32.totalorder %s27, 0
    %p172 = por %p170, %p171
    %p173 = scmp.ne.s32.totalorder %s161, %s162
    %p174 = scmp.eq.s32.totalorder %s28, 1
    %p175 = por %p173, %p174
    %p177 = scmp.ne.s32.totalorder %s162, %s176
    %p178 = scmp.eq.s32.totalorder %s28, 0
    %p179 = por %p177, %p178
    %s181 = sadd.s32 %s180, 1
    %p184 = scmp.eq.s32.totalorder %s22, 1
    %p185 = scmp.ne.s32.totalorder %s180, %s182
    %p186 = scmp.eq.s32.totalorder %s22, 0
    %p187 = por %p185, %p186
    %p188 = scmp.ne.s32.totalorder %s180, %s182
    %p189 = scmp.eq.s32.totalorder %s27, 1
    %p190 = por %p188, %p189
    %p191 = scmp.ne.s32.totalorder %s182, %s183
    %p192 = scmp.eq.s32.totalorder %s27, 0
    %p193 = por %p191, %p192
    %p194 = scmp.ne.s32.totalorder %s182, %s183
    %p195 = scmp.eq.s32.totalorder %s28, 1
    %p196 = por %p194, %p195
    %p198 = scmp.ne.s32.totalorder %s183, %s197
    %p199 = scmp.eq.s32.totalorder %s28, 0
    %p200 = por %p198, %p199
    %s202 = sadd.s32 %s201, 1
    %p205 = scmp.eq.s32.totalorder %s22, 1
    %p206 = scmp.ne.s32.totalorder %s201, %s203
    %p207 = scmp.eq.s32.totalorder %s22, 0
    %p208 = por %p206, %p207
    %p209 = scmp.ne.s32.totalorder %s201, %s203
    %p210 = scmp.eq.s32.totalorder %s27, 1
    %p211 = por %p209, %p210
    %p212 = scmp.ne.s32.totalorder %s203, %s204
    %p213 = scmp.eq.s32.totalorder %s27, 0
    %p214 = por %p212, %p213
    %p215 = scmp.ne.s32.totalorder %s203, %s204
    %p216 = scmp.eq.s32.totalorder %s28, 1
    %p217 = por %p215, %p216
    %p219 = scmp.ne.s32.totalorder %s204, %s218
    %p220 = scmp.eq.s32.totalorder %s28, 0
    %p221 = por %p219, %p220
    %s223 = sadd.s32 %s222, 1
    %p226 = scmp.eq.s32.totalorder %s22, 1
    %p227 = scmp.ne.s32.totalorder %s222, %s224
    %p228 = scmp.eq.s32.totalorder %s22, 0
    %p229 = por %p227, %p228
    %p230 = scmp.ne.s32.totalorder %s222, %s224
    %p231 = scmp.eq.s32.totalorder %s27, 1
    %p232 = por %p230, %p231
    %p233 = scmp.ne.s32.totalorder %s224, %s225
    %p234 = scmp.eq.s32.totalorder %s27, 0
    %p235 = por %p233, %p234
    %p236 = scmp.ne.s32.totalorder %s224, %s225
    %p237 = scmp.eq.s32.totalorder %s28, 1
    %p238 = por %p236, %p237
    %p240 = scmp.ne.s32.totalorder %s225, %s239
    %p241 = scmp.eq.s32.totalorder %s28, 0
    %p242 = por %p240, %p241
    %s244 = sadd.s32 %s243, 1
    %p247 = scmp.eq.s32.totalorder %s22, 1
    %p248 = scmp.ne.s32.totalorder %s243, %s245
    %p249 = scmp.eq.s32.totalorder %s22, 0
    %p250 = por %p248, %p249
    %p251 = scmp.ne.s32.totalorder %s243, %s245
    %p252 = scmp.eq.s32.totalorder %s27, 1
    %p253 = por %p251, %p252
    %p254 = scmp.ne.s32.totalorder %s245, %s246
    %p255 = scmp.eq.s32.totalorder %s27, 0
    %p256 = por %p254, %p255
    %p257 = scmp.ne.s32.totalorder %s245, %s246
    %p258 = scmp.eq.s32.totalorder %s28, 1
    %p259 = por %p257, %p258
    %p261 = scmp.ne.s32.totalorder %s246, %s260
    %p262 = scmp.eq.s32.totalorder %s28, 0
    %p263 = por %p261, %p262
    %s265 = sadd.s32 %s264, 1
    %p268 = scmp.eq.s32.totalorder %s22, 1
    %p269 = scmp.ne.s32.totalorder %s264, %s266
    %p270 = scmp.eq.s32.totalorder %s22, 0
    %p271 = por %p269, %p270
    %p272 = scmp.ne.s32.totalorder %s264, %s266
    %p273 = scmp.eq.s32.totalorder %s27, 1
    %p274 = por %p272, %p273
    %p275 = scmp.ne.s32.totalorder %s266, %s267
    %p276 = scmp.eq.s32.totalorder %s27, 0
    %p277 = por %p275, %p276
    %p278 = scmp.ne.s32.totalorder %s266, %s267
    %p279 = scmp.eq.s32.totalorder %s28, 1
    %p280 = por %p278, %p279
    %p282 = scmp.ne.s32.totalorder %s267, %s281
    %p283 = scmp.eq.s32.totalorder %s28, 0
    %p284 = por %p282, %p283
    %s286 = sadd.s32 %s285, 1
    %p289 = scmp.eq.s32.totalorder %s22, 1
    %p290 = scmp.ne.s32.totalorder %s285, %s287
    %p291 = scmp.eq.s32.totalorder %s22, 0
    %p292 = por %p290, %p291
    %p293 = scmp.ne.s32.totalorder %s285, %s287
    %p294 = scmp.eq.s32.totalorder %s27, 1
    %p295 = por %p293, %p294
    %p296 = scmp.ne.s32.totalorder %s287, %s288
    %p297 = scmp.eq.s32.totalorder %s27, 0
    %p298 = por %p296, %p297
    %p299 = scmp.ne.s32.totalorder %s287, %s288
    %p300 = scmp.eq.s32.totalorder %s28, 1
    %p301 = por %p299, %p300
    %p303 = scmp.ne.s32.totalorder %s288, %s302
    %p304 = scmp.eq.s32.totalorder %s28, 0
    %p305 = por %p303, %p304
    %s307 = sadd.s32 %s306, 1
    %p310 = scmp.eq.s32.totalorder %s22, 1
    %p311 = scmp.ne.s32.totalorder %s306, %s308
    %p312 = scmp.eq.s32.totalorder %s22, 0
    %p313 = por %p311, %p312
    %p314 = scmp.ne.s32.totalorder %s306, %s308
    %p315 = scmp.eq.s32.totalorder %s27, 1
    %p316 = por %p314, %p315
    %p317 = scmp.ne.s32.totalorder %s308, %s309
    %p318 = scmp.eq.s32.totalorder %s27, 0
    %p319 = por %p317, %p318
    %p320 = scmp.ne.s32.totalorder %s308, %s309
    %p321 = scmp.eq.s32.totalorder %s28, 1
    %p322 = por %p320, %p321
    %p324 = scmp.ne.s32.totalorder %s309, %s323
    %p325 = scmp.eq.s32.totalorder %s28, 0
    %p326 = por %p324, %p325
    %s328 = sadd.s32 %s327, 1
    %p331 = scmp.eq.s32.totalorder %s22, 1
    %p332 = scmp.ne.s32.totalorder %s327, %s329
    %p333 = scmp.eq.s32.totalorder %s22, 0
    %p334 = por %p332, %p333
    %p335 = scmp.ne.s32.totalorder %s327, %s329
    %p336 = scmp.eq.s32.totalorder %s27, 1
    %p337 = por %p335, %p336
    %p338 = scmp.ne.s32.totalorder %s329, %s330
    %p339 = scmp.eq.s32.totalorder %s27, 0
    %p340 = por %p338, %p339
    %p341 = scmp.ne.s32.totalorder %s329, %s330
    %p342 = scmp.eq.s32.totalorder %s28, 1
    %p343 = por %p341, %p342
    %p345 = scmp.ne.s32.totalorder %s330, %s344
    %p346 = scmp.eq.s32.totalorder %s28, 0
    %p347 = por %p345, %p346
    %s349 = sadd.s32 %s348, 1
    %p352 = scmp.eq.s32.totalorder %s22, 1
    %p353 = scmp.ne.s32.totalorder %s348, %s350
    %p354 = scmp.eq.s32.totalorder %s22, 0
    %p355 = por %p353, %p354
    %p356 = scmp.ne.s32.totalorder %s348, %s350
    %p357 = scmp.eq.s32.totalorder %s27, 1
    %p358 = por %p356, %p357
    %p359 = scmp.ne.s32.totalorder %s350, %s351
    %p360 = scmp.eq.s32.totalorder %s27, 0
    %p361 = por %p359, %p360
    %p362 = scmp.ne.s32.totalorder %s350, %s351
    %p363 = scmp.eq.s32.totalorder %s28, 1
    %p364 = por %p362, %p363
    %p366 = scmp.ne.s32.totalorder %s351, %s365
    %p367 = scmp.eq.s32.totalorder %s28, 0
    %p368 = por %p366, %p367
    %s370 = sadd.s32 %s369, 1
    %p373 = scmp.eq.s32.totalorder %s22, 1
    %p374 = scmp.ne.s32.totalorder %s369, %s371
    %p375 = scmp.eq.s32.totalorder %s22, 0
    %p376 = por %p374, %p375
    %p377 = scmp.ne.s32.totalorder %s369, %s371
    %p378 = scmp.eq.s32.totalorder %s27, 1
    %p379 = por %p377, %p378
    %p380 = scmp.ne.s32.totalorder %s371, %s372
    %p381 = scmp.eq.s32.totalorder %s27, 0
    %p382 = por %p380, %p381
    %p383 = scmp.ne.s32.totalorder %s371, %s372
    %p384 = scmp.eq.s32.totalorder %s28, 1
    %p385 = por %p383, %p384
    %p387 = scmp.ne.s32.totalorder %s372, %s386
    %p388 = scmp.eq.s32.totalorder %s28, 0
    %p389 = por %p387, %p388
    %s390 = ssub.s32 %s29, %s41
    %s391 = ssub.s32 %s30, %s37
    %s392 = sor.u32 %s390, %s391
    %p393 = scmp.eq.s32.totalorder %s392, 0
    %s395 = sadd.s32 %s394, 1
    %s396 = scalar_select %p393, %s394, %s395
    %p399 = pneg %p393
    %p400 = scmp.eq.s32.totalorder %s22, 1
    %p401 = por %p399, %p400
    %p402 = scmp.ne.s32.totalorder %s394, %s397
    %p403 = scmp.eq.s32.totalorder %s22, 0
    %p404 = por %p402, %p403
    %p405 = scmp.ne.s32.totalorder %s394, %s397
    %p406 = scmp.eq.s32.totalorder %s27, 1
    %p407 = por %p405, %p406
    %p408 = scmp.ne.s32.totalorder %s397, %s398
    %p409 = scmp.eq.s32.totalorder %s27, 0
    %p410 = por %p408, %p409
    %p411 = scmp.ne.s32.totalorder %s397, %s398
    %p412 = scmp.eq.s32.totalorder %s28, 1
    %p413 = por %p411, %p412
    %p415 = scmp.ne.s32.totalorder %s398, %s414
    %p416 = scmp.eq.s32.totalorder %s28, 0
    %p417 = por %p415, %p416
    %p418 = scmp.le.s32.totalorder 1, %s22
    %p419 = scmp.lt.s32.totalorder %s22, 3
    %p420 = pnand %p418, %p419
    %p421 = pneg %p420
    // Predicated region
    $region9: #{_lambda_.5} parent=5 // pred_check
      _
    $region10: #{_lambda_.5} parent=5 // pred_check_branch
      %423 = sbr.rel (%p420) target = $region12
    $region11: #{_lambda_.5} parent=5 // pred_region
      %s424 = ssub.s32 %s22, 1
      // Predicated region
      $region13: #{_lambda_.5} parent=11 // pred_check
        %p425 = pneg %p109
      $region14: #{_lambda_.5} parent=11 // pred_check_branch
        %427 = sbr.rel (%p425) target = $region16
      $region15: #{_lambda_.5} parent=11 // pred_region
        _
      $region16: #{_lambda_.5} parent=11 // pred_fallthru
        _
      // Predicated region
      $region17: #{_lambda_.5} parent=11 // pred_check
        %p428 = pneg %p130
      $region18: #{_lambda_.5} parent=11 // pred_check_branch
        %430 = sbr.rel (%p428) target = $region20
      $region19: #{_lambda_.5} parent=11 // pred_region
        _
      $region20: #{_lambda_.5} parent=11 // pred_fallthru
        _
      // Predicated region
      $region21: #{_lambda_.5} parent=11 // pred_check
        %p431 = pneg %p151
      $region22: #{_lambda_.5} parent=11 // pred_check_branch
        %433 = sbr.rel (%p431) target = $region24
      $region23: #{_lambda_.5} parent=11 // pred_region
        _
      $region24: #{_lambda_.5} parent=11 // pred_fallthru
        _
      // Predicated region
      $region25: #{_lambda_.5} parent=11 // pred_check
        %p434 = pneg %p172
      $region26: #{_lambda_.5} parent=11 // pred_check_branch
        %436 = sbr.rel (%p434) target = $region28
      $region27: #{_lambda_.5} parent=11 // pred_region
        _
      $region28: #{_lambda_.5} parent=11 // pred_fallthru
        _
      // Predicated region
      $region29: #{_lambda_.5} parent=11 // pred_check
        %p437 = pneg %p193
      $region30: #{_lambda_.5} parent=11 // pred_check_branch
        %439 = sbr.rel (%p437) target = $region32
      $region31: #{_lambda_.5} parent=11 // pred_region
        _
      $region32: #{_lambda_.5} parent=11 // pred_fallthru
        _
      // Predicated region
      $region33: #{_lambda_.5} parent=11 // pred_check
        %p440 = pneg %p214
      $region34: #{_lambda_.5} parent=11 // pred_check_branch
        %442 = sbr.rel (%p440) target = $region36
      $region35: #{_lambda_.5} parent=11 // pred_region
        _
      $region36: #{_lambda_.5} parent=11 // pred_fallthru
        _
      // Predicated region
      $region37: #{_lambda_.5} parent=11 // pred_check
        %p443 = pneg %p235
      $region38: #{_lambda_.5} parent=11 // pred_check_branch
        %445 = sbr.rel (%p443) target = $region40
      $region39: #{_lambda_.5} parent=11 // pred_region
        _
      $region40: #{_lambda_.5} parent=11 // pred_fallthru
        _
      // Predicated region
      $region41: #{_lambda_.5} parent=11 // pred_check
        %p446 = pneg %p256
      $region42: #{_lambda_.5} parent=11 // pred_check_branch
        %448 = sbr.rel (%p446) target = $region44
      $region43: #{_lambda_.5} parent=11 // pred_region
        _
      $region44: #{_lambda_.5} parent=11 // pred_fallthru
        _
      // Predicated region
      $region45: #{_lambda_.5} parent=11 // pred_check
        %p449 = pneg %p277
      $region46: #{_lambda_.5} parent=11 // pred_check_branch
        %451 = sbr.rel (%p449) target = $region48
      $region47: #{_lambda_.5} parent=11 // pred_region
        _
      $region48: #{_lambda_.5} parent=11 // pred_fallthru
        _
      // Predicated region
      $region49: #{_lambda_.5} parent=11 // pred_check
        %p452 = pneg %p298
      $region50: #{_lambda_.5} parent=11 // pred_check_branch
        %454 = sbr.rel (%p452) target = $region52
      $region51: #{_lambda_.5} parent=11 // pred_region
        _
      $region52: #{_lambda_.5} parent=11 // pred_fallthru
        _
      // Predicated region
      $region53: #{_lambda_.5} parent=11 // pred_check
        %p455 = pneg %p319
      $region54: #{_lambda_.5} parent=11 // pred_check_branch
        %457 = sbr.rel (%p455) target = $region56
      $region55: #{_lambda_.5} parent=11 // pred_region
        _
      $region56: #{_lambda_.5} parent=11 // pred_fallthru
        _
      // Predicated region
      $region57: #{_lambda_.5} parent=11 // pred_check
        %p458 = pneg %p340
      $region58: #{_lambda_.5} parent=11 // pred_check_branch
        %460 = sbr.rel (%p458) target = $region60
      $region59: #{_lambda_.5} parent=11 // pred_region
        _
      $region60: #{_lambda_.5} parent=11 // pred_fallthru
        _
      // Predicated region
      $region61: #{_lambda_.5} parent=11 // pred_check
        %p461 = pneg %p361
      $region62: #{_lambda_.5} parent=11 // pred_check_branch
        %463 = sbr.rel (%p461) target = $region64
      $region63: #{_lambda_.5} parent=11 // pred_region
        _
      $region64: #{_lambda_.5} parent=11 // pred_fallthru
        _
      // Predicated region
      $region65: #{_lambda_.5} parent=11 // pred_check
        %p464 = pneg %p382
      $region66: #{_lambda_.5} parent=11 // pred_check_branch
        %466 = sbr.rel (%p464) target = $region68
      $region67: #{_lambda_.5} parent=11 // pred_region
        _
      $region68: #{_lambda_.5} parent=11 // pred_fallthru
        _
    $region12: #{_lambda_.5} parent=5 // pred_fallthru
      _
    %p467 = scmp.lt.s32.totalorder %s22, 2
    // Predicated region
    $region69: #{_lambda_.5} parent=5 // pred_check
      %p468 = pneg %p467
    $region70: #{_lambda_.5} parent=5 // pred_check_branch
      %470 = sbr.rel (%p468) target = $region72
    $region71: #{_lambda_.5} parent=5 // pred_region
      // Predicated region
      $region73: #{_lambda_.5} parent=71 // pred_check
        %p471 = pneg %p56
      $region74: #{_lambda_.5} parent=71 // pred_check_branch
        %473 = sbr.rel (%p471) target = $region76
      $region75: #{_lambda_.5} parent=71 // pred_region
        %p474 = scmp.lt.s32.totalorder %s29, 1
        %s475 = scalar_select %p474, %s29, 1
        %p476 = scmp.lt.s32.totalorder %s30, 0
        %s477 = scalar_select %p476, %s30, 0
        %s478 = sadd.s32 %s477, %s475
        %s479 = smul.addr %s478, 4
        %s480 = scalar_lea.vmem %s0, %s479
      $region76: #{_lambda_.5} parent=71 // pred_fallthru
        _
      // Predicated region
      $region77: #{_lambda_.5} parent=71 // pred_check
        %p481 = pneg %p82
      $region78: #{_lambda_.5} parent=71 // pred_check_branch
        %483 = sbr.rel (%p481) target = $region80
      $region79: #{_lambda_.5} parent=71 // pred_region
        %p484 = scmp.lt.s32.totalorder %s29, 1
        %s485 = scalar_select %p484, %s29, 1
        %s486 = smul.addr %s485, 8
        %s487 = smul.addr %s486, 4
        %s488 = scalar_lea.vmem %s1, %s487
      $region80: #{_lambda_.5} parent=71 // pred_fallthru
        _
    $region72: #{_lambda_.5} parent=5 // pred_fallthru
      _
    %p489 = scmp.le.s32.totalorder 1, %s22
    %p490 = scmp.lt.s32.totalorder %s22, 3
    %p491 = pnand %p489, %p490
    %p492 = pneg %p491
    // Predicated region
    $region81: #{_lambda_.5} parent=5 // pred_check
      _
    $region82: #{_lambda_.5} parent=5 // pred_check_branch
      %494 = sbr.rel (%p491) target = $region84
    $region83: #{_lambda_.5} parent=5 // pred_region
      %s495 = ssub.s32 %s22, 1
      %p496 = scmp.lt.s32.totalorder %s31, 1
      %s497 = scalar_select %p496, %s31, 1
      %p498 = scmp.lt.s32.totalorder %s32, 0
      %s499 = scalar_select %p498, %s32, 0
      %s500 = sadd.s32 %s499, %s497
      %s501 = smul.addr %s500, 4
      %s502 = scalar_lea.vmem %s0, %s501
      %p503 = pneg %p62
      %p504 = pneg %p59
      %p505 = scmp.lt.s32.totalorder %s31, 1
      %s506 = scalar_select %p505, %s31, 1
      %s507 = smul.addr %s506, 8
      %s508 = smul.addr %s507, 4
      %s509 = scalar_lea.vmem %s1, %s508
      %p510 = pneg %p88
      %p511 = pneg %p85
      %p512 = pneg %p109
      %p513 = pneg %p106
      %p514 = pneg %p130
      %p515 = pneg %p127
      %p516 = pneg %p151
      %p517 = pneg %p148
      %p518 = pneg %p172
      %p519 = pneg %p169
      %p520 = pneg %p193
      %p521 = pneg %p190
      %p522 = pneg %p214
      %p523 = pneg %p211
      %p524 = pneg %p235
      %p525 = pneg %p232
      %p526 = pneg %p256
      %p527 = pneg %p253
      %p528 = pneg %p277
      %p529 = pneg %p274
      %p530 = pneg %p298
      %p531 = pneg %p295
      %p532 = pneg %p319
      %p533 = pneg %p316
      %p534 = pneg %p340
      %p535 = pneg %p337
      %p536 = pneg %p361
      %p537 = pneg %p358
      %p538 = pneg %p382
      %p539 = pneg %p379
      %p540 = pneg %p410
      %p541 = pneg %p407
      %p542 = scmp.lt.s32.totalorder %s31, 1
      %s543 = scalar_select %p542, %s31, 1
      %p544 = scmp.lt.s32.totalorder %s32, 0
      %s545 = scalar_select %p544, %s32, 0
      %s546 = smul.addr %s543, 8
      %s547 = sadd.s32 %s545, %s546
      %s548 = smul.addr %s547, 8
      %s549 = scalar_lea.vmem %s16, %s548
      %p550 = scmp.lt.s32.totalorder %s31, 1
      %s551 = scalar_select %p550, %s31, 1
      %p552 = scmp.lt.s32.totalorder %s32, 0
      %s553 = scalar_select %p552, %s32, 0
      %s554 = sadd.s32 %s553, %s551
      %s555 = smul.addr %s554, 4
      %s556 = scalar_lea.vmem %s0, %s555
      %p557 = scmp.lt.s32.totalorder %s31, 1
      %s558 = scalar_select %p557, %s31, 1
      %s559 = smul.addr %s558, 8
      %s560 = smul.addr %s559, 4
      %s561 = scalar_lea.vmem %s1, %s560
      %p562 = scmp.lt.s32.totalorder %s31, 1
      %s563 = scalar_select %p562, %s31, 1
      %p564 = scmp.lt.s32.totalorder %s32, 0
      %s565 = scalar_select %p564, %s32, 0
      %s566 = smul.addr %s563, 8
      %s567 = sadd.s32 %s565, %s566
      %s568 = smul.addr %s567, 8
      %s569 = scalar_lea.vmem %s16, %s568
      %v571 = vld [vmem:[%s556] sm:$0x7]
      %v572 = vpack.c.bf16 %v571, %v571
      %v573 = vld [vmem:[%s561] sm:$0xf]
      %v574 = vld [vmem:[%s561 + $0x4] sm:$0xf]
      %v575 = vld [vmem:[%s561 + $0x8] sm:$0xf]
      %v576 = vld [vmem:[%s561 + $0xc] sm:$0xf]
      %v577 = vld [vmem:[%s561 + $0x10] sm:$0xf]
      %v578 = vld [vmem:[%s561 + $0x14] sm:$0xf]
      %v579 = vld [vmem:[%s561 + $0x18] sm:$0xf]
      %v580 = vld [vmem:[%s561 + $0x1c] sm:$0xf]
      %v589 = vunpack.c.l.b16 %v573
      %v590 = vunpack.c.l.b16 %v574
      %v591 = vunpack.c.l.b16 %v575
      %v592 = vunpack.c.l.b16 %v576
      %v593 = vunpack.c.l.b16 %v577
      %v594 = vunpack.c.l.b16 %v578
      %v595 = vunpack.c.l.b16 %v579
      %v596 = vunpack.c.l.b16 %v580
      %v597 = vpack.c.b16 %v590, %v589
      %v598 = vpack.c.b16 %v592, %v591
      %v599 = vpack.c.b16 %v594, %v593
      %v600 = vpack.c.b16 %v596, %v595
      %vm601 = vcmask 23552
      %v603 = vsel %vm601, %v597, 0
      %v606 = vsel %vm601, %v598, 0
      %v609 = vsel %vm601, %v599, 0
      %v612 = vsel %vm601, %v600, 0
      %vm614 = vcmask 1040384
      %vm615 = vcmask 1041408
      %v616 = vsel %vm614, 4294967295, 65535
      %v617 = vsel %vm615, %v616, 0
      %v619 = vand.u32 %v572, %v617
      %621 = vmatprep.subr.bf16.mxu0 0
      %622 = vmatpush1.bf16.msra.mxu0 %v619
      %623 = vmatprep.subr.bf16.mxu0 0
      %624 = vmatpush1.bf16.msra.mxu0 0
      %625 = vmatprep.subr.bf16.mxu0 0
      %626 = vmatpush1.bf16.msra.mxu0 0
      %627 = vmatprep.subr.bf16.mxu0 0
      %628 = vmatpush1.bf16.msra.mxu0 0
      %629 = vmatprep.subr.bf16.mxu0 0
      %630 = vmatpush1.bf16.msra.mxu0 0
      %631 = vmatprep.subr.bf16.mxu0 0
      %632 = vmatpush1.bf16.msra.mxu0 0
      %633 = vmatprep.subr.bf16.mxu0 0
      %634 = vmatpush1.bf16.msra.mxu0 0
      %635 = vmatprep.subr.bf16.mxu0 0
      %636 = vmatpush1.bf16.msra.mxu0 0
      %637 = vmatprep.subr.bf16.mxu0 0
      %638 = vmatpush1.bf16.msra.mxu0 0
      %639 = vmatprep.subr.bf16.mxu0 0
      %640 = vmatpush1.bf16.msra.mxu0 0
      %641 = vmatprep.subr.bf16.mxu0 0
      %642 = vmatpush1.bf16.msra.mxu0 0
      %643 = vmatprep.subr.bf16.mxu0 0
      %644 = vmatpush1.bf16.msra.mxu0 0
      %645 = vmatprep.subr.bf16.mxu0 0
      %646 = vmatpush1.bf16.msra.mxu0 0
      %647 = vmatprep.subr.bf16.mxu0 0
      %648 = vmatpush1.bf16.msra.mxu0 0
      %649 = vmatprep.subr.bf16.mxu0 0
      %650 = vmatpush1.bf16.msra.mxu0 0
      %651 = vmatprep.subr.bf16.mxu0 0
      %652 = vmatpush1.bf16.msra.mxu0 0
      %653 = vmatprep.mubr.bf16.mxu0 0
      %654 = vmatmul.mubr.bf16.gmra.mrb[0].mxu0 %v603
      %v655 = vpop.f32.mrb[0].mxu0
      %v656 = vadd.f32 0.0, %v655
      %v657 = vpop.f32.mrb[0].mxu0
      %v658 = vpop.f32.mrb[0].mxu0
      %v659 = vadd.f32 0.0, %v658
      %v660 = vpop.f32.mrb[0].mxu0
      %661 = vmatprep.mubr.bf16.mxu0 0
      %662 = vmatmul.mubr.bf16.gmra.mrb[0].mxu0 %v606
      %v663 = vpop.f32.mrb[0].mxu0
      %v664 = vadd.f32 0.0, %v663
      %v665 = vpop.f32.mrb[0].mxu0
      %v666 = vpop.f32.mrb[0].mxu0
      %v667 = vadd.f32 0.0, %v666
      %v668 = vpop.f32.mrb[0].mxu0
      %669 = vmatprep.mubr.bf16.mxu0 0
      %670 = vmatmul.mubr.bf16.gmra.mrb[0].mxu0 %v609
      %v671 = vpop.f32.mrb[0].mxu0
      %v672 = vadd.f32 0.0, %v671
      %v673 = vpop.f32.mrb[0].mxu0
      %v674 = vpop.f32.mrb[0].mxu0
      %v675 = vadd.f32 0.0, %v674
      %v676 = vpop.f32.mrb[0].mxu0
      %677 = vmatprep.mubr.bf16.mxu0 0
      %678 = vmatmul.mubr.bf16.gmra.mrb[0].mxu0 %v612
      %v679 = vpop.f32.mrb[0].mxu0
      %v680 = vadd.f32 0.0, %v679
      %v681 = vpop.f32.mrb[0].mxu0
      %v682 = vpop.f32.mrb[0].mxu0
      %v683 = vadd.f32 0.0, %v682
      %v684 = vpop.f32.mrb[0].mxu0
      %685 = vdwg.mxu0
      %v686 = vld [vmem:[%s2] sm:$0xff]
      %v687 = vld [vmem:[%s2 + $0x8] sm:$0xff]
      %v688 = vld [vmem:[%s2 + $0x10] sm:$0xff]
      %v689 = vld [vmem:[%s2 + $0x18] sm:$0xff]
      %v690 = vld [vmem:[%s2 + $0x20] sm:$0xff]
      %v691 = vld [vmem:[%s2 + $0x28] sm:$0xff]
      %v692 = vld [vmem:[%s2 + $0x30] sm:$0xff]
      %v693 = vld [vmem:[%s2 + $0x38] sm:$0xff]
      %695 = vset.pattern.permute.xlu0 0
      %696 = vperm.xlu0 %695, %v686
      %v697 = vpop.permute.xlu0 %696
      %700 = vset.pattern.permute.xlu0 0
      %701 = vperm.xlu0 %700, %v687
      %v702 = vpop.permute.xlu0 %701
      %705 = vset.pattern.permute.xlu0 0
      %706 = vperm.xlu0 %705, %v688
      %v707 = vpop.permute.xlu0 %706
      %710 = vset.pattern.permute.xlu0 0
      %711 = vperm.xlu0 %710, %v689
      %v712 = vpop.permute.xlu0 %711
      %715 = vset.pattern.permute.xlu0 0
      %716 = vperm.xlu0 %715, %v690
      %v717 = vpop.permute.xlu0 %716
      %720 = vset.pattern.permute.xlu0 0
      %721 = vperm.xlu0 %720, %v691
      %v722 = vpop.permute.xlu0 %721
      %725 = vset.pattern.permute.xlu0 0
      %726 = vperm.xlu0 %725, %v692
      %v727 = vpop.permute.xlu0 %726
      %730 = vset.pattern.permute.xlu0 0
      %731 = vperm.xlu0 %730, %v693
      %v732 = vpop.permute.xlu0 %731
      %v734 = vmul.f32 %v656, %v697
      %v735 = vmul.f32 %v659, %v702
      %v736 = vmul.f32 %v664, %v707
      %v737 = vmul.f32 %v667, %v712
      %v738 = vmul.f32 %v672, %v717
      %v739 = vmul.f32 %v675, %v722
      %v740 = vmul.f32 %v680, %v727
      %v741 = vmul.f32 %v683, %v732
      %v742 = vld [vmem:[%s3] sm:$0xff]
      %v743 = vld [vmem:[%s3 + $0x8] sm:$0xff]
      %v744 = vld [vmem:[%s3 + $0x10] sm:$0xff]
      %v745 = vld [vmem:[%s3 + $0x18] sm:$0xff]
      %v746 = vld [vmem:[%s3 + $0x20] sm:$0xff]
      %v747 = vld [vmem:[%s3 + $0x28] sm:$0xff]
      %v748 = vld [vmem:[%s3 + $0x30] sm:$0xff]
      %v749 = vld [vmem:[%s3 + $0x38] sm:$0xff]
      %751 = vset.pattern.permute.xlu0 0
      %752 = vperm.xlu0 %751, %v742
      %v753 = vpop.permute.xlu0 %752
      %756 = vset.pattern.permute.xlu0 0
      %757 = vperm.xlu0 %756, %v743
      %v758 = vpop.permute.xlu0 %757
      %761 = vset.pattern.permute.xlu0 0
      %762 = vperm.xlu0 %761, %v744
      %v763 = vpop.permute.xlu0 %762
      %766 = vset.pattern.permute.xlu0 0
      %767 = vperm.xlu0 %766, %v745
      %v768 = vpop.permute.xlu0 %767
      %771 = vset.pattern.permute.xlu0 0
      %772 = vperm.xlu0 %771, %v746
      %v773 = vpop.permute.xlu0 %772
      %776 = vset.pattern.permute.xlu0 0
      %777 = vperm.xlu0 %776, %v747
      %v778 = vpop.permute.xlu0 %777
      %781 = vset.pattern.permute.xlu0 0
      %782 = vperm.xlu0 %781, %v748
      %v783 = vpop.permute.xlu0 %782
      %786 = vset.pattern.permute.xlu0 0
      %787 = vperm.xlu0 %786, %v749
      %v788 = vpop.permute.xlu0 %787
      %v790 = vadd.f32 %v734, %v753
      %v791 = vadd.f32 %v735, %v758
      %v792 = vadd.f32 %v736, %v763
      %v793 = vadd.f32 %v737, %v768
      %v794 = vadd.f32 %v738, %v773
      %v795 = vadd.f32 %v739, %v778
      %v796 = vadd.f32 %v740, %v783
      %v797 = vadd.f32 %v741, %v788
      %v798 = vmax.f32 %v790, 0.0
      %v799 = vmax.f32 %v791, 0.0
      %v800 = vmax.f32 %v792, 0.0
      %v801 = vmax.f32 %v793, 0.0
      %v802 = vmax.f32 %v794, 0.0
      %v803 = vmax.f32 %v795, 0.0
      %v804 = vmax.f32 %v796, 0.0
      %v805 = vmax.f32 %v797, 0.0
      %v806 = vld [vmem:[%s4] sm:$0xf]
      %v807 = vld [vmem:[%s4 + $0x4] sm:$0xf]
      %v808 = vld [vmem:[%s4 + $0x8] sm:$0xf]
      %v809 = vld [vmem:[%s4 + $0xc] sm:$0xf]
      %v810 = vld [vmem:[%s4 + $0x10] sm:$0xf]
      %v811 = vld [vmem:[%s4 + $0x14] sm:$0xf]
      %v812 = vld [vmem:[%s4 + $0x18] sm:$0xf]
      %v813 = vld [vmem:[%s4 + $0x1c] sm:$0xf]
      %v814 = vpack.c.bf16 %v799, %v798
      %v815 = vpack.c.bf16 %v801, %v800
      %v816 = vpack.c.bf16 %v803, %v802
      %v817 = vpack.c.bf16 %v805, %v804
      %v826 = vunpack.c.l.b16 %v806
      %v827 = vunpack.c.l.b16 %v807
      %v828 = vunpack.c.l.b16 %v808
      %v829 = vunpack.c.l.b16 %v809
      %v830 = vunpack.c.l.b16 %v810
      %v831 = vunpack.c.l.b16 %v811
      %v832 = vunpack.c.l.b16 %v812
      %v833 = vunpack.c.l.b16 %v813
      %v834 = vpack.c.b16 %v827, %v826
      %v835 = vpack.c.b16 %v829, %v828
      %v836 = vpack.c.b16 %v831, %v830
      %v837 = vpack.c.b16 %v833, %v832
      %vm838 = vcmask 523264
      %v840 = vsel %vm838, %v834, 0
      %v843 = vsel %vm838, %v835, 0
      %v846 = vsel %vm838, %v836, 0
      %v849 = vsel %vm838, %v837, 0
      %851 = vmatprep.subr.bf16.mxu0 0
      %852 = vmatpush1.bf16.msra.mxu0 %v814
      %853 = vmatprep.subr.bf16.mxu0 0
      %854 = vmatpush1.bf16.msra.mxu0 %v815
      %855 = vmatprep.subr.bf16.mxu0 0
      %856 = vmatpush1.bf16.msra.mxu0 %v816
      %857 = vmatprep.subr.bf16.mxu0 0
      %858 = vmatpush1.bf16.msra.mxu0 %v817
      %859 = vmatprep.subr.bf16.mxu0 0
      %860 = vmatpush1.bf16.msra.mxu0 0
      %861 = vmatprep.subr.bf16.mxu0 0
      %862 = vmatpush1.bf16.msra.mxu0 0
      %863 = vmatprep.subr.bf16.mxu0 0
      %864 = vmatpush1.bf16.msra.mxu0 0
      %865 = vmatprep.subr.bf16.mxu0 0
      %866 = vmatpush1.bf16.msra.mxu0 0
      %867 = vmatprep.subr.bf16.mxu0 0
      %868 = vmatpush1.bf16.msra.mxu0 0
      %869 = vmatprep.subr.bf16.mxu0 0
      %870 = vmatpush1.bf16.msra.mxu0 0
      %871 = vmatprep.subr.bf16.mxu0 0
      %872 = vmatpush1.bf16.msra.mxu0 0
      %873 = vmatprep.subr.bf16.mxu0 0
      %874 = vmatpush1.bf16.msra.mxu0 0
      %875 = vmatprep.subr.bf16.mxu0 0
      %876 = vmatpush1.bf16.msra.mxu0 0
      %877 = vmatprep.subr.bf16.mxu0 0
      %878 = vmatpush1.bf16.msra.mxu0 0
      %879 = vmatprep.subr.bf16.mxu0 0
      %880 = vmatpush1.bf16.msra.mxu0 0
      %881 = vmatprep.subr.bf16.mxu0 0
      %882 = vmatpush1.bf16.msra.mxu0 0
      %883 = vmatprep.mubr.bf16.mxu0 0
      %884 = vmatmul.mubr.bf16.gmra.mrb[0].mxu0 %v840
      %v885 = vpop.f32.mrb[0].mxu0
      %v886 = vadd.f32 0.0, %v885
      %v887 = vpop.f32.mrb[0].mxu0
      %v888 = vpop.f32.mrb[0].mxu0
      %v889 = vadd.f32 0.0, %v888
      %v890 = vpop.f32.mrb[0].mxu0
      %891 = vmatprep.mubr.bf16.mxu0 0
      %892 = vmatmul.mubr.bf16.gmra.mrb[0].mxu0 %v843
      %v893 = vpop.f32.mrb[0].mxu0
      %v894 = vadd.f32 0.0, %v893
      %v895 = vpop.f32.mrb[0].mxu0
      %v896 = vpop.f32.mrb[0].mxu0
      %v897 = vadd.f32 0.0, %v896
      %v898 = vpop.f32.mrb[0].mxu0
      %899 = vmatprep.mubr.bf16.mxu0 0
      %900 = vmatmul.mubr.bf16.gmra.mrb[0].mxu0 %v846
      %v901 = vpop.f32.mrb[0].mxu0
      %v902 = vadd.f32 0.0, %v901
      %v903 = vpop.f32.mrb[0].mxu0
      %v904 = vpop.f32.mrb[0].mxu0
      %v905 = vadd.f32 0.0, %v904
      %v906 = vpop.f32.mrb[0].mxu0
      %907 = vmatprep.mubr.bf16.mxu0 0
      %908 = vmatmul.mubr.bf16.gmra.mrb[0].mxu0 %v849
      %v909 = vpop.f32.mrb[0].mxu0
      %v910 = vadd.f32 0.0, %v909
      %v911 = vpop.f32.mrb[0].mxu0
      %v912 = vpop.f32.mrb[0].mxu0
      %v913 = vadd.f32 0.0, %v912
      %v914 = vpop.f32.mrb[0].mxu0
      %915 = vdwg.mxu0
      %v916 = vld [vmem:[%s5] sm:$0xff]
      %v917 = vld [vmem:[%s5 + $0x8] sm:$0xff]
      %v918 = vld [vmem:[%s5 + $0x10] sm:$0xff]
      %v919 = vld [vmem:[%s5 + $0x18] sm:$0xff]
      %v920 = vld [vmem:[%s5 + $0x20] sm:$0xff]
      %v921 = vld [vmem:[%s5 + $0x28] sm:$0xff]
      %v922 = vld [vmem:[%s5 + $0x30] sm:$0xff]
      %v923 = vld [vmem:[%s5 + $0x38] sm:$0xff]
      %925 = vset.pattern.permute.xlu0 0
      %926 = vperm.xlu0 %925, %v916
      %v927 = vpop.permute.xlu0 %926
      %930 = vset.pattern.permute.xlu0 0
      %931 = vperm.xlu0 %930, %v917
      %v932 = vpop.permute.xlu0 %931
      %935 = vset.pattern.permute.xlu0 0
      %936 = vperm.xlu0 %935, %v918
      %v937 = vpop.permute.xlu0 %936
      %940 = vset.pattern.permute.xlu0 0
      %941 = vperm.xlu0 %940, %v919
      %v942 = vpop.permute.xlu0 %941
      %945 = vset.pattern.permute.xlu0 0
      %946 = vperm.xlu0 %945, %v920
      %v947 = vpop.permute.xlu0 %946
      %950 = vset.pattern.permute.xlu0 0
      %951 = vperm.xlu0 %950, %v921
      %v952 = vpop.permute.xlu0 %951
      %955 = vset.pattern.permute.xlu0 0
      %956 = vperm.xlu0 %955, %v922
      %v957 = vpop.permute.xlu0 %956
      %960 = vset.pattern.permute.xlu0 0
      %961 = vperm.xlu0 %960, %v923
      %v962 = vpop.permute.xlu0 %961
      %v964 = vmul.f32 %v886, %v927
      %v965 = vmul.f32 %v889, %v932
      %v966 = vmul.f32 %v894, %v937
      %v967 = vmul.f32 %v897, %v942
      %v968 = vmul.f32 %v902, %v947
      %v969 = vmul.f32 %v905, %v952
      %v970 = vmul.f32 %v910, %v957
      %v971 = vmul.f32 %v913, %v962
      %v972 = vld [vmem:[%s6] sm:$0xff]
      %v973 = vld [vmem:[%s6 + $0x8] sm:$0xff]
      %v974 = vld [vmem:[%s6 + $0x10] sm:$0xff]
      %v975 = vld [vmem:[%s6 + $0x18] sm:$0xff]
      %v976 = vld [vmem:[%s6 + $0x20] sm:$0xff]
      %v977 = vld [vmem:[%s6 + $0x28] sm:$0xff]
      %v978 = vld [vmem:[%s6 + $0x30] sm:$0xff]
      %v979 = vld [vmem:[%s6 + $0x38] sm:$0xff]
      %981 = vset.pattern.permute.xlu0 0
      %982 = vperm.xlu0 %981, %v972
      %v983 = vpop.permute.xlu0 %982
      %986 = vset.pattern.permute.xlu0 0
      %987 = vperm.xlu0 %986, %v973
      %v988 = vpop.permute.xlu0 %987
      %991 = vset.pattern.permute.xlu0 0
      %992 = vperm.xlu0 %991, %v974
      %v993 = vpop.permute.xlu0 %992
      %996 = vset.pattern.permute.xlu0 0
      %997 = vperm.xlu0 %996, %v975
      %v998 = vpop.permute.xlu0 %997
      %1001 = vset.pattern.permute.xlu0 0
      %1002 = vperm.xlu0 %1001, %v976
      %v1003 = vpop.permute.xlu0 %1002
      %1006 = vset.pattern.permute.xlu0 0
      %1007 = vperm.xlu0 %1006, %v977
      %v1008 = vpop.permute.xlu0 %1007
      %1011 = vset.pattern.permute.xlu0 0
      %1012 = vperm.xlu0 %1011, %v978
      %v1013 = vpop.permute.xlu0 %1012
      %1016 = vset.pattern.permute.xlu0 0
      %1017 = vperm.xlu0 %1016, %v979
      %v1018 = vpop.permute.xlu0 %1017
      %v1020 = vadd.f32 %v964, %v983
      %v1021 = vadd.f32 %v965, %v988
      %v1022 = vadd.f32 %v966, %v993
      %v1023 = vadd.f32 %v967, %v998
      %v1024 = vadd.f32 %v968, %v1003
      %v1025 = vadd.f32 %v969, %v1008
      %v1026 = vadd.f32 %v970, %v1013
      %v1027 = vadd.f32 %v971, %v1018
      %v1028 = vmax.f32 %v1020, 0.0
      %v1029 = vmax.f32 %v1021, 0.0
      %v1030 = vmax.f32 %v1022, 0.0
      %v1031 = vmax.f32 %v1023, 0.0
      %v1032 = vmax.f32 %v1024, 0.0
      %v1033 = vmax.f32 %v1025, 0.0
      %v1034 = vmax.f32 %v1026, 0.0
      %v1035 = vmax.f32 %v1027, 0.0
      %v1036 = vld [vmem:[%s7] sm:$0xf]
      %v1037 = vld [vmem:[%s7 + $0x4] sm:$0xf]
      %v1038 = vld [vmem:[%s7 + $0x8] sm:$0xf]
      %v1039 = vld [vmem:[%s7 + $0xc] sm:$0xf]
      %v1040 = vld [vmem:[%s7 + $0x10] sm:$0xf]
      %v1041 = vld [vmem:[%s7 + $0x14] sm:$0xf]
      %v1042 = vld [vmem:[%s7 + $0x18] sm:$0xf]
      %v1043 = vld [vmem:[%s7 + $0x1c] sm:$0xf]
      %v1044 = vpack.c.bf16 %v1029, %v1028
      %v1045 = vpack.c.bf16 %v1031, %v1030
      %v1046 = vpack.c.bf16 %v1033, %v1032
      %v1047 = vpack.c.bf16 %v1035, %v1034
      %v1056 = vunpack.c.l.b16 %v1036
      %v1057 = vunpack.c.l.b16 %v1037
      %v1058 = vunpack.c.l.b16 %v1038
      %v1059 = vunpack.c.l.b16 %v1039
      %v1060 = vunpack.c.l.b16 %v1040
      %v1061 = vunpack.c.l.b16 %v1041
      %v1062 = vunpack.c.l.b16 %v1042
      %v1063 = vunpack.c.l.b16 %v1043
      %v1064 = vpack.c.b16 %v1057, %v1056
      %v1065 = vpack.c.b16 %v1059, %v1058
      %v1066 = vpack.c.b16 %v1061, %v1060
      %v1067 = vpack.c.b16 %v1063, %v1062
      %v1069 = vsel %vm838, %v1064, 0
      %v1072 = vsel %vm838, %v1065, 0
      %v1075 = vsel %vm838, %v1066, 0
      %v1078 = vsel %vm838, %v1067, 0
      %1080 = vmatprep.subr.bf16.mxu0 0
      %1081 = vmatpush1.bf16.msra.mxu0 %v1044
      %1082 = vmatprep.subr.bf16.mxu0 0
      %1083 = vmatpush1.bf16.msra.mxu0 %v1045
      %1084 = vmatprep.subr.bf16.mxu0 0
      %1085 = vmatpush1.bf16.msra.mxu0 %v1046
      %1086 = vmatprep.subr.bf16.mxu0 0
      %1087 = vmatpush1.bf16.msra.mxu0 %v1047
      %1088 = vmatprep.subr.bf16.mxu0 0
      %1089 = vmatpush1.bf16.msra.mxu0 0
      %1090 = vmatprep.subr.bf16.mxu0 0
      %1091 = vmatpush1.bf16.msra.mxu0 0
      %1092 = vmatprep.subr.bf16.mxu0 0
      %1093 = vmatpush1.bf16.msra.mxu0 0
      %1094 = vmatprep.subr.bf16.mxu0 0
      %1095 = vmatpush1.bf16.msra.mxu0 0
      %1096 = vmatprep.subr.bf16.mxu0 0
      %1097 = vmatpush1.bf16.msra.mxu0 0
      %1098 = vmatprep.subr.bf16.mxu0 0
      %1099 = vmatpush1.bf16.msra.mxu0 0
      %1100 = vmatprep.subr.bf16.mxu0 0
      %1101 = vmatpush1.bf16.msra.mxu0 0
      %1102 = vmatprep.subr.bf16.mxu0 0
      %1103 = vmatpush1.bf16.msra.mxu0 0
      %1104 = vmatprep.subr.bf16.mxu0 0
      %1105 = vmatpush1.bf16.msra.mxu0 0
      %1106 = vmatprep.subr.bf16.mxu0 0
      %1107 = vmatpush1.bf16.msra.mxu0 0
      %1108 = vmatprep.subr.bf16.mxu0 0
      %1109 = vmatpush1.bf16.msra.mxu0 0
      %1110 = vmatprep.subr.bf16.mxu0 0
      %1111 = vmatpush1.bf16.msra.mxu0 0
      %1112 = vmatprep.mubr.bf16.mxu0 0
      %1113 = vmatmul.mubr.bf16.gmra.mrb[0].mxu0 %v1069
      %v1114 = vpop.f32.mrb[0].mxu0
      %v1115 = vadd.f32 0.0, %v1114
      %v1116 = vpop.f32.mrb[0].mxu0
      %v1117 = vpop.f32.mrb[0].mxu0
      %v1118 = vadd.f32 0.0, %v1117
      %v1119 = vpop.f32.mrb[0].mxu0
      %1120 = vmatprep.mubr.bf16.mxu0 0
      %1121 = vmatmul.mubr.bf16.gmra.mrb[0].mxu0 %v1072
      %v1122 = vpop.f32.mrb[0].mxu0
      %v1123 = vadd.f32 0.0, %v1122
      %v1124 = vpop.f32.mrb[0].mxu0
      %v1125 = vpop.f32.mrb[0].mxu0
      %v1126 = vadd.f32 0.0, %v1125
      %v1127 = vpop.f32.mrb[0].mxu0
      %1128 = vmatprep.mubr.bf16.mxu0 0
      %1129 = vmatmul.mubr.bf16.gmra.mrb[0].mxu0 %v1075
      %v1130 = vpop.f32.mrb[0].mxu0
      %v1131 = vadd.f32 0.0, %v1130
      %v1132 = vpop.f32.mrb[0].mxu0
      %v1133 = vpop.f32.mrb[0].mxu0
      %v1134 = vadd.f32 0.0, %v1133
      %v1135 = vpop.f32.mrb[0].mxu0
      %1136 = vmatprep.mubr.bf16.mxu0 0
      %1137 = vmatmul.mubr.bf16.gmra.mrb[0].mxu0 %v1078
      %v1138 = vpop.f32.mrb[0].mxu0
      %v1139 = vadd.f32 0.0, %v1138
      %v1140 = vpop.f32.mrb[0].mxu0
      %v1141 = vpop.f32.mrb[0].mxu0
      %v1142 = vadd.f32 0.0, %v1141
      %v1143 = vpop.f32.mrb[0].mxu0
      %1144 = vdwg.mxu0
      %v1145 = vld [vmem:[%s8] sm:$0xff]
      %v1146 = vld [vmem:[%s8 + $0x8] sm:$0xff]
      %v1147 = vld [vmem:[%s8 + $0x10] sm:$0xff]
      %v1148 = vld [vmem:[%s8 + $0x18] sm:$0xff]
      %v1149 = vld [vmem:[%s8 + $0x20] sm:$0xff]
      %v1150 = vld [vmem:[%s8 + $0x28] sm:$0xff]
      %v1151 = vld [vmem:[%s8 + $0x30] sm:$0xff]
      %v1152 = vld [vmem:[%s8 + $0x38] sm:$0xff]
      %1154 = vset.pattern.permute.xlu0 0
      %1155 = vperm.xlu0 %1154, %v1145
      %v1156 = vpop.permute.xlu0 %1155
      %1159 = vset.pattern.permute.xlu0 0
      %1160 = vperm.xlu0 %1159, %v1146
      %v1161 = vpop.permute.xlu0 %1160
      %1164 = vset.pattern.permute.xlu0 0
      %1165 = vperm.xlu0 %1164, %v1147
      %v1166 = vpop.permute.xlu0 %1165
      %1169 = vset.pattern.permute.xlu0 0
      %1170 = vperm.xlu0 %1169, %v1148
      %v1171 = vpop.permute.xlu0 %1170
      %1174 = vset.pattern.permute.xlu0 0
      %1175 = vperm.xlu0 %1174, %v1149
      %v1176 = vpop.permute.xlu0 %1175
      %1179 = vset.pattern.permute.xlu0 0
      %1180 = vperm.xlu0 %1179, %v1150
      %v1181 = vpop.permute.xlu0 %1180
      %1184 = vset.pattern.permute.xlu0 0
      %1185 = vperm.xlu0 %1184, %v1151
      %v1186 = vpop.permute.xlu0 %1185
      %1189 = vset.pattern.permute.xlu0 0
      %1190 = vperm.xlu0 %1189, %v1152
      %v1191 = vpop.permute.xlu0 %1190
      %v1193 = vmul.f32 %v1115, %v1156
      %v1194 = vmul.f32 %v1118, %v1161
      %v1195 = vmul.f32 %v1123, %v1166
      %v1196 = vmul.f32 %v1126, %v1171
      %v1197 = vmul.f32 %v1131, %v1176
      %v1198 = vmul.f32 %v1134, %v1181
      %v1199 = vmul.f32 %v1139, %v1186
      %v1200 = vmul.f32 %v1142, %v1191
      %v1201 = vld [vmem:[%s9] sm:$0xff]
      %v1202 = vld [vmem:[%s9 + $0x8] sm:$0xff]
      %v1203 = vld [vmem:[%s9 + $0x10] sm:$0xff]
      %v1204 = vld [vmem:[%s9 + $0x18] sm:$0xff]
      %v1205 = vld [vmem:[%s9 + $0x20] sm:$0xff]
      %v1206 = vld [vmem:[%s9 + $0x28] sm:$0xff]
      %v1207 = vld [vmem:[%s9 + $0x30] sm:$0xff]
      %v1208 = vld [vmem:[%s9 + $0x38] sm:$0xff]
      %1210 = vset.pattern.permute.xlu0 0
      %1211 = vperm.xlu0 %1210, %v1201
      %v1212 = vpop.permute.xlu0 %1211
      %1215 = vset.pattern.permute.xlu0 0
      %1216 = vperm.xlu0 %1215, %v1202
      %v1217 = vpop.permute.xlu0 %1216
      %1220 = vset.pattern.permute.xlu0 0
      %1221 = vperm.xlu0 %1220, %v1203
      %v1222 = vpop.permute.xlu0 %1221
      %1225 = vset.pattern.permute.xlu0 0
      %1226 = vperm.xlu0 %1225, %v1204
      %v1227 = vpop.permute.xlu0 %1226
      %1230 = vset.pattern.permute.xlu0 0
      %1231 = vperm.xlu0 %1230, %v1205
      %v1232 = vpop.permute.xlu0 %1231
      %1235 = vset.pattern.permute.xlu0 0
      %1236 = vperm.xlu0 %1235, %v1206
      %v1237 = vpop.permute.xlu0 %1236
      %1240 = vset.pattern.permute.xlu0 0
      %1241 = vperm.xlu0 %1240, %v1207
      %v1242 = vpop.permute.xlu0 %1241
      %1245 = vset.pattern.permute.xlu0 0
      %1246 = vperm.xlu0 %1245, %v1208
      %v1247 = vpop.permute.xlu0 %1246
      %v1249 = vadd.f32 %v1193, %v1212
      %v1250 = vadd.f32 %v1194, %v1217
      %v1251 = vadd.f32 %v1195, %v1222
      %v1252 = vadd.f32 %v1196, %v1227
      %v1253 = vadd.f32 %v1197, %v1232
      %v1254 = vadd.f32 %v1198, %v1237
      %v1255 = vadd.f32 %v1199, %v1242
      %v1256 = vadd.f32 %v1200, %v1247
      %v1257 = vmax.f32 %v1249, 0.0
      %v1258 = vmax.f32 %v1250, 0.0
      %v1259 = vmax.f32 %v1251, 0.0
      %v1260 = vmax.f32 %v1252, 0.0
      %v1261 = vmax.f32 %v1253, 0.0
      %v1262 = vmax.f32 %v1254, 0.0
      %v1263 = vmax.f32 %v1255, 0.0
      %v1264 = vmax.f32 %v1256, 0.0
      %v1265 = vld [vmem:[%s10] sm:$0xf]
      %v1266 = vld [vmem:[%s10 + $0x4] sm:$0xf]
      %v1267 = vld [vmem:[%s10 + $0x8] sm:$0xf]
      %v1268 = vld [vmem:[%s10 + $0xc] sm:$0xf]
      %v1269 = vld [vmem:[%s10 + $0x10] sm:$0xf]
      %v1270 = vld [vmem:[%s10 + $0x14] sm:$0xf]
      %v1271 = vld [vmem:[%s10 + $0x18] sm:$0xf]
      %v1272 = vld [vmem:[%s10 + $0x1c] sm:$0xf]
      %v1273 = vpack.c.bf16 %v1258, %v1257
      %v1274 = vpack.c.bf16 %v1260, %v1259
      %v1275 = vpack.c.bf16 %v1262, %v1261
      %v1276 = vpack.c.bf16 %v1264, %v1263
      %v1285 = vunpack.c.l.b16 %v1265
      %v1286 = vunpack.c.l.b16 %v1266
      %v1287 = vunpack.c.l.b16 %v1267
      %v1288 = vunpack.c.l.b16 %v1268
      %v1289 = vunpack.c.l.b16 %v1269
      %v1290 = vunpack.c.l.b16 %v1270
      %v1291 = vunpack.c.l.b16 %v1271
      %v1292 = vunpack.c.l.b16 %v1272
      %v1293 = vpack.c.b16 %v1286, %v1285
      %v1294 = vpack.c.b16 %v1288, %v1287
      %v1295 = vpack.c.b16 %v1290, %v1289
      %v1296 = vpack.c.b16 %v1292, %v1291
      %v1298 = vsel %vm838, %v1293, 0
      %v1301 = vsel %vm838, %v1294, 0
      %v1304 = vsel %vm838, %v1295, 0
      %v1307 = vsel %vm838, %v1296, 0
      %1309 = vmatprep.subr.bf16.mxu0 0
      %1310 = vmatpush1.bf16.msra.mxu0 %v1273
      %1311 = vmatprep.subr.bf16.mxu0 0
      %1312 = vmatpush1.bf16.msra.mxu0 %v1274
      %1313 = vmatprep.subr.bf16.mxu0 0
      %1314 = vmatpush1.bf16.msra.mxu0 %v1275
      %1315 = vmatprep.subr.bf16.mxu0 0
      %1316 = vmatpush1.bf16.msra.mxu0 %v1276
      %1317 = vmatprep.subr.bf16.mxu0 0
      %1318 = vmatpush1.bf16.msra.mxu0 0
      %1319 = vmatprep.subr.bf16.mxu0 0
      %1320 = vmatpush1.bf16.msra.mxu0 0
      %1321 = vmatprep.subr.bf16.mxu0 0
      %1322 = vmatpush1.bf16.msra.mxu0 0
      %1323 = vmatprep.subr.bf16.mxu0 0
      %1324 = vmatpush1.bf16.msra.mxu0 0
      %1325 = vmatprep.subr.bf16.mxu0 0
      %1326 = vmatpush1.bf16.msra.mxu0 0
      %1327 = vmatprep.subr.bf16.mxu0 0
      %1328 = vmatpush1.bf16.msra.mxu0 0
      %1329 = vmatprep.subr.bf16.mxu0 0
      %1330 = vmatpush1.bf16.msra.mxu0 0
      %1331 = vmatprep.subr.bf16.mxu0 0
      %1332 = vmatpush1.bf16.msra.mxu0 0
      %1333 = vmatprep.subr.bf16.mxu0 0
      %1334 = vmatpush1.bf16.msra.mxu0 0
      %1335 = vmatprep.subr.bf16.mxu0 0
      %1336 = vmatpush1.bf16.msra.mxu0 0
      %1337 = vmatprep.subr.bf16.mxu0 0
      %1338 = vmatpush1.bf16.msra.mxu0 0
      %1339 = vmatprep.subr.bf16.mxu0 0
      %1340 = vmatpush1.bf16.msra.mxu0 0
      %1341 = vmatprep.mubr.bf16.mxu0 0
      %1342 = vmatmul.mubr.bf16.gmra.mrb[0].mxu0 %v1298
      %v1343 = vpop.f32.mrb[0].mxu0
      %v1344 = vadd.f32 0.0, %v1343
      %v1345 = vpop.f32.mrb[0].mxu0
      %v1346 = vpop.f32.mrb[0].mxu0
      %v1347 = vadd.f32 0.0, %v1346
      %v1348 = vpop.f32.mrb[0].mxu0
      %1349 = vmatprep.mubr.bf16.mxu0 0
      %1350 = vmatmul.mubr.bf16.gmra.mrb[0].mxu0 %v1301
      %v1351 = vpop.f32.mrb[0].mxu0
      %v1352 = vadd.f32 0.0, %v1351
      %v1353 = vpop.f32.mrb[0].mxu0
      %v1354 = vpop.f32.mrb[0].mxu0
      %v1355 = vadd.f32 0.0, %v1354
      %v1356 = vpop.f32.mrb[0].mxu0
      %1357 = vmatprep.mubr.bf16.mxu0 0
      %1358 = vmatmul.mubr.bf16.gmra.mrb[0].mxu0 %v1304
      %v1359 = vpop.f32.mrb[0].mxu0
      %v1360 = vadd.f32 0.0, %v1359
      %v1361 = vpop.f32.mrb[0].mxu0
      %v1362 = vpop.f32.mrb[0].mxu0
      %v1363 = vadd.f32 0.0, %v1362
      %v1364 = vpop.f32.mrb[0].mxu0
      %1365 = vmatprep.mubr.bf16.mxu0 0
      %1366 = vmatmul.mubr.bf16.gmra.mrb[0].mxu0 %v1307
      %v1367 = vpop.f32.mrb[0].mxu0
      %v1368 = vadd.f32 0.0, %v1367
      %v1369 = vpop.f32.mrb[0].mxu0
      %v1370 = vpop.f32.mrb[0].mxu0
      %v1371 = vadd.f32 0.0, %v1370
      %v1372 = vpop.f32.mrb[0].mxu0
      %1373 = vdwg.mxu0
      %v1374 = vld [vmem:[%s11] sm:$0xff]
      %v1375 = vld [vmem:[%s11 + $0x8] sm:$0xff]
      %v1376 = vld [vmem:[%s11 + $0x10] sm:$0xff]
      %v1377 = vld [vmem:[%s11 + $0x18] sm:$0xff]
      %v1378 = vld [vmem:[%s11 + $0x20] sm:$0xff]
      %v1379 = vld [vmem:[%s11 + $0x28] sm:$0xff]
      %v1380 = vld [vmem:[%s11 + $0x30] sm:$0xff]
      %v1381 = vld [vmem:[%s11 + $0x38] sm:$0xff]
      %1383 = vset.pattern.permute.xlu0 0
      %1384 = vperm.xlu0 %1383, %v1374
      %v1385 = vpop.permute.xlu0 %1384
      %1388 = vset.pattern.permute.xlu0 0
      %1389 = vperm.xlu0 %1388, %v1375
      %v1390 = vpop.permute.xlu0 %1389
      %1393 = vset.pattern.permute.xlu0 0
      %1394 = vperm.xlu0 %1393, %v1376
      %v1395 = vpop.permute.xlu0 %1394
      %1398 = vset.pattern.permute.xlu0 0
      %1399 = vperm.xlu0 %1398, %v1377
      %v1400 = vpop.permute.xlu0 %1399
      %1403 = vset.pattern.permute.xlu0 0
      %1404 = vperm.xlu0 %1403, %v1378
      %v1405 = vpop.permute.xlu0 %1404
      %1408 = vset.pattern.permute.xlu0 0
      %1409 = vperm.xlu0 %1408, %v1379
      %v1410 = vpop.permute.xlu0 %1409
      %1413 = vset.pattern.permute.xlu0 0
      %1414 = vperm.xlu0 %1413, %v1380
      %v1415 = vpop.permute.xlu0 %1414
      %1418 = vset.pattern.permute.xlu0 0
      %1419 = vperm.xlu0 %1418, %v1381
      %v1420 = vpop.permute.xlu0 %1419
      %v1422 = vmul.f32 %v1344, %v1385
      %v1423 = vmul.f32 %v1347, %v1390
      %v1424 = vmul.f32 %v1352, %v1395
      %v1425 = vmul.f32 %v1355, %v1400
      %v1426 = vmul.f32 %v1360, %v1405
      %v1427 = vmul.f32 %v1363, %v1410
      %v1428 = vmul.f32 %v1368, %v1415
      %v1429 = vmul.f32 %v1371, %v1420
      %v1430 = vld [vmem:[%s12] sm:$0xff]
      %v1431 = vld [vmem:[%s12 + $0x8] sm:$0xff]
      %v1432 = vld [vmem:[%s12 + $0x10] sm:$0xff]
      %v1433 = vld [vmem:[%s12 + $0x18] sm:$0xff]
      %v1434 = vld [vmem:[%s12 + $0x20] sm:$0xff]
      %v1435 = vld [vmem:[%s12 + $0x28] sm:$0xff]
      %v1436 = vld [vmem:[%s12 + $0x30] sm:$0xff]
      %v1437 = vld [vmem:[%s12 + $0x38] sm:$0xff]
      %1439 = vset.pattern.permute.xlu0 0
      %1440 = vperm.xlu0 %1439, %v1430
      %v1441 = vpop.permute.xlu0 %1440
      %1444 = vset.pattern.permute.xlu0 0
      %1445 = vperm.xlu0 %1444, %v1431
      %v1446 = vpop.permute.xlu0 %1445
      %1449 = vset.pattern.permute.xlu0 0
      %1450 = vperm.xlu0 %1449, %v1432
      %v1451 = vpop.permute.xlu0 %1450
      %1454 = vset.pattern.permute.xlu0 0
      %1455 = vperm.xlu0 %1454, %v1433
      %v1456 = vpop.permute.xlu0 %1455
      %1459 = vset.pattern.permute.xlu0 0
      %1460 = vperm.xlu0 %1459, %v1434
      %v1461 = vpop.permute.xlu0 %1460
      %1464 = vset.pattern.permute.xlu0 0
      %1465 = vperm.xlu0 %1464, %v1435
      %v1466 = vpop.permute.xlu0 %1465
      %1469 = vset.pattern.permute.xlu0 0
      %1470 = vperm.xlu0 %1469, %v1436
      %v1471 = vpop.permute.xlu0 %1470
      %1474 = vset.pattern.permute.xlu0 0
      %1475 = vperm.xlu0 %1474, %v1437
      %v1476 = vpop.permute.xlu0 %1475
      %v1478 = vadd.f32 %v1422, %v1441
      %v1479 = vadd.f32 %v1423, %v1446
      %v1480 = vadd.f32 %v1424, %v1451
      %v1481 = vadd.f32 %v1425, %v1456
      %v1482 = vadd.f32 %v1426, %v1461
      %v1483 = vadd.f32 %v1427, %v1466
      %v1484 = vadd.f32 %v1428, %v1471
      %v1485 = vadd.f32 %v1429, %v1476
      %v1486 = vmax.f32 %v1478, 0.0
      %v1487 = vmax.f32 %v1479, 0.0
      %v1488 = vmax.f32 %v1480, 0.0
      %v1489 = vmax.f32 %v1481, 0.0
      %v1490 = vmax.f32 %v1482, 0.0
      %v1491 = vmax.f32 %v1483, 0.0
      %v1492 = vmax.f32 %v1484, 0.0
      %v1493 = vmax.f32 %v1485, 0.0
      %v1494 = vld [vmem:[%s13] sm:$0xf]
      %v1495 = vld [vmem:[%s13 + $0x4] sm:$0xf]
      %v1496 = vld [vmem:[%s13 + $0x8] sm:$0xf]
      %v1497 = vld [vmem:[%s13 + $0xc] sm:$0xf]
      %v1498 = vld [vmem:[%s13 + $0x10] sm:$0xf]
      %v1499 = vld [vmem:[%s13 + $0x14] sm:$0xf]
      %v1500 = vld [vmem:[%s13 + $0x18] sm:$0xf]
      %v1501 = vld [vmem:[%s13 + $0x1c] sm:$0xf]
      %v1502 = vpack.c.bf16 %v1487, %v1486
      %v1503 = vpack.c.bf16 %v1489, %v1488
      %v1504 = vpack.c.bf16 %v1491, %v1490
      %v1505 = vpack.c.bf16 %v1493, %v1492
      %v1514 = vunpack.c.l.b16 %v1494
      %v1515 = vunpack.c.l.b16 %v1495
      %v1516 = vunpack.c.l.b16 %v1496
      %v1517 = vunpack.c.l.b16 %v1497
      %v1518 = vunpack.c.l.b16 %v1498
      %v1519 = vunpack.c.l.b16 %v1499
      %v1520 = vunpack.c.l.b16 %v1500
      %v1521 = vunpack.c.l.b16 %v1501
      %v1522 = vpack.c.b16 %v1515, %v1514
      %v1523 = vpack.c.b16 %v1517, %v1516
      %v1524 = vpack.c.b16 %v1519, %v1518
      %v1525 = vpack.c.b16 %v1521, %v1520
      %v1527 = vsel %vm838, %v1522, 0
      %v1530 = vsel %vm838, %v1523, 0
      %v1533 = vsel %vm838, %v1524, 0
      %v1536 = vsel %vm838, %v1525, 0
      %1538 = vmatprep.subr.bf16.mxu0 0
      %1539 = vmatpush1.bf16.msra.mxu0 %v1502
      %1540 = vmatprep.subr.bf16.mxu0 0
      %1541 = vmatpush1.bf16.msra.mxu0 %v1503
      %1542 = vmatprep.subr.bf16.mxu0 0
      %1543 = vmatpush1.bf16.msra.mxu0 %v1504
      %1544 = vmatprep.subr.bf16.mxu0 0
      %1545 = vmatpush1.bf16.msra.mxu0 %v1505
      %1546 = vmatprep.subr.bf16.mxu0 0
      %1547 = vmatpush1.bf16.msra.mxu0 0
      %1548 = vmatprep.subr.bf16.mxu0 0
      %1549 = vmatpush1.bf16.msra.mxu0 0
      %1550 = vmatprep.subr.bf16.mxu0 0
      %1551 = vmatpush1.bf16.msra.mxu0 0
      %1552 = vmatprep.subr.bf16.mxu0 0
      %1553 = vmatpush1.bf16.msra.mxu0 0
      %1554 = vmatprep.subr.bf16.mxu0 0
      %1555 = vmatpush1.bf16.msra.mxu0 0
      %1556 = vmatprep.subr.bf16.mxu0 0
      %1557 = vmatpush1.bf16.msra.mxu0 0
      %1558 = vmatprep.subr.bf16.mxu0 0
      %1559 = vmatpush1.bf16.msra.mxu0 0
      %1560 = vmatprep.subr.bf16.mxu0 0
      %1561 = vmatpush1.bf16.msra.mxu0 0
      %1562 = vmatprep.subr.bf16.mxu0 0
      %1563 = vmatpush1.bf16.msra.mxu0 0
      %1564 = vmatprep.subr.bf16.mxu0 0
      %1565 = vmatpush1.bf16.msra.mxu0 0
      %1566 = vmatprep.subr.bf16.mxu0 0
      %1567 = vmatpush1.bf16.msra.mxu0 0
      %1568 = vmatprep.subr.bf16.mxu0 0
      %1569 = vmatpush1.bf16.msra.mxu0 0
      %1570 = vmatprep.mubr.bf16.mxu0 0
      %1571 = vmatmul.mubr.bf16.gmra.mrb[0].mxu0 %v1527
      %v1572 = vpop.f32.mrb[0].mxu0
      %v1573 = vadd.f32 0.0, %v1572
      %v1574 = vpop.f32.mrb[0].mxu0
      %v1575 = vpop.f32.mrb[0].mxu0
      %v1576 = vadd.f32 0.0, %v1575
      %v1577 = vpop.f32.mrb[0].mxu0
      %1578 = vmatprep.mubr.bf16.mxu0 0
      %1579 = vmatmul.mubr.bf16.gmra.mrb[0].mxu0 %v1530
      %v1580 = vpop.f32.mrb[0].mxu0
      %v1581 = vadd.f32 0.0, %v1580
      %v1582 = vpop.f32.mrb[0].mxu0
      %v1583 = vpop.f32.mrb[0].mxu0
      %v1584 = vadd.f32 0.0, %v1583
      %v1585 = vpop.f32.mrb[0].mxu0
      %1586 = vmatprep.mubr.bf16.mxu0 0
      %1587 = vmatmul.mubr.bf16.gmra.mrb[0].mxu0 %v1533
      %v1588 = vpop.f32.mrb[0].mxu0
      %v1589 = vadd.f32 0.0, %v1588
      %v1590 = vpop.f32.mrb[0].mxu0
      %v1591 = vpop.f32.mrb[0].mxu0
      %v1592 = vadd.f32 0.0, %v1591
      %v1593 = vpop.f32.mrb[0].mxu0
      %1594 = vmatprep.mubr.bf16.mxu0 0
      %1595 = vmatmul.mubr.bf16.gmra.mrb[0].mxu0 %v1536
      %v1596 = vpop.f32.mrb[0].mxu0
      %v1597 = vadd.f32 0.0, %v1596
      %v1598 = vpop.f32.mrb[0].mxu0
      %v1599 = vpop.f32.mrb[0].mxu0
      %v1600 = vadd.f32 0.0, %v1599
      %v1601 = vpop.f32.mrb[0].mxu0
      %1602 = vdwg.mxu0
      %v1603 = vld [vmem:[%s14] sm:$0xff]
      %v1604 = vld [vmem:[%s14 + $0x8] sm:$0xff]
      %v1605 = vld [vmem:[%s14 + $0x10] sm:$0xff]
      %v1606 = vld [vmem:[%s14 + $0x18] sm:$0xff]
      %v1607 = vld [vmem:[%s14 + $0x20] sm:$0xff]
      %v1608 = vld [vmem:[%s14 + $0x28] sm:$0xff]
      %v1609 = vld [vmem:[%s14 + $0x30] sm:$0xff]
      %v1610 = vld [vmem:[%s14 + $0x38] sm:$0xff]
      %1612 = vset.pattern.permute.xlu0 0
      %1613 = vperm.xlu0 %1612, %v1603
      %v1614 = vpop.permute.xlu0 %1613
      %1617 = vset.pattern.permute.xlu0 0
      %1618 = vperm.xlu0 %1617, %v1604
      %v1619 = vpop.permute.xlu0 %1618
      %1622 = vset.pattern.permute.xlu0 0
      %1623 = vperm.xlu0 %1622, %v1605
      %v1624 = vpop.permute.xlu0 %1623
      %1627 = vset.pattern.permute.xlu0 0
      %1628 = vperm.xlu0 %1627, %v1606
      %v1629 = vpop.permute.xlu0 %1628
      %1632 = vset.pattern.permute.xlu0 0
      %1633 = vperm.xlu0 %1632, %v1607
      %v1634 = vpop.permute.xlu0 %1633
      %1637 = vset.pattern.permute.xlu0 0
      %1638 = vperm.xlu0 %1637, %v1608
      %v1639 = vpop.permute.xlu0 %1638
      %1642 = vset.pattern.permute.xlu0 0
      %1643 = vperm.xlu0 %1642, %v1609
      %v1644 = vpop.permute.xlu0 %1643
      %1647 = vset.pattern.permute.xlu0 0
      %1648 = vperm.xlu0 %1647, %v1610
      %v1649 = vpop.permute.xlu0 %1648
      %v1651 = vmul.f32 %v1573, %v1614
      %v1652 = vmul.f32 %v1576, %v1619
      %v1653 = vmul.f32 %v1581, %v1624
      %v1654 = vmul.f32 %v1584, %v1629
      %v1655 = vmul.f32 %v1589, %v1634
      %v1656 = vmul.f32 %v1592, %v1639
      %v1657 = vmul.f32 %v1597, %v1644
      %v1658 = vmul.f32 %v1600, %v1649
      %v1659 = vld [vmem:[%s15] sm:$0xff]
      %v1660 = vld [vmem:[%s15 + $0x8] sm:$0xff]
      %v1661 = vld [vmem:[%s15 + $0x10] sm:$0xff]
      %v1662 = vld [vmem:[%s15 + $0x18] sm:$0xff]
      %v1663 = vld [vmem:[%s15 + $0x20] sm:$0xff]
      %v1664 = vld [vmem:[%s15 + $0x28] sm:$0xff]
      %v1665 = vld [vmem:[%s15 + $0x30] sm:$0xff]
      %v1666 = vld [vmem:[%s15 + $0x38] sm:$0xff]
      %1668 = vset.pattern.permute.xlu0 0
      %1669 = vperm.xlu0 %1668, %v1659
      %v1670 = vpop.permute.xlu0 %1669
      %1673 = vset.pattern.permute.xlu0 0
      %1674 = vperm.xlu0 %1673, %v1660
      %v1675 = vpop.permute.xlu0 %1674
      %1678 = vset.pattern.permute.xlu0 0
      %1679 = vperm.xlu0 %1678, %v1661
      %v1680 = vpop.permute.xlu0 %1679
      %1683 = vset.pattern.permute.xlu0 0
      %1684 = vperm.xlu0 %1683, %v1662
      %v1685 = vpop.permute.xlu0 %1684
      %1688 = vset.pattern.permute.xlu0 0
      %1689 = vperm.xlu0 %1688, %v1663
      %v1690 = vpop.permute.xlu0 %1689
      %1693 = vset.pattern.permute.xlu0 0
      %1694 = vperm.xlu0 %1693, %v1664
      %v1695 = vpop.permute.xlu0 %1694
      %1698 = vset.pattern.permute.xlu0 0
      %1699 = vperm.xlu0 %1698, %v1665
      %v1700 = vpop.permute.xlu0 %1699
      %1703 = vset.pattern.permute.xlu0 0
      %1704 = vperm.xlu0 %1703, %v1666
      %v1705 = vpop.permute.xlu0 %1704
      %v1707 = vadd.f32 %v1651, %v1670
      %v1708 = vadd.f32 %v1652, %v1675
      %v1709 = vadd.f32 %v1653, %v1680
      %v1710 = vadd.f32 %v1654, %v1685
      %v1711 = vadd.f32 %v1655, %v1690
      %v1712 = vadd.f32 %v1656, %v1695
      %v1713 = vadd.f32 %v1657, %v1700
      %v1714 = vadd.f32 %v1658, %v1705
      %1715 = vst [vmem:[%s569] sm:$0xff] %v1707
      %1716 = vst [vmem:[%s569 + $0x8] sm:$0xff] %v1708
      %1717 = vst [vmem:[%s569 + $0x10] sm:$0xff] %v1709
      %1718 = vst [vmem:[%s569 + $0x18] sm:$0xff] %v1710
      %1719 = vst [vmem:[%s569 + $0x20] sm:$0xff] %v1711
      %1720 = vst [vmem:[%s569 + $0x28] sm:$0xff] %v1712
      %1721 = vst [vmem:[%s569 + $0x30] sm:$0xff] %v1713
      %1722 = vst [vmem:[%s569 + $0x38] sm:$0xff] %v1714
      %p1723 = scmp.lt.s32.totalorder %s31, 1
      %s1724 = scalar_select %p1723, %s31, 1
      %p1725 = scmp.lt.s32.totalorder %s32, 0
      %s1726 = scalar_select %p1725, %s32, 0
      %s1727 = smul.addr %s1724, 8
      %s1728 = sadd.s32 %s1726, %s1727
      %s1729 = smul.addr %s1728, 8
      %s1730 = scalar_lea.vmem %s16, %s1729
      // Predicated region
      $region85: #{_lambda_.5} parent=83 // pred_check
        %p1731 = pneg %p407
      $region86: #{_lambda_.5} parent=83 // pred_check_branch
        %1733 = sbr.rel (%p1731) target = $region88
      $region87: #{_lambda_.5} parent=83 // pred_region
        _
      $region88: #{_lambda_.5} parent=83 // pred_fallthru
        _
    $region84: #{_lambda_.5} parent=5 // pred_fallthru
      _
    %p1734 = scmp.le.s32.totalorder 2, %s22
    // Predicated region
    $region89: #{_lambda_.5} parent=5 // pred_check
      %p1735 = pneg %p1734
    $region90: #{_lambda_.5} parent=5 // pred_check_branch
      %1737 = sbr.rel (%p1735) target = $region92
    $region91: #{_lambda_.5} parent=5 // pred_region
      %s1738 = ssub.s32 %s22, 2
      // Predicated region
      $region93: #{_lambda_.5} parent=91 // pred_check
        %p1739 = pneg %p413
      $region94: #{_lambda_.5} parent=91 // pred_check_branch
        %1741 = sbr.rel (%p1739) target = $region96
      $region95: #{_lambda_.5} parent=91 // pred_region
        %p1742 = scmp.lt.s32.totalorder %s33, 1
        %s1743 = scalar_select %p1742, %s33, 1
        %p1744 = scmp.lt.s32.totalorder %s34, 0
        %s1745 = scalar_select %p1744, %s34, 0
        %s1746 = smul.addr %s1743, 8
        %s1747 = sadd.s32 %s1745, %s1746
        %s1748 = smul.addr %s1747, 8
        %s1749 = scalar_lea.vmem %s16, %s1748
      $region96: #{_lambda_.5} parent=91 // pred_fallthru
        _
    $region92: #{_lambda_.5} parent=5 // pred_fallthru
      _
  $region6: #{_lambda_.5} parent=0 // loop_footer
    %s26 = sadd.s32 1, %s22
  $region7: #{_lambda_.5} parent=0 // loop_footer_branch
    %21 = sbr.rel target = $region3
  $region8: #{_lambda_.5} parent=0 // loop_exit
    _

// kernel: _lambda_.4
$region0: #{_lambda_.4}
  #allocation0 [shape = 'u32[]', space=smem, size = 0x4, offset = 0x4, fixed_abs, tag = 'smem constant byte address 0x4 - core index']
  #allocation1 [shape = 'u32[144,128]{1,0:T(1,128)}', space=vmem, size = 0x12000, scoped, tag = 'internal scratch']
  %s0 = inlined_call_operand.vmem [shape: f32[2,1024], index: 0, kind: input, shape index: {}]
  %s1 = inlined_call_operand.vmem [shape: bf16[1024,512], index: 1, kind: input, shape index: {}]
  %s2 = inlined_call_operand.vmem [shape: bf16[512,256], index: 2, kind: input, shape index: {}]
  %s3 = inlined_call_operand.vmem [shape: bf16[256,4], index: 3, kind: input, shape index: {}]
  %s4 = inlined_call_operand.vmem [shape: f32[1,4], index: 4, kind: input, shape index: {}]
  %s5 = inlined_call_operand.vmem [shape: f32[2,4], index: 5, kind: output, shape index: {}]
  %s6 = sld [smem:[#allocation0]]
  $region30: #{_lambda_.4} parent=0
    _
  %s8 = ssub.s32 1, %s6
  %s9 = scalar_select 0, %s8, %s6
  // Predicated region
  $region2: #{_lambda_.4} parent=0 // pred_check
    _
  $region3: #{_lambda_.4} parent=0 // pred_check_branch
    %11 = sbr.rel (0) target = $region5
  $region4: #{_lambda_.4} parent=0 // pred_region
    _
  $region5: #{_lambda_.4} parent=0 // pred_fallthru
    _
  // Predicated region
  $region6: #{_lambda_.4} parent=0 // pred_check
    _
  $region7: #{_lambda_.4} parent=0 // pred_check_branch
    %13 = sbr.rel (0) target = $region9
  $region8: #{_lambda_.4} parent=0 // pred_region
    _
  $region9: #{_lambda_.4} parent=0 // pred_fallthru
    _
  // Predicated region
  $region10: #{_lambda_.4} parent=0 // pred_check
    _
  $region11: #{_lambda_.4} parent=0 // pred_check_branch
    %15 = sbr.rel (0) target = $region13
  $region12: #{_lambda_.4} parent=0 // pred_region
    _
  $region13: #{_lambda_.4} parent=0 // pred_fallthru
    _
  // Predicated region
  $region14: #{_lambda_.4} parent=0 // pred_check
    _
  $region15: #{_lambda_.4} parent=0 // pred_check_branch
    %17 = sbr.rel (0) target = $region17
  $region16: #{_lambda_.4} parent=0 // pred_region
    _
  $region17: #{_lambda_.4} parent=0 // pred_fallthru
    _
  // Predicated region
  $region18: #{_lambda_.4} parent=0 // pred_check
    _
  $region19: #{_lambda_.4} parent=0 // pred_check_branch
    %19 = sbr.rel (0) target = $region21
  $region20: #{_lambda_.4} parent=0 // pred_region
    _
  $region21: #{_lambda_.4} parent=0 // pred_fallthru
    _
  %v21 = vld [vmem:[%s0] sm:$0xff]
  %v22 = vld [vmem:[%s0 + $0x8] sm:$0xff]
  %v25 = vcombine.high %v21, %v21
  %v27 = vunpack.c.l.s4 1983009808
  %v28 = vunpack.c.0.s8 %v27
  %v29 = vlaneseq
  %v30 = vshrl.u32 %v29, 7
  %v31 = vsub.s32 %v28, %v30
  %v32 = vrot.slane %v21, %v31
  %v34 = vunpack.c.l.s4 1983009808
  %v35 = vunpack.c.0.s8 %v34
  %v36 = vlaneseq
  %v37 = vshrl.u32 %v36, 7
  %v38 = vsub.s32 %v35, %v37
  %v39 = vrot.slane %v25, %v38
  %v40 = vcombine.high %v32, %v32
  %v41 = vcombine.high %v39, %v39
  %v42 = vcombine.high %v22, %v22
  %v44 = vunpack.c.l.s4 1983009808
  %v45 = vunpack.c.0.s8 %v44
  %v46 = vlaneseq
  %v47 = vshrl.u32 %v46, 7
  %v48 = vsub.s32 %v45, %v47
  %v49 = vrot.slane %v22, %v48
  %v51 = vunpack.c.l.s4 1983009808
  %v52 = vunpack.c.0.s8 %v51
  %v53 = vlaneseq
  %v54 = vshrl.u32 %v53, 7
  %v55 = vsub.s32 %v52, %v54
  %v56 = vrot.slane %v42, %v55
  %v57 = vcombine.high %v49, %v49
  %v58 = vcombine.high %v56, %v56
  %v67 = vpack.c.bf16 %v32, %v32
  %v68 = vpack.c.bf16 %v40, %v40
  %v69 = vpack.c.bf16 %v39, %v39
  %v70 = vpack.c.bf16 %v41, %v41
  %v71 = vpack.c.bf16 %v49, %v49
  %v72 = vpack.c.bf16 %v57, %v57
  %v73 = vpack.c.bf16 %v56, %v56
  %v74 = vpack.c.bf16 %v58, %v58
  %v75 = vld [vmem:[%s1] sm:$0xff]
  %v76 = vld [vmem:[%s1 + $0x8] sm:$0xff]
  %v77 = vld [vmem:[%s1 + $0x10] sm:$0xff]
  %v78 = vld [vmem:[%s1 + $0x18] sm:$0xff]
  %v79 = vld [vmem:[%s1 + $0x20] sm:$0xff]
  %v80 = vld [vmem:[%s1 + $0x28] sm:$0xff]
  %v81 = vld [vmem:[%s1 + $0x30] sm:$0xff]
  %v82 = vld [vmem:[%s1 + $0x38] sm:$0xff]
  %v83 = vld [vmem:[%s1 + $0x40] sm:$0xff]
  %v84 = vld [vmem:[%s1 + $0x48] sm:$0xff]
  %v85 = vld [vmem:[%s1 + $0x50] sm:$0xff]
  %v86 = vld [vmem:[%s1 + $0x58] sm:$0xff]
  %v87 = vld [vmem:[%s1 + $0x60] sm:$0xff]
  %v88 = vld [vmem:[%s1 + $0x68] sm:$0xff]
  %v89 = vld [vmem:[%s1 + $0x70] sm:$0xff]
  %v90 = vld [vmem:[%s1 + $0x78] sm:$0xff]
  %v91 = vld [vmem:[%s1 + $0x80] sm:$0xff]
  %v92 = vld [vmem:[%s1 + $0x88] sm:$0xff]
  %v93 = vld [vmem:[%s1 + $0x90] sm:$0xff]
  %v94 = vld [vmem:[%s1 + $0x98] sm:$0xff]
  %v95 = vld [vmem:[%s1 + $0xa0] sm:$0xff]
  %v96 = vld [vmem:[%s1 + $0xa8] sm:$0xff]
  %v97 = vld [vmem:[%s1 + $0xb0] sm:$0xff]
  %v98 = vld [vmem:[%s1 + $0xb8] sm:$0xff]
  %v99 = vld [vmem:[%s1 + $0xc0] sm:$0xff]
  %v100 = vld [vmem:[%s1 + $0xc8] sm:$0xff]
  %v101 = vld [vmem:[%s1 + $0xd0] sm:$0xff]
  %v102 = vld [vmem:[%s1 + $0xd8] sm:$0xff]
  %v103 = vld [vmem:[%s1 + $0xe0] sm:$0xff]
  %v104 = vld [vmem:[%s1 + $0xe8] sm:$0xff]
  %v105 = vld [vmem:[%s1 + $0xf0] sm:$0xff]
  %v106 = vld [vmem:[%s1 + $0xf8] sm:$0xff]
  %v107 = vld [vmem:[%s1 + $0x100] sm:$0xff]
  %v108 = vld [vmem:[%s1 + $0x108] sm:$0xff]
  %v109 = vld [vmem:[%s1 + $0x110] sm:$0xff]
  %v110 = vld [vmem:[%s1 + $0x118] sm:$0xff]
  %v111 = vld [vmem:[%s1 + $0x120] sm:$0xff]
  %v112 = vld [vmem:[%s1 + $0x128] sm:$0xff]
  %v113 = vld [vmem:[%s1 + $0x130] sm:$0xff]
  %v114 = vld [vmem:[%s1 + $0x138] sm:$0xff]
  %v115 = vld [vmem:[%s1 + $0x140] sm:$0xff]
  %v116 = vld [vmem:[%s1 + $0x148] sm:$0xff]
  %v117 = vld [vmem:[%s1 + $0x150] sm:$0xff]
  %v118 = vld [vmem:[%s1 + $0x158] sm:$0xff]
  %v119 = vld [vmem:[%s1 + $0x160] sm:$0xff]
  %v120 = vld [vmem:[%s1 + $0x168] sm:$0xff]
  %v121 = vld [vmem:[%s1 + $0x170] sm:$0xff]
  %v122 = vld [vmem:[%s1 + $0x178] sm:$0xff]
  %v123 = vld [vmem:[%s1 + $0x180] sm:$0xff]
  %v124 = vld [vmem:[%s1 + $0x188] sm:$0xff]
  %v125 = vld [vmem:[%s1 + $0x190] sm:$0xff]
  %v126 = vld [vmem:[%s1 + $0x198] sm:$0xff]
  %v127 = vld [vmem:[%s1 + $0x1a0] sm:$0xff]
  %v128 = vld [vmem:[%s1 + $0x1a8] sm:$0xff]
  %v129 = vld [vmem:[%s1 + $0x1b0] sm:$0xff]
  %v130 = vld [vmem:[%s1 + $0x1b8] sm:$0xff]
  %v131 = vld [vmem:[%s1 + $0x1c0] sm:$0xff]
  %v132 = vld [vmem:[%s1 + $0x1c8] sm:$0xff]
  %v133 = vld [vmem:[%s1 + $0x1d0] sm:$0xff]
  %v134 = vld [vmem:[%s1 + $0x1d8] sm:$0xff]
  %v135 = vld [vmem:[%s1 + $0x1e0] sm:$0xff]
  %v136 = vld [vmem:[%s1 + $0x1e8] sm:$0xff]
  %v137 = vld [vmem:[%s1 + $0x1f0] sm:$0xff]
  %v138 = vld [vmem:[%s1 + $0x1f8] sm:$0xff]
  %v139 = vld [vmem:[%s1 + $0x200] sm:$0xff]
  %v140 = vld [vmem:[%s1 + $0x208] sm:$0xff]
  %v141 = vld [vmem:[%s1 + $0x210] sm:$0xff]
  %v142 = vld [vmem:[%s1 + $0x218] sm:$0xff]
  %v143 = vld [vmem:[%s1 + $0x220] sm:$0xff]
  %v144 = vld [vmem:[%s1 + $0x228] sm:$0xff]
  %v145 = vld [vmem:[%s1 + $0x230] sm:$0xff]
  %v146 = vld [vmem:[%s1 + $0x238] sm:$0xff]
  %v147 = vld [vmem:[%s1 + $0x240] sm:$0xff]
  %v148 = vld [vmem:[%s1 + $0x248] sm:$0xff]
  %v149 = vld [vmem:[%s1 + $0x250] sm:$0xff]
  %v150 = vld [vmem:[%s1 + $0x258] sm:$0xff]
  %v151 = vld [vmem:[%s1 + $0x260] sm:$0xff]
  %v152 = vld [vmem:[%s1 + $0x268] sm:$0xff]
  %v153 = vld [vmem:[%s1 + $0x270] sm:$0xff]
  %v154 = vld [vmem:[%s1 + $0x278] sm:$0xff]
  %v155 = vld [vmem:[%s1 + $0x280] sm:$0xff]
  %v156 = vld [vmem:[%s1 + $0x288] sm:$0xff]
  %v157 = vld [vmem:[%s1 + $0x290] sm:$0xff]
  %v158 = vld [vmem:[%s1 + $0x298] sm:$0xff]
  %v159 = vld [vmem:[%s1 + $0x2a0] sm:$0xff]
  %v160 = vld [vmem:[%s1 + $0x2a8] sm:$0xff]
  %v161 = vld [vmem:[%s1 + $0x2b0] sm:$0xff]
  %v162 = vld [vmem:[%s1 + $0x2b8] sm:$0xff]
  %v163 = vld [vmem:[%s1 + $0x2c0] sm:$0xff]
  %v164 = vld [vmem:[%s1 + $0x2c8] sm:$0xff]
  %v165 = vld [vmem:[%s1 + $0x2d0] sm:$0xff]
  %v166 = vld [vmem:[%s1 + $0x2d8] sm:$0xff]
  %v167 = vld [vmem:[%s1 + $0x2e0] sm:$0xff]
  %v168 = vld [vmem:[%s1 + $0x2e8] sm:$0xff]
  %v169 = vld [vmem:[%s1 + $0x2f0] sm:$0xff]
  %v170 = vld [vmem:[%s1 + $0x2f8] sm:$0xff]
  %v171 = vld [vmem:[%s1 + $0x300] sm:$0xff]
  %v172 = vld [vmem:[%s1 + $0x308] sm:$0xff]
  %v173 = vld [vmem:[%s1 + $0x310] sm:$0xff]
  %v174 = vld [vmem:[%s1 + $0x318] sm:$0xff]
  %v175 = vld [vmem:[%s1 + $0x320] sm:$0xff]
  %v176 = vld [vmem:[%s1 + $0x328] sm:$0xff]
  %v177 = vld [vmem:[%s1 + $0x330] sm:$0xff]
  %v178 = vld [vmem:[%s1 + $0x338] sm:$0xff]
  %v179 = vld [vmem:[%s1 + $0x340] sm:$0xff]
  %v180 = vld [vmem:[%s1 + $0x348] sm:$0xff]
  %v181 = vld [vmem:[%s1 + $0x350] sm:$0xff]
  %v182 = vld [vmem:[%s1 + $0x358] sm:$0xff]
  %v183 = vld [vmem:[%s1 + $0x360] sm:$0xff]
  %v184 = vld [vmem:[%s1 + $0x368] sm:$0xff]
  %v185 = vld [vmem:[%s1 + $0x370] sm:$0xff]
  %v186 = vld [vmem:[%s1 + $0x378] sm:$0xff]
  %v187 = vld [vmem:[%s1 + $0x380] sm:$0xff]
  %v188 = vld [vmem:[%s1 + $0x388] sm:$0xff]
  %v189 = vld [vmem:[%s1 + $0x390] sm:$0xff]
  %v190 = vld [vmem:[%s1 + $0x398] sm:$0xff]
  %v191 = vld [vmem:[%s1 + $0x3a0] sm:$0xff]
  %v192 = vld [vmem:[%s1 + $0x3a8] sm:$0xff]
  %v193 = vld [vmem:[%s1 + $0x3b0] sm:$0xff]
  %v194 = vld [vmem:[%s1 + $0x3b8] sm:$0xff]
  %v195 = vld [vmem:[%s1 + $0x3c0] sm:$0xff]
  %v196 = vld [vmem:[%s1 + $0x3c8] sm:$0xff]
  %v197 = vld [vmem:[%s1 + $0x3d0] sm:$0xff]
  %v198 = vld [vmem:[%s1 + $0x3d8] sm:$0xff]
  %v199 = vld [vmem:[%s1 + $0x3e0] sm:$0xff]
  %v200 = vld [vmem:[%s1 + $0x3e8] sm:$0xff]
  %v201 = vld [vmem:[%s1 + $0x3f0] sm:$0xff]
  %v202 = vld [vmem:[%s1 + $0x3f8] sm:$0xff]
  %v203 = vld [vmem:[%s1 + $0x400] sm:$0xff]
  %v204 = vld [vmem:[%s1 + $0x408] sm:$0xff]
  %v205 = vld [vmem:[%s1 + $0x410] sm:$0xff]
  %v206 = vld [vmem:[%s1 + $0x418] sm:$0xff]
  %v207 = vld [vmem:[%s1 + $0x420] sm:$0xff]
  %v208 = vld [vmem:[%s1 + $0x428] sm:$0xff]
  %v209 = vld [vmem:[%s1 + $0x430] sm:$0xff]
  %v210 = vld [vmem:[%s1 + $0x438] sm:$0xff]
  %v211 = vld [vmem:[%s1 + $0x440] sm:$0xff]
  %v212 = vld [vmem:[%s1 + $0x448] sm:$0xff]
  %v213 = vld [vmem:[%s1 + $0x450] sm:$0xff]
  %v214 = vld [vmem:[%s1 + $0x458] sm:$0xff]
  %v215 = vld [vmem:[%s1 + $0x460] sm:$0xff]
  %v216 = vld [vmem:[%s1 + $0x468] sm:$0xff]
  %v217 = vld [vmem:[%s1 + $0x470] sm:$0xff]
  %v218 = vld [vmem:[%s1 + $0x478] sm:$0xff]
  %v219 = vld [vmem:[%s1 + $0x480] sm:$0xff]
  %v220 = vld [vmem:[%s1 + $0x488] sm:$0xff]
  %v221 = vld [vmem:[%s1 + $0x490] sm:$0xff]
  %v222 = vld [vmem:[%s1 + $0x498] sm:$0xff]
  %v223 = vld [vmem:[%s1 + $0x4a0] sm:$0xff]
  %v224 = vld [vmem:[%s1 + $0x4a8] sm:$0xff]
  %v225 = vld [vmem:[%s1 + $0x4b0] sm:$0xff]
  %v226 = vld [vmem:[%s1 + $0x4b8] sm:$0xff]
  %v227 = vld [vmem:[%s1 + $0x4c0] sm:$0xff]
  %v228 = vld [vmem:[%s1 + $0x4c8] sm:$0xff]
  %v229 = vld [vmem:[%s1 + $0x4d0] sm:$0xff]
  %v230 = vld [vmem:[%s1 + $0x4d8] sm:$0xff]
  %v231 = vld [vmem:[%s1 + $0x4e0] sm:$0xff]
  %v232 = vld [vmem:[%s1 + $0x4e8] sm:$0xff]
  %v233 = vld [vmem:[%s1 + $0x4f0] sm:$0xff]
  %v234 = vld [vmem:[%s1 + $0x4f8] sm:$0xff]
  %v235 = vld [vmem:[%s1 + $0x500] sm:$0xff]
  %v236 = vld [vmem:[%s1 + $0x508] sm:$0xff]
  %v237 = vld [vmem:[%s1 + $0x510] sm:$0xff]
  %v238 = vld [vmem:[%s1 + $0x518] sm:$0xff]
  %v239 = vld [vmem:[%s1 + $0x520] sm:$0xff]
  %v240 = vld [vmem:[%s1 + $0x528] sm:$0xff]
  %v241 = vld [vmem:[%s1 + $0x530] sm:$0xff]
  %v242 = vld [vmem:[%s1 + $0x538] sm:$0xff]
  %v243 = vld [vmem:[%s1 + $0x540] sm:$0xff]
  %v244 = vld [vmem:[%s1 + $0x548] sm:$0xff]
  %v245 = vld [vmem:[%s1 + $0x550] sm:$0xff]
  %v246 = vld [vmem:[%s1 + $0x558] sm:$0xff]
  %v247 = vld [vmem:[%s1 + $0x560] sm:$0xff]
  %v248 = vld [vmem:[%s1 + $0x568] sm:$0xff]
  %v249 = vld [vmem:[%s1 + $0x570] sm:$0xff]
  %v250 = vld [vmem:[%s1 + $0x578] sm:$0xff]
  %v251 = vld [vmem:[%s1 + $0x580] sm:$0xff]
  %v252 = vld [vmem:[%s1 + $0x588] sm:$0xff]
  %v253 = vld [vmem:[%s1 + $0x590] sm:$0xff]
  %v254 = vld [vmem:[%s1 + $0x598] sm:$0xff]
  %v255 = vld [vmem:[%s1 + $0x5a0] sm:$0xff]
  %v256 = vld [vmem:[%s1 + $0x5a8] sm:$0xff]
  %v257 = vld [vmem:[%s1 + $0x5b0] sm:$0xff]
  %v258 = vld [vmem:[%s1 + $0x5b8] sm:$0xff]
  %v259 = vld [vmem:[%s1 + $0x5c0] sm:$0xff]
  %v260 = vld [vmem:[%s1 + $0x5c8] sm:$0xff]
  %v261 = vld [vmem:[%s1 + $0x5d0] sm:$0xff]
  %v262 = vld [vmem:[%s1 + $0x5d8] sm:$0xff]
  %v263 = vld [vmem:[%s1 + $0x5e0] sm:$0xff]
  %v264 = vld [vmem:[%s1 + $0x5e8] sm:$0xff]
  %v265 = vld [vmem:[%s1 + $0x5f0] sm:$0xff]
  %v266 = vld [vmem:[%s1 + $0x5f8] sm:$0xff]
  %v267 = vld [vmem:[%s1 + $0x600] sm:$0xff]
  %v268 = vld [vmem:[%s1 + $0x608] sm:$0xff]
  %v269 = vld [vmem:[%s1 + $0x610] sm:$0xff]
  %v270 = vld [vmem:[%s1 + $0x618] sm:$0xff]
  %v271 = vld [vmem:[%s1 + $0x620] sm:$0xff]
  %v272 = vld [vmem:[%s1 + $0x628] sm:$0xff]
  %v273 = vld [vmem:[%s1 + $0x630] sm:$0xff]
  %v274 = vld [vmem:[%s1 + $0x638] sm:$0xff]
  %v275 = vld [vmem:[%s1 + $0x640] sm:$0xff]
  %v276 = vld [vmem:[%s1 + $0x648] sm:$0xff]
  %v277 = vld [vmem:[%s1 + $0x650] sm:$0xff]
  %v278 = vld [vmem:[%s1 + $0x658] sm:$0xff]
  %v279 = vld [vmem:[%s1 + $0x660] sm:$0xff]
  %v280 = vld [vmem:[%s1 + $0x668] sm:$0xff]
  %v281 = vld [vmem:[%s1 + $0x670] sm:$0xff]
  %v282 = vld [vmem:[%s1 + $0x678] sm:$0xff]
  %v283 = vld [vmem:[%s1 + $0x680] sm:$0xff]
  %v284 = vld [vmem:[%s1 + $0x688] sm:$0xff]
  %v285 = vld [vmem:[%s1 + $0x690] sm:$0xff]
  %v286 = vld [vmem:[%s1 + $0x698] sm:$0xff]
  %v287 = vld [vmem:[%s1 + $0x6a0] sm:$0xff]
  %v288 = vld [vmem:[%s1 + $0x6a8] sm:$0xff]
  %v289 = vld [vmem:[%s1 + $0x6b0] sm:$0xff]
  %v290 = vld [vmem:[%s1 + $0x6b8] sm:$0xff]
  %v291 = vld [vmem:[%s1 + $0x6c0] sm:$0xff]
  %v292 = vld [vmem:[%s1 + $0x6c8] sm:$0xff]
  %v293 = vld [vmem:[%s1 + $0x6d0] sm:$0xff]
  %v294 = vld [vmem:[%s1 + $0x6d8] sm:$0xff]
  %v295 = vld [vmem:[%s1 + $0x6e0] sm:$0xff]
  %v296 = vld [vmem:[%s1 + $0x6e8] sm:$0xff]
  %v297 = vld [vmem:[%s1 + $0x6f0] sm:$0xff]
  %v298 = vld [vmem:[%s1 + $0x6f8] sm:$0xff]
  %v299 = vld [vmem:[%s1 + $0x700] sm:$0xff]
  %v300 = vld [vmem:[%s1 + $0x708] sm:$0xff]
  %v301 = vld [vmem:[%s1 + $0x710] sm:$0xff]
  %v302 = vld [vmem:[%s1 + $0x718] sm:$0xff]
  %v303 = vld [vmem:[%s1 + $0x720] sm:$0xff]
  %v304 = vld [vmem:[%s1 + $0x728] sm:$0xff]
  %v305 = vld [vmem:[%s1 + $0x730] sm:$0xff]
  %v306 = vld [vmem:[%s1 + $0x738] sm:$0xff]
  %v307 = vld [vmem:[%s1 + $0x740] sm:$0xff]
  %v308 = vld [vmem:[%s1 + $0x748] sm:$0xff]
  %v309 = vld [vmem:[%s1 + $0x750] sm:$0xff]
  %v310 = vld [vmem:[%s1 + $0x758] sm:$0xff]
  %v311 = vld [vmem:[%s1 + $0x760] sm:$0xff]
  %v312 = vld [vmem:[%s1 + $0x768] sm:$0xff]
  %v313 = vld [vmem:[%s1 + $0x770] sm:$0xff]
  %v314 = vld [vmem:[%s1 + $0x778] sm:$0xff]
  %v315 = vld [vmem:[%s1 + $0x780] sm:$0xff]
  %v316 = vld [vmem:[%s1 + $0x788] sm:$0xff]
  %v317 = vld [vmem:[%s1 + $0x790] sm:$0xff]
  %v318 = vld [vmem:[%s1 + $0x798] sm:$0xff]
  %v319 = vld [vmem:[%s1 + $0x7a0] sm:$0xff]
  %v320 = vld [vmem:[%s1 + $0x7a8] sm:$0xff]
  %v321 = vld [vmem:[%s1 + $0x7b0] sm:$0xff]
  %v322 = vld [vmem:[%s1 + $0x7b8] sm:$0xff]
  %v323 = vld [vmem:[%s1 + $0x7c0] sm:$0xff]
  %v324 = vld [vmem:[%s1 + $0x7c8] sm:$0xff]
  %v325 = vld [vmem:[%s1 + $0x7d0] sm:$0xff]
  %v326 = vld [vmem:[%s1 + $0x7d8] sm:$0xff]
  %v327 = vld [vmem:[%s1 + $0x7e0] sm:$0xff]
  %v328 = vld [vmem:[%s1 + $0x7e8] sm:$0xff]
  %v329 = vld [vmem:[%s1 + $0x7f0] sm:$0xff]
  %v330 = vld [vmem:[%s1 + $0x7f8] sm:$0xff]
  %v587 = vunpack.c.l.b16 %v75
  %v588 = vunpack.c.h.b16 %v75
  %v589 = vunpack.c.l.b16 %v76
  %v590 = vunpack.c.h.b16 %v76
  %v591 = vunpack.c.l.b16 %v77
  %v592 = vunpack.c.h.b16 %v77
  %v593 = vunpack.c.l.b16 %v78
  %v594 = vunpack.c.h.b16 %v78
  %v595 = vunpack.c.l.b16 %v79
  %v596 = vunpack.c.h.b16 %v79
  %v597 = vunpack.c.l.b16 %v80
  %v598 = vunpack.c.h.b16 %v80
  %v599 = vunpack.c.l.b16 %v81
  %v600 = vunpack.c.h.b16 %v81
  %v601 = vunpack.c.l.b16 %v82
  %v602 = vunpack.c.h.b16 %v82
  %v603 = vunpack.c.l.b16 %v83
  %v604 = vunpack.c.h.b16 %v83
  %v605 = vunpack.c.l.b16 %v84
  %v606 = vunpack.c.h.b16 %v84
  %v607 = vunpack.c.l.b16 %v85
  %v608 = vunpack.c.h.b16 %v85
  %v609 = vunpack.c.l.b16 %v86
  %v610 = vunpack.c.h.b16 %v86
  %v611 = vunpack.c.l.b16 %v87
  %v612 = vunpack.c.h.b16 %v87
  %v613 = vunpack.c.l.b16 %v88
  %v614 = vunpack.c.h.b16 %v88
  %v615 = vunpack.c.l.b16 %v89
  %v616 = vunpack.c.h.b16 %v89
  %v617 = vunpack.c.l.b16 %v90
  %v618 = vunpack.c.h.b16 %v90
  %v619 = vunpack.c.l.b16 %v91
  %v620 = vunpack.c.h.b16 %v91
  %v621 = vunpack.c.l.b16 %v92
  %v622 = vunpack.c.h.b16 %v92
  %v623 = vunpack.c.l.b16 %v93
  %v624 = vunpack.c.h.b16 %v93
  %v625 = vunpack.c.l.b16 %v94
  %v626 = vunpack.c.h.b16 %v94
  %v627 = vunpack.c.l.b16 %v95
  %v628 = vunpack.c.h.b16 %v95
  %v629 = vunpack.c.l.b16 %v96
  %v630 = vunpack.c.h.b16 %v96
  %v631 = vunpack.c.l.b16 %v97
  %v632 = vunpack.c.h.b16 %v97
  %v633 = vunpack.c.l.b16 %v98
  %v634 = vunpack.c.h.b16 %v98
  %v635 = vunpack.c.l.b16 %v99
  %v636 = vunpack.c.h.b16 %v99
  %v637 = vunpack.c.l.b16 %v100
  %v638 = vunpack.c.h.b16 %v100
  %v639 = vunpack.c.l.b16 %v101
  %v640 = vunpack.c.h.b16 %v101
  %v641 = vunpack.c.l.b16 %v102
  %v642 = vunpack.c.h.b16 %v102
  %v643 = vunpack.c.l.b16 %v103
  %v644 = vunpack.c.h.b16 %v103
  %v645 = vunpack.c.l.b16 %v104
  %v646 = vunpack.c.h.b16 %v104
  %v647 = vunpack.c.l.b16 %v105
  %v648 = vunpack.c.h.b16 %v105
  %v649 = vunpack.c.l.b16 %v106
  %v650 = vunpack.c.h.b16 %v106
  %v651 = vunpack.c.l.b16 %v107
  %v652 = vunpack.c.h.b16 %v107
  %v653 = vunpack.c.l.b16 %v108
  %v654 = vunpack.c.h.b16 %v108
  %v655 = vunpack.c.l.b16 %v109
  %v656 = vunpack.c.h.b16 %v109
  %v657 = vunpack.c.l.b16 %v110
  %v658 = vunpack.c.h.b16 %v110
  %v659 = vunpack.c.l.b16 %v111
  %v660 = vunpack.c.h.b16 %v111
  %v661 = vunpack.c.l.b16 %v112
  %v662 = vunpack.c.h.b16 %v112
  %v663 = vunpack.c.l.b16 %v113
  %v664 = vunpack.c.h.b16 %v113
  %v665 = vunpack.c.l.b16 %v114
  %v666 = vunpack.c.h.b16 %v114
  %v667 = vunpack.c.l.b16 %v115
  %v668 = vunpack.c.h.b16 %v115
  %v669 = vunpack.c.l.b16 %v116
  %v670 = vunpack.c.h.b16 %v116
  %v671 = vunpack.c.l.b16 %v117
  %v672 = vunpack.c.h.b16 %v117
  %v673 = vunpack.c.l.b16 %v118
  %v674 = vunpack.c.h.b16 %v118
  %v675 = vunpack.c.l.b16 %v119
  %v676 = vunpack.c.h.b16 %v119
  %v677 = vunpack.c.l.b16 %v120
  %v678 = vunpack.c.h.b16 %v120
  %v679 = vunpack.c.l.b16 %v121
  %v680 = vunpack.c.h.b16 %v121
  %v681 = vunpack.c.l.b16 %v122
  %v682 = vunpack.c.h.b16 %v122
  %v683 = vunpack.c.l.b16 %v123
  %v684 = vunpack.c.h.b16 %v123
  %v685 = vunpack.c.l.b16 %v124
  %v686 = vunpack.c.h.b16 %v124
  %v687 = vunpack.c.l.b16 %v125
  %v688 = vunpack.c.h.b16 %v125
  %v689 = vunpack.c.l.b16 %v126
  %v690 = vunpack.c.h.b16 %v126
  %v691 = vunpack.c.l.b16 %v127
  %v692 = vunpack.c.h.b16 %v127
  %v693 = vunpack.c.l.b16 %v128
  %v694 = vunpack.c.h.b16 %v128
  %v695 = vunpack.c.l.b16 %v129
  %v696 = vunpack.c.h.b16 %v129
  %v697 = vunpack.c.l.b16 %v130
  %v698 = vunpack.c.h.b16 %v130
  %v699 = vunpack.c.l.b16 %v131
  %v700 = vunpack.c.h.b16 %v131
  %v701 = vunpack.c.l.b16 %v132
  %v702 = vunpack.c.h.b16 %v132
  %v703 = vunpack.c.l.b16 %v133
  %v704 = vunpack.c.h.b16 %v133
  %v705 = vunpack.c.l.b16 %v134
  %v706 = vunpack.c.h.b16 %v134
  %v707 = vunpack.c.l.b16 %v135
  %v708 = vunpack.c.h.b16 %v135
  %v709 = vunpack.c.l.b16 %v136
  %v710 = vunpack.c.h.b16 %v136
  %v711 = vunpack.c.l.b16 %v137
  %v712 = vunpack.c.h.b16 %v137
  %v713 = vunpack.c.l.b16 %v138
  %v714 = vunpack.c.h.b16 %v138
  %v715 = vunpack.c.l.b16 %v139
  %v716 = vunpack.c.h.b16 %v139
  %v717 = vunpack.c.l.b16 %v140
  %v718 = vunpack.c.h.b16 %v140
  %v719 = vunpack.c.l.b16 %v141
  %v720 = vunpack.c.h.b16 %v141
  %v721 = vunpack.c.l.b16 %v142
  %v722 = vunpack.c.h.b16 %v142
  %v723 = vunpack.c.l.b16 %v143
  %v724 = vunpack.c.h.b16 %v143
  %v725 = vunpack.c.l.b16 %v144
  %v726 = vunpack.c.h.b16 %v144
  %v727 = vunpack.c.l.b16 %v145
  %v728 = vunpack.c.h.b16 %v145
  %v729 = vunpack.c.l.b16 %v146
  %v730 = vunpack.c.h.b16 %v146
  %v731 = vunpack.c.l.b16 %v147
  %v732 = vunpack.c.h.b16 %v147
  %v733 = vunpack.c.l.b16 %v148
  %v734 = vunpack.c.h.b16 %v148
  %v735 = vunpack.c.l.b16 %v149
  %v736 = vunpack.c.h.b16 %v149
  %v737 = vunpack.c.l.b16 %v150
  %v738 = vunpack.c.h.b16 %v150
  %v739 = vunpack.c.l.b16 %v151
  %v740 = vunpack.c.h.b16 %v151
  %v741 = vunpack.c.l.b16 %v152
  %v742 = vunpack.c.h.b16 %v152
  %v743 = vunpack.c.l.b16 %v153
  %v744 = vunpack.c.h.b16 %v153
  %v745 = vunpack.c.l.b16 %v154
  %v746 = vunpack.c.h.b16 %v154
  %v747 = vunpack.c.l.b16 %v155
  %v748 = vunpack.c.h.b16 %v155
  %v749 = vunpack.c.l.b16 %v156
  %v750 = vunpack.c.h.b16 %v156
  %v751 = vunpack.c.l.b16 %v157
  %v752 = vunpack.c.h.b16 %v157
  %v753 = vunpack.c.l.b16 %v158
  %v754 = vunpack.c.h.b16 %v158
  %v755 = vunpack.c.l.b16 %v159
  %v756 = vunpack.c.h.b16 %v159
  %v757 = vunpack.c.l.b16 %v160
  %v758 = vunpack.c.h.b16 %v160
  %v759 = vunpack.c.l.b16 %v161
  %v760 = vunpack.c.h.b16 %v161
  %v761 = vunpack.c.l.b16 %v162
  %v762 = vunpack.c.h.b16 %v162
  %v763 = vunpack.c.l.b16 %v163
  %v764 = vunpack.c.h.b16 %v163
  %v765 = vunpack.c.l.b16 %v164
  %v766 = vunpack.c.h.b16 %v164
  %v767 = vunpack.c.l.b16 %v165
  %v768 = vunpack.c.h.b16 %v165
  %v769 = vunpack.c.l.b16 %v166
  %v770 = vunpack.c.h.b16 %v166
  %v771 = vunpack.c.l.b16 %v167
  %v772 = vunpack.c.h.b16 %v167
  %v773 = vunpack.c.l.b16 %v168
  %v774 = vunpack.c.h.b16 %v168
  %v775 = vunpack.c.l.b16 %v169
  %v776 = vunpack.c.h.b16 %v169
  %v777 = vunpack.c.l.b16 %v170
  %v778 = vunpack.c.h.b16 %v170
  %v779 = vunpack.c.l.b16 %v171
  %v780 = vunpack.c.h.b16 %v171
  %v781 = vunpack.c.l.b16 %v172
  %v782 = vunpack.c.h.b16 %v172
  %v783 = vunpack.c.l.b16 %v173
  %v784 = vunpack.c.h.b16 %v173
  %v785 = vunpack.c.l.b16 %v174
  %v786 = vunpack.c.h.b16 %v174
  %v787 = vunpack.c.l.b16 %v175
  %v788 = vunpack.c.h.b16 %v175
  %v789 = vunpack.c.l.b16 %v176
  %v790 = vunpack.c.h.b16 %v176
  %v791 = vunpack.c.l.b16 %v177
  %v792 = vunpack.c.h.b16 %v177
  %v793 = vunpack.c.l.b16 %v178
  %v794 = vunpack.c.h.b16 %v178
  %v795 = vunpack.c.l.b16 %v179
  %v796 = vunpack.c.h.b16 %v179
  %v797 = vunpack.c.l.b16 %v180
  %v798 = vunpack.c.h.b16 %v180
  %v799 = vunpack.c.l.b16 %v181
  %v800 = vunpack.c.h.b16 %v181
  %v801 = vunpack.c.l.b16 %v182
  %v802 = vunpack.c.h.b16 %v182
  %v803 = vunpack.c.l.b16 %v183
  %v804 = vunpack.c.h.b16 %v183
  %v805 = vunpack.c.l.b16 %v184
  %v806 = vunpack.c.h.b16 %v184
  %v807 = vunpack.c.l.b16 %v185
  %v808 = vunpack.c.h.b16 %v185
  %v809 = vunpack.c.l.b16 %v186
  %v810 = vunpack.c.h.b16 %v186
  %v811 = vunpack.c.l.b16 %v187
  %v812 = vunpack.c.h.b16 %v187
  %v813 = vunpack.c.l.b16 %v188
  %v814 = vunpack.c.h.b16 %v188
  %v815 = vunpack.c.l.b16 %v189
  %v816 = vunpack.c.h.b16 %v189
  %v817 = vunpack.c.l.b16 %v190
  %v818 = vunpack.c.h.b16 %v190
  %v819 = vunpack.c.l.b16 %v191
  %v820 = vunpack.c.h.b16 %v191
  %v821 = vunpack.c.l.b16 %v192
  %v822 = vunpack.c.h.b16 %v192
  %v823 = vunpack.c.l.b16 %v193
  %v824 = vunpack.c.h.b16 %v193
  %v825 = vunpack.c.l.b16 %v194
  %v826 = vunpack.c.h.b16 %v194
  %v827 = vunpack.c.l.b16 %v195
  %v828 = vunpack.c.h.b16 %v195
  %v829 = vunpack.c.l.b16 %v196
  %v830 = vunpack.c.h.b16 %v196
  %v831 = vunpack.c.l.b16 %v197
  %v832 = vunpack.c.h.b16 %v197
  %v833 = vunpack.c.l.b16 %v198
  %v834 = vunpack.c.h.b16 %v198
  %v835 = vunpack.c.l.b16 %v199
  %v836 = vunpack.c.h.b16 %v199
  %v837 = vunpack.c.l.b16 %v200
  %v838 = vunpack.c.h.b16 %v200
  %v839 = vunpack.c.l.b16 %v201
  %v840 = vunpack.c.h.b16 %v201
  %v841 = vunpack.c.l.b16 %v202
  %v842 = vunpack.c.h.b16 %v202
  %v843 = vunpack.c.l.b16 %v203
  %v844 = vunpack.c.h.b16 %v203
  %v845 = vunpack.c.l.b16 %v204
  %v846 = vunpack.c.h.b16 %v204
  %v847 = vunpack.c.l.b16 %v205
  %v848 = vunpack.c.h.b16 %v205
  %v849 = vunpack.c.l.b16 %v206
  %v850 = vunpack.c.h.b16 %v206
  %v851 = vunpack.c.l.b16 %v207
  %v852 = vunpack.c.h.b16 %v207
  %v853 = vunpack.c.l.b16 %v208
  %v854 = vunpack.c.h.b16 %v208
  %v855 = vunpack.c.l.b16 %v209
  %v856 = vunpack.c.h.b16 %v209
  %v857 = vunpack.c.l.b16 %v210
  %v858 = vunpack.c.h.b16 %v210
  %v859 = vunpack.c.l.b16 %v211
  %v860 = vunpack.c.h.b16 %v211
  %v861 = vunpack.c.l.b16 %v212
  %v862 = vunpack.c.h.b16 %v212
  %v863 = vunpack.c.l.b16 %v213
  %v864 = vunpack.c.h.b16 %v213
  %v865 = vunpack.c.l.b16 %v214
  %v866 = vunpack.c.h.b16 %v214
  %v867 = vunpack.c.l.b16 %v215
  %v868 = vunpack.c.h.b16 %v215
  %v869 = vunpack.c.l.b16 %v216
  %v870 = vunpack.c.h.b16 %v216
  %v871 = vunpack.c.l.b16 %v217
  %v872 = vunpack.c.h.b16 %v217
  %v873 = vunpack.c.l.b16 %v218
  %v874 = vunpack.c.h.b16 %v218
  %v875 = vunpack.c.l.b16 %v219
  %v876 = vunpack.c.h.b16 %v219
  %v877 = vunpack.c.l.b16 %v220
  %v878 = vunpack.c.h.b16 %v220
  %v879 = vunpack.c.l.b16 %v221
  %v880 = vunpack.c.h.b16 %v221
  %v881 = vunpack.c.l.b16 %v222
  %v882 = vunpack.c.h.b16 %v222
  %v883 = vunpack.c.l.b16 %v223
  %v884 = vunpack.c.h.b16 %v223
  %v885 = vunpack.c.l.b16 %v224
  %v886 = vunpack.c.h.b16 %v224
  %v887 = vunpack.c.l.b16 %v225
  %v888 = vunpack.c.h.b16 %v225
  %v889 = vunpack.c.l.b16 %v226
  %v890 = vunpack.c.h.b16 %v226
  %v891 = vunpack.c.l.b16 %v227
  %v892 = vunpack.c.h.b16 %v227
  %v893 = vunpack.c.l.b16 %v228
  %v894 = vunpack.c.h.b16 %v228
  %v895 = vunpack.c.l.b16 %v229
  %v896 = vunpack.c.h.b16 %v229
  %v897 = vunpack.c.l.b16 %v230
  %v898 = vunpack.c.h.b16 %v230
  %v899 = vunpack.c.l.b16 %v231
  %v900 = vunpack.c.h.b16 %v231
  %v901 = vunpack.c.l.b16 %v232
  %v902 = vunpack.c.h.b16 %v232
  %v903 = vunpack.c.l.b16 %v233
  %v904 = vunpack.c.h.b16 %v233
  %v905 = vunpack.c.l.b16 %v234
  %v906 = vunpack.c.h.b16 %v234
  %v907 = vunpack.c.l.b16 %v235
  %v908 = vunpack.c.h.b16 %v235
  %v909 = vunpack.c.l.b16 %v236
  %v910 = vunpack.c.h.b16 %v236
  %v911 = vunpack.c.l.b16 %v237
  %v912 = vunpack.c.h.b16 %v237
  %v913 = vunpack.c.l.b16 %v238
  %v914 = vunpack.c.h.b16 %v238
  %v915 = vunpack.c.l.b16 %v239
  %v916 = vunpack.c.h.b16 %v239
  %v917 = vunpack.c.l.b16 %v240
  %v918 = vunpack.c.h.b16 %v240
  %v919 = vunpack.c.l.b16 %v241
  %v920 = vunpack.c.h.b16 %v241
  %v921 = vunpack.c.l.b16 %v242
  %v922 = vunpack.c.h.b16 %v242
  %v923 = vunpack.c.l.b16 %v243
  %v924 = vunpack.c.h.b16 %v243
  %v925 = vunpack.c.l.b16 %v244
  %v926 = vunpack.c.h.b16 %v244
  %v927 = vunpack.c.l.b16 %v245
  %v928 = vunpack.c.h.b16 %v245
  %v929 = vunpack.c.l.b16 %v246
  %v930 = vunpack.c.h.b16 %v246
  %v931 = vunpack.c.l.b16 %v247
  %v932 = vunpack.c.h.b16 %v247
  %v933 = vunpack.c.l.b16 %v248
  %v934 = vunpack.c.h.b16 %v248
  %v935 = vunpack.c.l.b16 %v249
  %v936 = vunpack.c.h.b16 %v249
  %v937 = vunpack.c.l.b16 %v250
  %v938 = vunpack.c.h.b16 %v250
  %v939 = vunpack.c.l.b16 %v251
  %v940 = vunpack.c.h.b16 %v251
  %v941 = vunpack.c.l.b16 %v252
  %v942 = vunpack.c.h.b16 %v252
  %v943 = vunpack.c.l.b16 %v253
  %v944 = vunpack.c.h.b16 %v253
  %v945 = vunpack.c.l.b16 %v254
  %v946 = vunpack.c.h.b16 %v254
  %v947 = vunpack.c.l.b16 %v255
  %v948 = vunpack.c.h.b16 %v255
  %v949 = vunpack.c.l.b16 %v256
  %v950 = vunpack.c.h.b16 %v256
  %v951 = vunpack.c.l.b16 %v257
  %v952 = vunpack.c.h.b16 %v257
  %v953 = vunpack.c.l.b16 %v258
  %v954 = vunpack.c.h.b16 %v258
  %v955 = vunpack.c.l.b16 %v259
  %v956 = vunpack.c.h.b16 %v259
  %v957 = vunpack.c.l.b16 %v260
  %v958 = vunpack.c.h.b16 %v260
  %v959 = vunpack.c.l.b16 %v261
  %v960 = vunpack.c.h.b16 %v261
  %v961 = vunpack.c.l.b16 %v262
  %v962 = vunpack.c.h.b16 %v262
  %v963 = vunpack.c.l.b16 %v263
  %v964 = vunpack.c.h.b16 %v263
  %v965 = vunpack.c.l.b16 %v264
  %v966 = vunpack.c.h.b16 %v264
  %v967 = vunpack.c.l.b16 %v265
  %v968 = vunpack.c.h.b16 %v265
  %v969 = vunpack.c.l.b16 %v266
  %v970 = vunpack.c.h.b16 %v266
  %v971 = vunpack.c.l.b16 %v267
  %v972 = vunpack.c.h.b16 %v267
  %v973 = vunpack.c.l.b16 %v268
  %v974 = vunpack.c.h.b16 %v268
  %v975 = vunpack.c.l.b16 %v269
  %v976 = vunpack.c.h.b16 %v269
  %v977 = vunpack.c.l.b16 %v270
  %v978 = vunpack.c.h.b16 %v270
  %v979 = vunpack.c.l.b16 %v271
  %v980 = vunpack.c.h.b16 %v271
  %v981 = vunpack.c.l.b16 %v272
  %v982 = vunpack.c.h.b16 %v272
  %v983 = vunpack.c.l.b16 %v273
  %v984 = vunpack.c.h.b16 %v273
  %v985 = vunpack.c.l.b16 %v274
  %v986 = vunpack.c.h.b16 %v274
  %v987 = vunpack.c.l.b16 %v275
  %v988 = vunpack.c.h.b16 %v275
  %v989 = vunpack.c.l.b16 %v276
  %v990 = vunpack.c.h.b16 %v276
  %v991 = vunpack.c.l.b16 %v277
  %v992 = vunpack.c.h.b16 %v277
  %v993 = vunpack.c.l.b16 %v278
  %v994 = vunpack.c.h.b16 %v278
  %v995 = vunpack.c.l.b16 %v279
  %v996 = vunpack.c.h.b16 %v279
  %v997 = vunpack.c.l.b16 %v280
  %v998 = vunpack.c.h.b16 %v280
  %v999 = vunpack.c.l.b16 %v281
  %v1000 = vunpack.c.h.b16 %v281
  %v1001 = vunpack.c.l.b16 %v282
  %v1002 = vunpack.c.h.b16 %v282
  %v1003 = vunpack.c.l.b16 %v283
  %v1004 = vunpack.c.h.b16 %v283
  %v1005 = vunpack.c.l.b16 %v284
  %v1006 = vunpack.c.h.b16 %v284
  %v1007 = vunpack.c.l.b16 %v285
  %v1008 = vunpack.c.h.b16 %v285
  %v1009 = vunpack.c.l.b16 %v286
  %v1010 = vunpack.c.h.b16 %v286
  %v1011 = vunpack.c.l.b16 %v287
  %v1012 = vunpack.c.h.b16 %v287
  %v1013 = vunpack.c.l.b16 %v288
  %v1014 = vunpack.c.h.b16 %v288
  %v1015 = vunpack.c.l.b16 %v289
  %v1016 = vunpack.c.h.b16 %v289
  %v1017 = vunpack.c.l.b16 %v290
  %v1018 = vunpack.c.h.b16 %v290
  %v1019 = vunpack.c.l.b16 %v291
  %v1020 = vunpack.c.h.b16 %v291
  %v1021 = vunpack.c.l.b16 %v292
  %v1022 = vunpack.c.h.b16 %v292
  %v1023 = vunpack.c.l.b16 %v293
  %v1024 = vunpack.c.h.b16 %v293
  %v1025 = vunpack.c.l.b16 %v294
  %v1026 = vunpack.c.h.b16 %v294
  %v1027 = vunpack.c.l.b16 %v295
  %v1028 = vunpack.c.h.b16 %v295
  %v1029 = vunpack.c.l.b16 %v296
  %v1030 = vunpack.c.h.b16 %v296
  %v1031 = vunpack.c.l.b16 %v297
  %v1032 = vunpack.c.h.b16 %v297
  %v1033 = vunpack.c.l.b16 %v298
  %v1034 = vunpack.c.h.b16 %v298
  %v1035 = vunpack.c.l.b16 %v299
  %v1036 = vunpack.c.h.b16 %v299
  %v1037 = vunpack.c.l.b16 %v300
  %v1038 = vunpack.c.h.b16 %v300
  %v1039 = vunpack.c.l.b16 %v301
  %v1040 = vunpack.c.h.b16 %v301
  %v1041 = vunpack.c.l.b16 %v302
  %v1042 = vunpack.c.h.b16 %v302
  %v1043 = vunpack.c.l.b16 %v303
  %v1044 = vunpack.c.h.b16 %v303
  %v1045 = vunpack.c.l.b16 %v304
  %v1046 = vunpack.c.h.b16 %v304
  %v1047 = vunpack.c.l.b16 %v305
  %v1048 = vunpack.c.h.b16 %v305
  %v1049 = vunpack.c.l.b16 %v306
  %v1050 = vunpack.c.h.b16 %v306
  %v1051 = vunpack.c.l.b16 %v307
  %v1052 = vunpack.c.h.b16 %v307
  %v1053 = vunpack.c.l.b16 %v308
  %v1054 = vunpack.c.h.b16 %v308
  %v1055 = vunpack.c.l.b16 %v309
  %v1056 = vunpack.c.h.b16 %v309
  %v1057 = vunpack.c.l.b16 %v310
  %v1058 = vunpack.c.h.b16 %v310
  %v1059 = vunpack.c.l.b16 %v311
  %v1060 = vunpack.c.h.b16 %v311
  %v1061 = vunpack.c.l.b16 %v312
  %v1062 = vunpack.c.h.b16 %v312
  %v1063 = vunpack.c.l.b16 %v313
  %v1064 = vunpack.c.h.b16 %v313
  %v1065 = vunpack.c.l.b16 %v314
  %v1066 = vunpack.c.h.b16 %v314
  %v1067 = vunpack.c.l.b16 %v315
  %v1068 = vunpack.c.h.b16 %v315
  %v1069 = vunpack.c.l.b16 %v316
  %v1070 = vunpack.c.h.b16 %v316
  %v1071 = vunpack.c.l.b16 %v317
  %v1072 = vunpack.c.h.b16 %v317
  %v1073 = vunpack.c.l.b16 %v318
  %v1074 = vunpack.c.h.b16 %v318
  %v1075 = vunpack.c.l.b16 %v319
  %v1076 = vunpack.c.h.b16 %v319
  %v1077 = vunpack.c.l.b16 %v320
  %v1078 = vunpack.c.h.b16 %v320
  %v1079 = vunpack.c.l.b16 %v321
  %v1080 = vunpack.c.h.b16 %v321
  %v1081 = vunpack.c.l.b16 %v322
  %v1082 = vunpack.c.h.b16 %v322
  %v1083 = vunpack.c.l.b16 %v323
  %v1084 = vunpack.c.h.b16 %v323
  %v1085 = vunpack.c.l.b16 %v324
  %v1086 = vunpack.c.h.b16 %v324
  %v1087 = vunpack.c.l.b16 %v325
  %v1088 = vunpack.c.h.b16 %v325
  %v1089 = vunpack.c.l.b16 %v326
  %v1090 = vunpack.c.h.b16 %v326
  %v1091 = vunpack.c.l.b16 %v327
  %v1092 = vunpack.c.h.b16 %v327
  %v1093 = vunpack.c.l.b16 %v328
  %v1094 = vunpack.c.h.b16 %v328
  %v1095 = vunpack.c.l.b16 %v329
  %v1096 = vunpack.c.h.b16 %v329
  %v1097 = vunpack.c.l.b16 %v330
  %v1098 = vunpack.c.h.b16 %v330
  %v1099 = vpack.c.b16 %v591, %v587
  %v1100 = vpack.c.b16 %v592, %v588
  %v1101 = vpack.c.b16 %v593, %v589
  %v1102 = vpack.c.b16 %v594, %v590
  %v1103 = vpack.c.b16 %v599, %v595
  %v1104 = vpack.c.b16 %v600, %v596
  %v1105 = vpack.c.b16 %v601, %v597
  %v1106 = vpack.c.b16 %v602, %v598
  %v1107 = vpack.c.b16 %v607, %v603
  %v1108 = vpack.c.b16 %v608, %v604
  %v1109 = vpack.c.b16 %v609, %v605
  %v1110 = vpack.c.b16 %v610, %v606
  %v1111 = vpack.c.b16 %v615, %v611
  %v1112 = vpack.c.b16 %v616, %v612
  %v1113 = vpack.c.b16 %v617, %v613
  %v1114 = vpack.c.b16 %v618, %v614
  %v1115 = vpack.c.b16 %v623, %v619
  %v1116 = vpack.c.b16 %v624, %v620
  %v1117 = vpack.c.b16 %v625, %v621
  %v1118 = vpack.c.b16 %v626, %v622
  %v1119 = vpack.c.b16 %v631, %v627
  %v1120 = vpack.c.b16 %v632, %v628
  %v1121 = vpack.c.b16 %v633, %v629
  %v1122 = vpack.c.b16 %v634, %v630
  %v1123 = vpack.c.b16 %v639, %v635
  %v1124 = vpack.c.b16 %v640, %v636
  %v1125 = vpack.c.b16 %v641, %v637
  %v1126 = vpack.c.b16 %v642, %v638
  %v1127 = vpack.c.b16 %v647, %v643
  %v1128 = vpack.c.b16 %v648, %v644
  %v1129 = vpack.c.b16 %v649, %v645
  %v1130 = vpack.c.b16 %v650, %v646
  %v1131 = vpack.c.b16 %v655, %v651
  %v1132 = vpack.c.b16 %v656, %v652
  %v1133 = vpack.c.b16 %v657, %v653
  %v1134 = vpack.c.b16 %v658, %v654
  %v1135 = vpack.c.b16 %v663, %v659
  %v1136 = vpack.c.b16 %v664, %v660
  %v1137 = vpack.c.b16 %v665, %v661
  %v1138 = vpack.c.b16 %v666, %v662
  %v1139 = vpack.c.b16 %v671, %v667
  %v1140 = vpack.c.b16 %v672, %v668
  %v1141 = vpack.c.b16 %v673, %v669
  %v1142 = vpack.c.b16 %v674, %v670
  %v1143 = vpack.c.b16 %v679, %v675
  %v1144 = vpack.c.b16 %v680, %v676
  %v1145 = vpack.c.b16 %v681, %v677
  %v1146 = vpack.c.b16 %v682, %v678
  %v1147 = vpack.c.b16 %v687, %v683
  %v1148 = vpack.c.b16 %v688, %v684
  %v1149 = vpack.c.b16 %v689, %v685
  %v1150 = vpack.c.b16 %v690, %v686
  %v1151 = vpack.c.b16 %v695, %v691
  %v1152 = vpack.c.b16 %v696, %v692
  %v1153 = vpack.c.b16 %v697, %v693
  %v1154 = vpack.c.b16 %v698, %v694
  %v1155 = vpack.c.b16 %v703, %v699
  %v1156 = vpack.c.b16 %v704, %v700
  %v1157 = vpack.c.b16 %v705, %v701
  %v1158 = vpack.c.b16 %v706, %v702
  %v1159 = vpack.c.b16 %v711, %v707
  %v1160 = vpack.c.b16 %v712, %v708
  %v1161 = vpack.c.b16 %v713, %v709
  %v1162 = vpack.c.b16 %v714, %v710
  %v1163 = vpack.c.b16 %v719, %v715
  %v1164 = vpack.c.b16 %v720, %v716
  %v1165 = vpack.c.b16 %v721, %v717
  %v1166 = vpack.c.b16 %v722, %v718
  %v1167 = vpack.c.b16 %v727, %v723
  %v1168 = vpack.c.b16 %v728, %v724
  %v1169 = vpack.c.b16 %v729, %v725
  %v1170 = vpack.c.b16 %v730, %v726
  %v1171 = vpack.c.b16 %v735, %v731
  %v1172 = vpack.c.b16 %v736, %v732
  %v1173 = vpack.c.b16 %v737, %v733
  %v1174 = vpack.c.b16 %v738, %v734
  %v1175 = vpack.c.b16 %v743, %v739
  %v1176 = vpack.c.b16 %v744, %v740
  %v1177 = vpack.c.b16 %v745, %v741
  %v1178 = vpack.c.b16 %v746, %v742
  %v1179 = vpack.c.b16 %v751, %v747
  %v1180 = vpack.c.b16 %v752, %v748
  %v1181 = vpack.c.b16 %v753, %v749
  %v1182 = vpack.c.b16 %v754, %v750
  %v1183 = vpack.c.b16 %v759, %v755
  %v1184 = vpack.c.b16 %v760, %v756
  %v1185 = vpack.c.b16 %v761, %v757
  %v1186 = vpack.c.b16 %v762, %v758
  %v1187 = vpack.c.b16 %v767, %v763
  %v1188 = vpack.c.b16 %v768, %v764
  %v1189 = vpack.c.b16 %v769, %v765
  %v1190 = vpack.c.b16 %v770, %v766
  %v1191 = vpack.c.b16 %v775, %v771
  %v1192 = vpack.c.b16 %v776, %v772
  %v1193 = vpack.c.b16 %v777, %v773
  %v1194 = vpack.c.b16 %v778, %v774
  %v1195 = vpack.c.b16 %v783, %v779
  %v1196 = vpack.c.b16 %v784, %v780
  %v1197 = vpack.c.b16 %v785, %v781
  %v1198 = vpack.c.b16 %v786, %v782
  %v1199 = vpack.c.b16 %v791, %v787
  %v1200 = vpack.c.b16 %v792, %v788
  %v1201 = vpack.c.b16 %v793, %v789
  %v1202 = vpack.c.b16 %v794, %v790
  %v1203 = vpack.c.b16 %v799, %v795
  %v1204 = vpack.c.b16 %v800, %v796
  %v1205 = vpack.c.b16 %v801, %v797
  %v1206 = vpack.c.b16 %v802, %v798
  %v1207 = vpack.c.b16 %v807, %v803
  %v1208 = vpack.c.b16 %v808, %v804
  %v1209 = vpack.c.b16 %v809, %v805
  %v1210 = vpack.c.b16 %v810, %v806
  %v1211 = vpack.c.b16 %v815, %v811
  %v1212 = vpack.c.b16 %v816, %v812
  %v1213 = vpack.c.b16 %v817, %v813
  %v1214 = vpack.c.b16 %v818, %v814
  %v1215 = vpack.c.b16 %v823, %v819
  %v1216 = vpack.c.b16 %v824, %v820
  %v1217 = vpack.c.b16 %v825, %v821
  %v1218 = vpack.c.b16 %v826, %v822
  %v1219 = vpack.c.b16 %v831, %v827
  %v1220 = vpack.c.b16 %v832, %v828
  %v1221 = vpack.c.b16 %v833, %v829
  %v1222 = vpack.c.b16 %v834, %v830
  %v1223 = vpack.c.b16 %v839, %v835
  %v1224 = vpack.c.b16 %v840, %v836
  %v1225 = vpack.c.b16 %v841, %v837
  %v1226 = vpack.c.b16 %v842, %v838
  %v1227 = vpack.c.b16 %v847, %v843
  %v1228 = vpack.c.b16 %v848, %v844
  %v1229 = vpack.c.b16 %v849, %v845
  %v1230 = vpack.c.b16 %v850, %v846
  %v1231 = vpack.c.b16 %v855, %v851
  %v1232 = vpack.c.b16 %v856, %v852
  %v1233 = vpack.c.b16 %v857, %v853
  %v1234 = vpack.c.b16 %v858, %v854
  %v1235 = vpack.c.b16 %v863, %v859
  %v1236 = vpack.c.b16 %v864, %v860
  %v1237 = vpack.c.b16 %v865, %v861
  %v1238 = vpack.c.b16 %v866, %v862
  %v1239 = vpack.c.b16 %v871, %v867
  %v1240 = vpack.c.b16 %v872, %v868
  %v1241 = vpack.c.b16 %v873, %v869
  %v1242 = vpack.c.b16 %v874, %v870
  %v1243 = vpack.c.b16 %v879, %v875
  %v1244 = vpack.c.b16 %v880, %v876
  %v1245 = vpack.c.b16 %v881, %v877
  %v1246 = vpack.c.b16 %v882, %v878
  %v1247 = vpack.c.b16 %v887, %v883
  %v1248 = vpack.c.b16 %v888, %v884
  %v1249 = vpack.c.b16 %v889, %v885
  %v1250 = vpack.c.b16 %v890, %v886
  %v1251 = vpack.c.b16 %v895, %v891
  %v1252 = vpack.c.b16 %v896, %v892
  %v1253 = vpack.c.b16 %v897, %v893
  %v1254 = vpack.c.b16 %v898, %v894
  %v1255 = vpack.c.b16 %v903, %v899
  %v1256 = vpack.c.b16 %v904, %v900
  %v1257 = vpack.c.b16 %v905, %v901
  %v1258 = vpack.c.b16 %v906, %v902
  %v1259 = vpack.c.b16 %v911, %v907
  %v1260 = vpack.c.b16 %v912, %v908
  %v1261 = vpack.c.b16 %v913, %v909
  %v1262 = vpack.c.b16 %v914, %v910
  %v1263 = vpack.c.b16 %v919, %v915
  %v1264 = vpack.c.b16 %v920, %v916
  %v1265 = vpack.c.b16 %v921, %v917
  %v1266 = vpack.c.b16 %v922, %v918
  %v1267 = vpack.c.b16 %v927, %v923
  %v1268 = vpack.c.b16 %v928, %v924
  %v1269 = vpack.c.b16 %v929, %v925
  %v1270 = vpack.c.b16 %v930, %v926
  %v1271 = vpack.c.b16 %v935, %v931
  %v1272 = vpack.c.b16 %v936, %v932
  %v1273 = vpack.c.b16 %v937, %v933
  %v1274 = vpack.c.b16 %v938, %v934
  %v1275 = vpack.c.b16 %v943, %v939
  %v1276 = vpack.c.b16 %v944, %v940
  %v1277 = vpack.c.b16 %v945, %v941
  %v1278 = vpack.c.b16 %v946, %v942
  %v1279 = vpack.c.b16 %v951, %v947
  %v1280 = vpack.c.b16 %v952, %v948
  %v1281 = vpack.c.b16 %v953, %v949
  %v1282 = vpack.c.b16 %v954, %v950
  %v1283 = vpack.c.b16 %v959, %v955
  %v1284 = vpack.c.b16 %v960, %v956
  %v1285 = vpack.c.b16 %v961, %v957
  %v1286 = vpack.c.b16 %v962, %v958
  %v1287 = vpack.c.b16 %v967, %v963
  %v1288 = vpack.c.b16 %v968, %v964
  %v1289 = vpack.c.b16 %v969, %v965
  %v1290 = vpack.c.b16 %v970, %v966
  %v1291 = vpack.c.b16 %v975, %v971
  %v1292 = vpack.c.b16 %v976, %v972
  %v1293 = vpack.c.b16 %v977, %v973
  %v1294 = vpack.c.b16 %v978, %v974
  %v1295 = vpack.c.b16 %v983, %v979
  %v1296 = vpack.c.b16 %v984, %v980
  %v1297 = vpack.c.b16 %v985, %v981
  %v1298 = vpack.c.b16 %v986, %v982
  %v1299 = vpack.c.b16 %v991, %v987
  %v1300 = vpack.c.b16 %v992, %v988
  %v1301 = vpack.c.b16 %v993, %v989
  %v1302 = vpack.c.b16 %v994, %v990
  %v1303 = vpack.c.b16 %v999, %v995
  %v1304 = vpack.c.b16 %v1000, %v996
  %v1305 = vpack.c.b16 %v1001, %v997
  %v1306 = vpack.c.b16 %v1002, %v998
  %v1307 = vpack.c.b16 %v1007, %v1003
  %v1308 = vpack.c.b16 %v1008, %v1004
  %v1309 = vpack.c.b16 %v1009, %v1005
  %v1310 = vpack.c.b16 %v1010, %v1006
  %v1311 = vpack.c.b16 %v1015, %v1011
  %v1312 = vpack.c.b16 %v1016, %v1012
  %v1313 = vpack.c.b16 %v1017, %v1013
  %v1314 = vpack.c.b16 %v1018, %v1014
  %v1315 = vpack.c.b16 %v1023, %v1019
  %v1316 = vpack.c.b16 %v1024, %v1020
  %v1317 = vpack.c.b16 %v1025, %v1021
  %v1318 = vpack.c.b16 %v1026, %v1022
  %v1319 = vpack.c.b16 %v1031, %v1027
  %v1320 = vpack.c.b16 %v1032, %v1028
  %v1321 = vpack.c.b16 %v1033, %v1029
  %v1322 = vpack.c.b16 %v1034, %v1030
  %v1323 = vpack.c.b16 %v1039, %v1035
  %v1324 = vpack.c.b16 %v1040, %v1036
  %v1325 = vpack.c.b16 %v1041, %v1037
  %v1326 = vpack.c.b16 %v1042, %v1038
  %v1327 = vpack.c.b16 %v1047, %v1043
  %v1328 = vpack.c.b16 %v1048, %v1044
  %v1329 = vpack.c.b16 %v1049, %v1045
  %v1330 = vpack.c.b16 %v1050, %v1046
  %v1331 = vpack.c.b16 %v1055, %v1051
  %v1332 = vpack.c.b16 %v1056, %v1052
  %v1333 = vpack.c.b16 %v1057, %v1053
  %v1334 = vpack.c.b16 %v1058, %v1054
  %v1335 = vpack.c.b16 %v1063, %v1059
  %v1336 = vpack.c.b16 %v1064, %v1060
  %v1337 = vpack.c.b16 %v1065, %v1061
  %v1338 = vpack.c.b16 %v1066, %v1062
  %v1339 = vpack.c.b16 %v1071, %v1067
  %v1340 = vpack.c.b16 %v1072, %v1068
  %v1341 = vpack.c.b16 %v1073, %v1069
  %v1342 = vpack.c.b16 %v1074, %v1070
  %v1343 = vpack.c.b16 %v1079, %v1075
  %v1344 = vpack.c.b16 %v1080, %v1076
  %v1345 = vpack.c.b16 %v1081, %v1077
  %v1346 = vpack.c.b16 %v1082, %v1078
  %v1347 = vpack.c.b16 %v1087, %v1083
  %v1348 = vpack.c.b16 %v1088, %v1084
  %v1349 = vpack.c.b16 %v1089, %v1085
  %v1350 = vpack.c.b16 %v1090, %v1086
  %v1351 = vpack.c.b16 %v1095, %v1091
  %v1352 = vpack.c.b16 %v1096, %v1092
  %v1353 = vpack.c.b16 %v1097, %v1093
  %v1354 = vpack.c.b16 %v1098, %v1094
  %1611 = vmatprep.subr.bf16.mxu0 %v1100
  %1612 = vmatpush1.bf16.msra.mxu0 %v1099
  %1613 = vmatprep.subr.bf16.mxu0 %v1104
  %1614 = vmatpush1.bf16.msra.mxu0 %v1103
  %1615 = vmatprep.subr.bf16.mxu0 %v1108
  %1616 = vmatpush1.bf16.msra.mxu0 %v1107
  %1617 = vmatprep.subr.bf16.mxu0 %v1112
  %1618 = vmatpush1.bf16.msra.mxu0 %v1111
  %1619 = vmatprep.subr.bf16.mxu0 %v1116
  %1620 = vmatpush1.bf16.msra.mxu0 %v1115
  %1621 = vmatprep.subr.bf16.mxu0 %v1120
  %1622 = vmatpush1.bf16.msra.mxu0 %v1119
  %1623 = vmatprep.subr.bf16.mxu0 %v1124
  %1624 = vmatpush1.bf16.msra.mxu0 %v1123
  %1625 = vmatprep.subr.bf16.mxu0 %v1128
  %1626 = vmatpush1.bf16.msra.mxu0 %v1127
  %1627 = vmatprep.subr.bf16.mxu0 %v1132
  %1628 = vmatpush1.bf16.msra.mxu0 %v1131
  %1629 = vmatprep.subr.bf16.mxu0 %v1136
  %1630 = vmatpush1.bf16.msra.mxu0 %v1135
  %1631 = vmatprep.subr.bf16.mxu0 %v1140
  %1632 = vmatpush1.bf16.msra.mxu0 %v1139
  %1633 = vmatprep.subr.bf16.mxu0 %v1144
  %1634 = vmatpush1.bf16.msra.mxu0 %v1143
  %1635 = vmatprep.subr.bf16.mxu0 %v1148
  %1636 = vmatpush1.bf16.msra.mxu0 %v1147
  %1637 = vmatprep.subr.bf16.mxu0 %v1152
  %1638 = vmatpush1.bf16.msra.mxu0 %v1151
  %1639 = vmatprep.subr.bf16.mxu0 %v1156
  %1640 = vmatpush1.bf16.msra.mxu0 %v1155
  %1641 = vmatprep.subr.bf16.mxu0 %v1160
  %1642 = vmatpush1.bf16.msra.mxu0 %v1159
  %1643 = vmatprep.mubr.bf16.mxu0 %v68
  %1644 = vmatmul.mubr.bf16.gmra.mrb[0].mxu0 %v67
  %v1645 = vpop.f32.mrb[0].mxu0
  %v1646 = vadd.f32 0.0, %v1645
  %v1647 = vpop.f32.mrb[0].mxu0
  %v1648 = vadd.f32 0.0, %v1647
  %v1649 = vpop.f32.mrb[0].mxu0
  %v1650 = vpop.f32.mrb[0].mxu0
  %1651 = vdwg.mxu0
  %1652 = vmatprep.subr.bf16.mxu0 %v1164
  %1653 = vmatpush1.bf16.msra.mxu0 %v1163
  %1654 = vmatprep.subr.bf16.mxu0 %v1168
  %1655 = vmatpush1.bf16.msra.mxu0 %v1167
  %1656 = vmatprep.subr.bf16.mxu0 %v1172
  %1657 = vmatpush1.bf16.msra.mxu0 %v1171
  %1658 = vmatprep.subr.bf16.mxu0 %v1176
  %1659 = vmatpush1.bf16.msra.mxu0 %v1175
  %1660 = vmatprep.subr.bf16.mxu0 %v1180
  %1661 = vmatpush1.bf16.msra.mxu0 %v1179
  %1662 = vmatprep.subr.bf16.mxu0 %v1184
  %1663 = vmatpush1.bf16.msra.mxu0 %v1183
  %1664 = vmatprep.subr.bf16.mxu0 %v1188
  %1665 = vmatpush1.bf16.msra.mxu0 %v1187
  %1666 = vmatprep.subr.bf16.mxu0 %v1192
  %1667 = vmatpush1.bf16.msra.mxu0 %v1191
  %1668 = vmatprep.subr.bf16.mxu0 %v1196
  %1669 = vmatpush1.bf16.msra.mxu0 %v1195
  %1670 = vmatprep.subr.bf16.mxu0 %v1200
  %1671 = vmatpush1.bf16.msra.mxu0 %v1199
  %1672 = vmatprep.subr.bf16.mxu0 %v1204
  %1673 = vmatpush1.bf16.msra.mxu0 %v1203
  %1674 = vmatprep.subr.bf16.mxu0 %v1208
  %1675 = vmatpush1.bf16.msra.mxu0 %v1207
  %1676 = vmatprep.subr.bf16.mxu0 %v1212
  %1677 = vmatpush1.bf16.msra.mxu0 %v1211
  %1678 = vmatprep.subr.bf16.mxu0 %v1216
  %1679 = vmatpush1.bf16.msra.mxu0 %v1215
  %1680 = vmatprep.subr.bf16.mxu0 %v1220
  %1681 = vmatpush1.bf16.msra.mxu0 %v1219
  %1682 = vmatprep.subr.bf16.mxu0 %v1224
  %1683 = vmatpush1.bf16.msra.mxu0 %v1223
  %1684 = vmatprep.mubr.bf16.mxu0 %v70
  %1685 = vmatmul.mubr.bf16.gmra.mrb[0].mxu0 %v69
  %v1686 = vpop.f32.mrb[0].mxu0
  %v1687 = vadd.f32 %v1646, %v1686
  %v1688 = vpop.f32.mrb[0].mxu0
  %v1689 = vadd.f32 %v1648, %v1688
  %v1690 = vpop.f32.mrb[0].mxu0
  %v1691 = vpop.f32.mrb[0].mxu0
  %1692 = vdwg.mxu0
  %1693 = vmatprep.subr.bf16.mxu0 %v1228
  %1694 = vmatpush1.bf16.msra.mxu0 %v1227
  %1695 = vmatprep.subr.bf16.mxu0 %v1232
  %1696 = vmatpush1.bf16.msra.mxu0 %v1231
  %1697 = vmatprep.subr.bf16.mxu0 %v1236
  %1698 = vmatpush1.bf16.msra.mxu0 %v1235
  %1699 = vmatprep.subr.bf16.mxu0 %v1240
  %1700 = vmatpush1.bf16.msra.mxu0 %v1239
  %1701 = vmatprep.subr.bf16.mxu0 %v1244
  %1702 = vmatpush1.bf16.msra.mxu0 %v1243
  %1703 = vmatprep.subr.bf16.mxu0 %v1248
  %1704 = vmatpush1.bf16.msra.mxu0 %v1247
  %1705 = vmatprep.subr.bf16.mxu0 %v1252
  %1706 = vmatpush1.bf16.msra.mxu0 %v1251
  %1707 = vmatprep.subr.bf16.mxu0 %v1256
  %1708 = vmatpush1.bf16.msra.mxu0 %v1255
  %1709 = vmatprep.subr.bf16.mxu0 %v1260
  %1710 = vmatpush1.bf16.msra.mxu0 %v1259
  %1711 = vmatprep.subr.bf16.mxu0 %v1264
  %1712 = vmatpush1.bf16.msra.mxu0 %v1263
  %1713 = vmatprep.subr.bf16.mxu0 %v1268
  %1714 = vmatpush1.bf16.msra.mxu0 %v1267
  %1715 = vmatprep.subr.bf16.mxu0 %v1272
  %1716 = vmatpush1.bf16.msra.mxu0 %v1271
  %1717 = vmatprep.subr.bf16.mxu0 %v1276
  %1718 = vmatpush1.bf16.msra.mxu0 %v1275
  %1719 = vmatprep.subr.bf16.mxu0 %v1280
  %1720 = vmatpush1.bf16.msra.mxu0 %v1279
  %1721 = vmatprep.subr.bf16.mxu0 %v1284
  %1722 = vmatpush1.bf16.msra.mxu0 %v1283
  %1723 = vmatprep.subr.bf16.mxu0 %v1288
  %1724 = vmatpush1.bf16.msra.mxu0 %v1287
  %1725 = vmatprep.mubr.bf16.mxu0 %v72
  %1726 = vmatmul.mubr.bf16.gmra.mrb[0].mxu0 %v71
  %v1727 = vpop.f32.mrb[0].mxu0
  %v1728 = vadd.f32 %v1687, %v1727
  %v1729 = vpop.f32.mrb[0].mxu0
  %v1730 = vadd.f32 %v1689, %v1729
  %v1731 = vpop.f32.mrb[0].mxu0
  %v1732 = vpop.f32.mrb[0].mxu0
  %1733 = vdwg.mxu0
  %1734 = vmatprep.subr.bf16.mxu0 %v1292
  %1735 = vmatpush1.bf16.msra.mxu0 %v1291
  %1736 = vmatprep.subr.bf16.mxu0 %v1296
  %1737 = vmatpush1.bf16.msra.mxu0 %v1295
  %1738 = vmatprep.subr.bf16.mxu0 %v1300
  %1739 = vmatpush1.bf16.msra.mxu0 %v1299
  %1740 = vmatprep.subr.bf16.mxu0 %v1304
  %1741 = vmatpush1.bf16.msra.mxu0 %v1303
  %1742 = vmatprep.subr.bf16.mxu0 %v1308
  %1743 = vmatpush1.bf16.msra.mxu0 %v1307
  %1744 = vmatprep.subr.bf16.mxu0 %v1312
  %1745 = vmatpush1.bf16.msra.mxu0 %v1311
  %1746 = vmatprep.subr.bf16.mxu0 %v1316
  %1747 = vmatpush1.bf16.msra.mxu0 %v1315
  %1748 = vmatprep.subr.bf16.mxu0 %v1320
  %1749 = vmatpush1.bf16.msra.mxu0 %v1319
  %1750 = vmatprep.subr.bf16.mxu0 %v1324
  %1751 = vmatpush1.bf16.msra.mxu0 %v1323
  %1752 = vmatprep.subr.bf16.mxu0 %v1328
  %1753 = vmatpush1.bf16.msra.mxu0 %v1327
  %1754 = vmatprep.subr.bf16.mxu0 %v1332
  %1755 = vmatpush1.bf16.msra.mxu0 %v1331
  %1756 = vmatprep.subr.bf16.mxu0 %v1336
  %1757 = vmatpush1.bf16.msra.mxu0 %v1335
  %1758 = vmatprep.subr.bf16.mxu0 %v1340
  %1759 = vmatpush1.bf16.msra.mxu0 %v1339
  %1760 = vmatprep.subr.bf16.mxu0 %v1344
  %1761 = vmatpush1.bf16.msra.mxu0 %v1343
  %1762 = vmatprep.subr.bf16.mxu0 %v1348
  %1763 = vmatpush1.bf16.msra.mxu0 %v1347
  %1764 = vmatprep.subr.bf16.mxu0 %v1352
  %1765 = vmatpush1.bf16.msra.mxu0 %v1351
  %1766 = vmatprep.mubr.bf16.mxu0 %v74
  %1767 = vmatmul.mubr.bf16.gmra.mrb[0].mxu0 %v73
  %v1768 = vpop.f32.mrb[0].mxu0
  %v1769 = vadd.f32 %v1728, %v1768
  %v1770 = vpop.f32.mrb[0].mxu0
  %v1771 = vadd.f32 %v1730, %v1770
  %v1772 = vpop.f32.mrb[0].mxu0
  %v1773 = vpop.f32.mrb[0].mxu0
  %1774 = vdwg.mxu0
  %1775 = vmatprep.subr.bf16.mxu0 %v1102
  %1776 = vmatpush1.bf16.msra.mxu0 %v1101
  %1777 = vmatprep.subr.bf16.mxu0 %v1106
  %1778 = vmatpush1.bf16.msra.mxu0 %v1105
  %1779 = vmatprep.subr.bf16.mxu0 %v1110
  %1780 = vmatpush1.bf16.msra.mxu0 %v1109
  %1781 = vmatprep.subr.bf16.mxu0 %v1114
  %1782 = vmatpush1.bf16.msra.mxu0 %v1113
  %1783 = vmatprep.subr.bf16.mxu0 %v1118
  %1784 = vmatpush1.bf16.msra.mxu0 %v1117
  %1785 = vmatprep.subr.bf16.mxu0 %v1122
  %1786 = vmatpush1.bf16.msra.mxu0 %v1121
  %1787 = vmatprep.subr.bf16.mxu0 %v1126
  %1788 = vmatpush1.bf16.msra.mxu0 %v1125
  %1789 = vmatprep.subr.bf16.mxu0 %v1130
  %1790 = vmatpush1.bf16.msra.mxu0 %v1129
  %1791 = vmatprep.subr.bf16.mxu0 %v1134
  %1792 = vmatpush1.bf16.msra.mxu0 %v1133
  %1793 = vmatprep.subr.bf16.mxu0 %v1138
  %1794 = vmatpush1.bf16.msra.mxu0 %v1137
  %1795 = vmatprep.subr.bf16.mxu0 %v1142
  %1796 = vmatpush1.bf16.msra.mxu0 %v1141
  %1797 = vmatprep.subr.bf16.mxu0 %v1146
  %1798 = vmatpush1.bf16.msra.mxu0 %v1145
  %1799 = vmatprep.subr.bf16.mxu0 %v1150
  %1800 = vmatpush1.bf16.msra.mxu0 %v1149
  %1801 = vmatprep.subr.bf16.mxu0 %v1154
  %1802 = vmatpush1.bf16.msra.mxu0 %v1153
  %1803 = vmatprep.subr.bf16.mxu0 %v1158
  %1804 = vmatpush1.bf16.msra.mxu0 %v1157
  %1805 = vmatprep.subr.bf16.mxu0 %v1162
  %1806 = vmatpush1.bf16.msra.mxu0 %v1161
  %1807 = vmatprep.mubr.bf16.mxu0 %v68
  %1808 = vmatmul.mubr.bf16.gmra.mrb[0].mxu0 %v67
  %v1809 = vpop.f32.mrb[0].mxu0
  %v1810 = vadd.f32 0.0, %v1809
  %v1811 = vpop.f32.mrb[0].mxu0
  %v1812 = vadd.f32 0.0, %v1811
  %v1813 = vpop.f32.mrb[0].mxu0
  %v1814 = vpop.f32.mrb[0].mxu0
  %1815 = vdwg.mxu0
  %1816 = vmatprep.subr.bf16.mxu0 %v1166
  %1817 = vmatpush1.bf16.msra.mxu0 %v1165
  %1818 = vmatprep.subr.bf16.mxu0 %v1170
  %1819 = vmatpush1.bf16.msra.mxu0 %v1169
  %1820 = vmatprep.subr.bf16.mxu0 %v1174
  %1821 = vmatpush1.bf16.msra.mxu0 %v1173
  %1822 = vmatprep.subr.bf16.mxu0 %v1178
  %1823 = vmatpush1.bf16.msra.mxu0 %v1177
  %1824 = vmatprep.subr.bf16.mxu0 %v1182
  %1825 = vmatpush1.bf16.msra.mxu0 %v1181
  %1826 = vmatprep.subr.bf16.mxu0 %v1186
  %1827 = vmatpush1.bf16.msra.mxu0 %v1185
  %1828 = vmatprep.subr.bf16.mxu0 %v1190
  %1829 = vmatpush1.bf16.msra.mxu0 %v1189
  %1830 = vmatprep.subr.bf16.mxu0 %v1194
  %1831 = vmatpush1.bf16.msra.mxu0 %v1193
  %1832 = vmatprep.subr.bf16.mxu0 %v1198
  %1833 = vmatpush1.bf16.msra.mxu0 %v1197
  %1834 = vmatprep.subr.bf16.mxu0 %v1202
  %1835 = vmatpush1.bf16.msra.mxu0 %v1201
  %1836 = vmatprep.subr.bf16.mxu0 %v1206
  %1837 = vmatpush1.bf16.msra.mxu0 %v1205
  %1838 = vmatprep.subr.bf16.mxu0 %v1210
  %1839 = vmatpush1.bf16.msra.mxu0 %v1209
  %1840 = vmatprep.subr.bf16.mxu0 %v1214
  %1841 = vmatpush1.bf16.msra.mxu0 %v1213
  %1842 = vmatprep.subr.bf16.mxu0 %v1218
  %1843 = vmatpush1.bf16.msra.mxu0 %v1217
  %1844 = vmatprep.subr.bf16.mxu0 %v1222
  %1845 = vmatpush1.bf16.msra.mxu0 %v1221
  %1846 = vmatprep.subr.bf16.mxu0 %v1226
  %1847 = vmatpush1.bf16.msra.mxu0 %v1225
  %1848 = vmatprep.mubr.bf16.mxu0 %v70
  %1849 = vmatmul.mubr.bf16.gmra.mrb[0].mxu0 %v69
  %v1850 = vpop.f32.mrb[0].mxu0
  %v1851 = vadd.f32 %v1810, %v1850
  %v1852 = vpop.f32.mrb[0].mxu0
  %v1853 = vadd.f32 %v1812, %v1852
  %v1854 = vpop.f32.mrb[0].mxu0
  %v1855 = vpop.f32.mrb[0].mxu0
  %1856 = vdwg.mxu0
  %1857 = vmatprep.subr.bf16.mxu0 %v1230
  %1858 = vmatpush1.bf16.msra.mxu0 %v1229
  %1859 = vmatprep.subr.bf16.mxu0 %v1234
  %1860 = vmatpush1.bf16.msra.mxu0 %v1233
  %1861 = vmatprep.subr.bf16.mxu0 %v1238
  %1862 = vmatpush1.bf16.msra.mxu0 %v1237
  %1863 = vmatprep.subr.bf16.mxu0 %v1242
  %1864 = vmatpush1.bf16.msra.mxu0 %v1241
  %1865 = vmatprep.subr.bf16.mxu0 %v1246
  %1866 = vmatpush1.bf16.msra.mxu0 %v1245
  %1867 = vmatprep.subr.bf16.mxu0 %v1250
  %1868 = vmatpush1.bf16.msra.mxu0 %v1249
  %1869 = vmatprep.subr.bf16.mxu0 %v1254
  %1870 = vmatpush1.bf16.msra.mxu0 %v1253
  %1871 = vmatprep.subr.bf16.mxu0 %v1258
  %1872 = vmatpush1.bf16.msra.mxu0 %v1257
  %1873 = vmatprep.subr.bf16.mxu0 %v1262
  %1874 = vmatpush1.bf16.msra.mxu0 %v1261
  %1875 = vmatprep.subr.bf16.mxu0 %v1266
  %1876 = vmatpush1.bf16.msra.mxu0 %v1265
  %1877 = vmatprep.subr.bf16.mxu0 %v1270
  %1878 = vmatpush1.bf16.msra.mxu0 %v1269
  %1879 = vmatprep.subr.bf16.mxu0 %v1274
  %1880 = vmatpush1.bf16.msra.mxu0 %v1273
  %1881 = vmatprep.subr.bf16.mxu0 %v1278
  %1882 = vmatpush1.bf16.msra.mxu0 %v1277
  %1883 = vmatprep.subr.bf16.mxu0 %v1282
  %1884 = vmatpush1.bf16.msra.mxu0 %v1281
  %1885 = vmatprep.subr.bf16.mxu0 %v1286
  %1886 = vmatpush1.bf16.msra.mxu0 %v1285
  %1887 = vmatprep.subr.bf16.mxu0 %v1290
  %1888 = vmatpush1.bf16.msra.mxu0 %v1289
  %1889 = vmatprep.mubr.bf16.mxu0 %v72
  %1890 = vmatmul.mubr.bf16.gmra.mrb[0].mxu0 %v71
  %v1891 = vpop.f32.mrb[0].mxu0
  %v1892 = vadd.f32 %v1851, %v1891
  %v1893 = vpop.f32.mrb[0].mxu0
  %v1894 = vadd.f32 %v1853, %v1893
  %v1895 = vpop.f32.mrb[0].mxu0
  %v1896 = vpop.f32.mrb[0].mxu0
  %1897 = vdwg.mxu0
  %1898 = vmatprep.subr.bf16.mxu0 %v1294
  %1899 = vmatpush1.bf16.msra.mxu0 %v1293
  %1900 = vmatprep.subr.bf16.mxu0 %v1298
  %1901 = vmatpush1.bf16.msra.mxu0 %v1297
  %1902 = vmatprep.subr.bf16.mxu0 %v1302
  %1903 = vmatpush1.bf16.msra.mxu0 %v1301
  %1904 = vmatprep.subr.bf16.mxu0 %v1306
  %1905 = vmatpush1.bf16.msra.mxu0 %v1305
  %1906 = vmatprep.subr.bf16.mxu0 %v1310
  %1907 = vmatpush1.bf16.msra.mxu0 %v1309
  %1908 = vmatprep.subr.bf16.mxu0 %v1314
  %1909 = vmatpush1.bf16.msra.mxu0 %v1313
  %1910 = vmatprep.subr.bf16.mxu0 %v1318
  %1911 = vmatpush1.bf16.msra.mxu0 %v1317
  %1912 = vmatprep.subr.bf16.mxu0 %v1322
  %1913 = vmatpush1.bf16.msra.mxu0 %v1321
  %1914 = vmatprep.subr.bf16.mxu0 %v1326
  %1915 = vmatpush1.bf16.msra.mxu0 %v1325
  %1916 = vmatprep.subr.bf16.mxu0 %v1330
  %1917 = vmatpush1.bf16.msra.mxu0 %v1329
  %1918 = vmatprep.subr.bf16.mxu0 %v1334
  %1919 = vmatpush1.bf16.msra.mxu0 %v1333
  %1920 = vmatprep.subr.bf16.mxu0 %v1338
  %1921 = vmatpush1.bf16.msra.mxu0 %v1337
  %1922 = vmatprep.subr.bf16.mxu0 %v1342
  %1923 = vmatpush1.bf16.msra.mxu0 %v1341
  %1924 = vmatprep.subr.bf16.mxu0 %v1346
  %1925 = vmatpush1.bf16.msra.mxu0 %v1345
  %1926 = vmatprep.subr.bf16.mxu0 %v1350
  %1927 = vmatpush1.bf16.msra.mxu0 %v1349
  %1928 = vmatprep.subr.bf16.mxu0 %v1354
  %1929 = vmatpush1.bf16.msra.mxu0 %v1353
  %1930 = vmatprep.mubr.bf16.mxu0 %v74
  %1931 = vmatmul.mubr.bf16.gmra.mrb[0].mxu0 %v73
  %v1932 = vpop.f32.mrb[0].mxu0
  %v1933 = vadd.f32 %v1892, %v1932
  %v1934 = vpop.f32.mrb[0].mxu0
  %v1935 = vadd.f32 %v1894, %v1934
  %v1936 = vpop.f32.mrb[0].mxu0
  %v1937 = vpop.f32.mrb[0].mxu0
  %1938 = vdwg.mxu0
  %v1939 = vmax.f32 %v1769, 0.0
  %v1940 = vmax.f32 %v1771, 0.0
  %v1941 = vmax.f32 %v1933, 0.0
  %v1942 = vmax.f32 %v1935, 0.0
  %v1943 = vpack.c.bf16 %v1939, %v1939
  %v1944 = vpack.c.bf16 %v1940, %v1940
  %v1945 = vpack.c.bf16 %v1941, %v1941
  %v1946 = vpack.c.bf16 %v1942, %v1942
  %v1947 = vld [vmem:[%s2] sm:$0xff]
  %v1948 = vld [vmem:[%s2 + $0x8] sm:$0xff]
  %v1949 = vld [vmem:[%s2 + $0x10] sm:$0xff]
  %v1950 = vld [vmem:[%s2 + $0x18] sm:$0xff]
  %v1951 = vld [vmem:[%s2 + $0x20] sm:$0xff]
  %v1952 = vld [vmem:[%s2 + $0x28] sm:$0xff]
  %v1953 = vld [vmem:[%s2 + $0x30] sm:$0xff]
  %v1954 = vld [vmem:[%s2 + $0x38] sm:$0xff]
  %v1955 = vld [vmem:[%s2 + $0x40] sm:$0xff]
  %v1956 = vld [vmem:[%s2 + $0x48] sm:$0xff]
  %v1957 = vld [vmem:[%s2 + $0x50] sm:$0xff]
  %v1958 = vld [vmem:[%s2 + $0x58] sm:$0xff]
  %v1959 = vld [vmem:[%s2 + $0x60] sm:$0xff]
  %v1960 = vld [vmem:[%s2 + $0x68] sm:$0xff]
  %v1961 = vld [vmem:[%s2 + $0x70] sm:$0xff]
  %v1962 = vld [vmem:[%s2 + $0x78] sm:$0xff]
  %v1963 = vld [vmem:[%s2 + $0x80] sm:$0xff]
  %v1964 = vld [vmem:[%s2 + $0x88] sm:$0xff]
  %v1965 = vld [vmem:[%s2 + $0x90] sm:$0xff]
  %v1966 = vld [vmem:[%s2 + $0x98] sm:$0xff]
  %v1967 = vld [vmem:[%s2 + $0xa0] sm:$0xff]
  %v1968 = vld [vmem:[%s2 + $0xa8] sm:$0xff]
  %v1969 = vld [vmem:[%s2 + $0xb0] sm:$0xff]
  %v1970 = vld [vmem:[%s2 + $0xb8] sm:$0xff]
  %v1971 = vld [vmem:[%s2 + $0xc0] sm:$0xff]
  %v1972 = vld [vmem:[%s2 + $0xc8] sm:$0xff]
  %v1973 = vld [vmem:[%s2 + $0xd0] sm:$0xff]
  %v1974 = vld [vmem:[%s2 + $0xd8] sm:$0xff]
  %v1975 = vld [vmem:[%s2 + $0xe0] sm:$0xff]
  %v1976 = vld [vmem:[%s2 + $0xe8] sm:$0xff]
  %v1977 = vld [vmem:[%s2 + $0xf0] sm:$0xff]
  %v1978 = vld [vmem:[%s2 + $0xf8] sm:$0xff]
  %v1979 = vld [vmem:[%s2 + $0x100] sm:$0xff]
  %v1980 = vld [vmem:[%s2 + $0x108] sm:$0xff]
  %v1981 = vld [vmem:[%s2 + $0x110] sm:$0xff]
  %v1982 = vld [vmem:[%s2 + $0x118] sm:$0xff]
  %v1983 = vld [vmem:[%s2 + $0x120] sm:$0xff]
  %v1984 = vld [vmem:[%s2 + $0x128] sm:$0xff]
  %v1985 = vld [vmem:[%s2 + $0x130] sm:$0xff]
  %v1986 = vld [vmem:[%s2 + $0x138] sm:$0xff]
  %v1987 = vld [vmem:[%s2 + $0x140] sm:$0xff]
  %v1988 = vld [vmem:[%s2 + $0x148] sm:$0xff]
  %v1989 = vld [vmem:[%s2 + $0x150] sm:$0xff]
  %v1990 = vld [vmem:[%s2 + $0x158] sm:$0xff]
  %v1991 = vld [vmem:[%s2 + $0x160] sm:$0xff]
  %v1992 = vld [vmem:[%s2 + $0x168] sm:$0xff]
  %v1993 = vld [vmem:[%s2 + $0x170] sm:$0xff]
  %v1994 = vld [vmem:[%s2 + $0x178] sm:$0xff]
  %v1995 = vld [vmem:[%s2 + $0x180] sm:$0xff]
  %v1996 = vld [vmem:[%s2 + $0x188] sm:$0xff]
  %v1997 = vld [vmem:[%s2 + $0x190] sm:$0xff]
  %v1998 = vld [vmem:[%s2 + $0x198] sm:$0xff]
  %v1999 = vld [vmem:[%s2 + $0x1a0] sm:$0xff]
  %v2000 = vld [vmem:[%s2 + $0x1a8] sm:$0xff]
  %v2001 = vld [vmem:[%s2 + $0x1b0] sm:$0xff]
  %v2002 = vld [vmem:[%s2 + $0x1b8] sm:$0xff]
  %v2003 = vld [vmem:[%s2 + $0x1c0] sm:$0xff]
  %v2004 = vld [vmem:[%s2 + $0x1c8] sm:$0xff]
  %v2005 = vld [vmem:[%s2 + $0x1d0] sm:$0xff]
  %v2006 = vld [vmem:[%s2 + $0x1d8] sm:$0xff]
  %v2007 = vld [vmem:[%s2 + $0x1e0] sm:$0xff]
  %v2008 = vld [vmem:[%s2 + $0x1e8] sm:$0xff]
  %v2009 = vld [vmem:[%s2 + $0x1f0] sm:$0xff]
  %v2010 = vld [vmem:[%s2 + $0x1f8] sm:$0xff]
  %v2075 = vunpack.c.l.b16 %v1947
  %v2076 = vunpack.c.h.b16 %v1947
  %v2077 = vunpack.c.l.b16 %v1948
  %v2078 = vunpack.c.h.b16 %v1948
  %v2079 = vunpack.c.l.b16 %v1949
  %v2080 = vunpack.c.h.b16 %v1949
  %v2081 = vunpack.c.l.b16 %v1950
  %v2082 = vunpack.c.h.b16 %v1950
  %v2083 = vunpack.c.l.b16 %v1951
  %v2084 = vunpack.c.h.b16 %v1951
  %v2085 = vunpack.c.l.b16 %v1952
  %v2086 = vunpack.c.h.b16 %v1952
  %v2087 = vunpack.c.l.b16 %v1953
  %v2088 = vunpack.c.h.b16 %v1953
  %v2089 = vunpack.c.l.b16 %v1954
  %v2090 = vunpack.c.h.b16 %v1954
  %v2091 = vunpack.c.l.b16 %v1955
  %v2092 = vunpack.c.h.b16 %v1955
  %v2093 = vunpack.c.l.b16 %v1956
  %v2094 = vunpack.c.h.b16 %v1956
  %v2095 = vunpack.c.l.b16 %v1957
  %v2096 = vunpack.c.h.b16 %v1957
  %v2097 = vunpack.c.l.b16 %v1958
  %v2098 = vunpack.c.h.b16 %v1958
  %v2099 = vunpack.c.l.b16 %v1959
  %v2100 = vunpack.c.h.b16 %v1959
  %v2101 = vunpack.c.l.b16 %v1960
  %v2102 = vunpack.c.h.b16 %v1960
  %v2103 = vunpack.c.l.b16 %v1961
  %v2104 = vunpack.c.h.b16 %v1961
  %v2105 = vunpack.c.l.b16 %v1962
  %v2106 = vunpack.c.h.b16 %v1962
  %v2107 = vunpack.c.l.b16 %v1963
  %v2108 = vunpack.c.h.b16 %v1963
  %v2109 = vunpack.c.l.b16 %v1964
  %v2110 = vunpack.c.h.b16 %v1964
  %v2111 = vunpack.c.l.b16 %v1965
  %v2112 = vunpack.c.h.b16 %v1965
  %v2113 = vunpack.c.l.b16 %v1966
  %v2114 = vunpack.c.h.b16 %v1966
  %v2115 = vunpack.c.l.b16 %v1967
  %v2116 = vunpack.c.h.b16 %v1967
  %v2117 = vunpack.c.l.b16 %v1968
  %v2118 = vunpack.c.h.b16 %v1968
  %v2119 = vunpack.c.l.b16 %v1969
  %v2120 = vunpack.c.h.b16 %v1969
  %v2121 = vunpack.c.l.b16 %v1970
  %v2122 = vunpack.c.h.b16 %v1970
  %v2123 = vunpack.c.l.b16 %v1971
  %v2124 = vunpack.c.h.b16 %v1971
  %v2125 = vunpack.c.l.b16 %v1972
  %v2126 = vunpack.c.h.b16 %v1972
  %v2127 = vunpack.c.l.b16 %v1973
  %v2128 = vunpack.c.h.b16 %v1973
  %v2129 = vunpack.c.l.b16 %v1974
  %v2130 = vunpack.c.h.b16 %v1974
  %v2131 = vunpack.c.l.b16 %v1975
  %v2132 = vunpack.c.h.b16 %v1975
  %v2133 = vunpack.c.l.b16 %v1976
  %v2134 = vunpack.c.h.b16 %v1976
  %v2135 = vunpack.c.l.b16 %v1977
  %v2136 = vunpack.c.h.b16 %v1977
  %v2137 = vunpack.c.l.b16 %v1978
  %v2138 = vunpack.c.h.b16 %v1978
  %v2139 = vunpack.c.l.b16 %v1979
  %v2140 = vunpack.c.h.b16 %v1979
  %v2141 = vunpack.c.l.b16 %v1980
  %v2142 = vunpack.c.h.b16 %v1980
  %v2143 = vunpack.c.l.b16 %v1981
  %v2144 = vunpack.c.h.b16 %v1981
  %v2145 = vunpack.c.l.b16 %v1982
  %v2146 = vunpack.c.h.b16 %v1982
  %v2147 = vunpack.c.l.b16 %v1983
  %v2148 = vunpack.c.h.b16 %v1983
  %v2149 = vunpack.c.l.b16 %v1984
  %v2150 = vunpack.c.h.b16 %v1984
  %v2151 = vunpack.c.l.b16 %v1985
  %v2152 = vunpack.c.h.b16 %v1985
  %v2153 = vunpack.c.l.b16 %v1986
  %v2154 = vunpack.c.h.b16 %v1986
  %v2155 = vunpack.c.l.b16 %v1987
  %v2156 = vunpack.c.h.b16 %v1987
  %v2157 = vunpack.c.l.b16 %v1988
  %v2158 = vunpack.c.h.b16 %v1988
  %v2159 = vunpack.c.l.b16 %v1989
  %v2160 = vunpack.c.h.b16 %v1989
  %v2161 = vunpack.c.l.b16 %v1990
  %v2162 = vunpack.c.h.b16 %v1990
  %v2163 = vunpack.c.l.b16 %v1991
  %v2164 = vunpack.c.h.b16 %v1991
  %v2165 = vunpack.c.l.b16 %v1992
  %v2166 = vunpack.c.h.b16 %v1992
  %v2167 = vunpack.c.l.b16 %v1993
  %v2168 = vunpack.c.h.b16 %v1993
  %v2169 = vunpack.c.l.b16 %v1994
  %v2170 = vunpack.c.h.b16 %v1994
  %v2171 = vunpack.c.l.b16 %v1995
  %v2172 = vunpack.c.h.b16 %v1995
  %v2173 = vunpack.c.l.b16 %v1996
  %v2174 = vunpack.c.h.b16 %v1996
  %v2175 = vunpack.c.l.b16 %v1997
  %v2176 = vunpack.c.h.b16 %v1997
  %v2177 = vunpack.c.l.b16 %v1998
  %v2178 = vunpack.c.h.b16 %v1998
  %v2179 = vunpack.c.l.b16 %v1999
  %v2180 = vunpack.c.h.b16 %v1999
  %v2181 = vunpack.c.l.b16 %v2000
  %v2182 = vunpack.c.h.b16 %v2000
  %v2183 = vunpack.c.l.b16 %v2001
  %v2184 = vunpack.c.h.b16 %v2001
  %v2185 = vunpack.c.l.b16 %v2002
  %v2186 = vunpack.c.h.b16 %v2002
  %v2187 = vunpack.c.l.b16 %v2003
  %v2188 = vunpack.c.h.b16 %v2003
  %v2189 = vunpack.c.l.b16 %v2004
  %v2190 = vunpack.c.h.b16 %v2004
  %v2191 = vunpack.c.l.b16 %v2005
  %v2192 = vunpack.c.h.b16 %v2005
  %v2193 = vunpack.c.l.b16 %v2006
  %v2194 = vunpack.c.h.b16 %v2006
  %v2195 = vunpack.c.l.b16 %v2007
  %v2196 = vunpack.c.h.b16 %v2007
  %v2197 = vunpack.c.l.b16 %v2008
  %v2198 = vunpack.c.h.b16 %v2008
  %v2199 = vunpack.c.l.b16 %v2009
  %v2200 = vunpack.c.h.b16 %v2009
  %v2201 = vunpack.c.l.b16 %v2010
  %v2202 = vunpack.c.h.b16 %v2010
  %v2203 = vpack.c.b16 %v2077, %v2075
  %v2204 = vpack.c.b16 %v2078, %v2076
  %v2205 = vpack.c.b16 %v2081, %v2079
  %v2206 = vpack.c.b16 %v2082, %v2080
  %v2207 = vpack.c.b16 %v2085, %v2083
  %v2208 = vpack.c.b16 %v2086, %v2084
  %v2209 = vpack.c.b16 %v2089, %v2087
  %v2210 = vpack.c.b16 %v2090, %v2088
  %v2211 = vpack.c.b16 %v2093, %v2091
  %v2212 = vpack.c.b16 %v2094, %v2092
  %v2213 = vpack.c.b16 %v2097, %v2095
  %v2214 = vpack.c.b16 %v2098, %v2096
  %v2215 = vpack.c.b16 %v2101, %v2099
  %v2216 = vpack.c.b16 %v2102, %v2100
  %v2217 = vpack.c.b16 %v2105, %v2103
  %v2218 = vpack.c.b16 %v2106, %v2104
  %v2219 = vpack.c.b16 %v2109, %v2107
  %v2220 = vpack.c.b16 %v2110, %v2108
  %v2221 = vpack.c.b16 %v2113, %v2111
  %v2222 = vpack.c.b16 %v2114, %v2112
  %v2223 = vpack.c.b16 %v2117, %v2115
  %v2224 = vpack.c.b16 %v2118, %v2116
  %v2225 = vpack.c.b16 %v2121, %v2119
  %v2226 = vpack.c.b16 %v2122, %v2120
  %v2227 = vpack.c.b16 %v2125, %v2123
  %v2228 = vpack.c.b16 %v2126, %v2124
  %v2229 = vpack.c.b16 %v2129, %v2127
  %v2230 = vpack.c.b16 %v2130, %v2128
  %v2231 = vpack.c.b16 %v2133, %v2131
  %v2232 = vpack.c.b16 %v2134, %v2132
  %v2233 = vpack.c.b16 %v2137, %v2135
  %v2234 = vpack.c.b16 %v2138, %v2136
  %v2235 = vpack.c.b16 %v2141, %v2139
  %v2236 = vpack.c.b16 %v2142, %v2140
  %v2237 = vpack.c.b16 %v2145, %v2143
  %v2238 = vpack.c.b16 %v2146, %v2144
  %v2239 = vpack.c.b16 %v2149, %v2147
  %v2240 = vpack.c.b16 %v2150, %v2148
  %v2241 = vpack.c.b16 %v2153, %v2151
  %v2242 = vpack.c.b16 %v2154, %v2152
  %v2243 = vpack.c.b16 %v2157, %v2155
  %v2244 = vpack.c.b16 %v2158, %v2156
  %v2245 = vpack.c.b16 %v2161, %v2159
  %v2246 = vpack.c.b16 %v2162, %v2160
  %v2247 = vpack.c.b16 %v2165, %v2163
  %v2248 = vpack.c.b16 %v2166, %v2164
  %v2249 = vpack.c.b16 %v2169, %v2167
  %v2250 = vpack.c.b16 %v2170, %v2168
  %v2251 = vpack.c.b16 %v2173, %v2171
  %v2252 = vpack.c.b16 %v2174, %v2172
  %v2253 = vpack.c.b16 %v2177, %v2175
  %v2254 = vpack.c.b16 %v2178, %v2176
  %v2255 = vpack.c.b16 %v2181, %v2179
  %v2256 = vpack.c.b16 %v2182, %v2180
  %v2257 = vpack.c.b16 %v2185, %v2183
  %v2258 = vpack.c.b16 %v2186, %v2184
  %v2259 = vpack.c.b16 %v2189, %v2187
  %v2260 = vpack.c.b16 %v2190, %v2188
  %v2261 = vpack.c.b16 %v2193, %v2191
  %v2262 = vpack.c.b16 %v2194, %v2192
  %v2263 = vpack.c.b16 %v2197, %v2195
  %v2264 = vpack.c.b16 %v2198, %v2196
  %v2265 = vpack.c.b16 %v2201, %v2199
  %v2266 = vpack.c.b16 %v2202, %v2200
  %2331 = vmatprep.subr.bf16.mxu0 %v2204
  %2332 = vmatpush1.bf16.msra.mxu0 %v2203
  %2333 = vmatprep.subr.bf16.mxu0 %v2206
  %2334 = vmatpush1.bf16.msra.mxu0 %v2205
  %2335 = vmatprep.subr.bf16.mxu0 %v2208
  %2336 = vmatpush1.bf16.msra.mxu0 %v2207
  %2337 = vmatprep.subr.bf16.mxu0 %v2210
  %2338 = vmatpush1.bf16.msra.mxu0 %v2209
  %2339 = vmatprep.subr.bf16.mxu0 %v2212
  %2340 = vmatpush1.bf16.msra.mxu0 %v2211
  %2341 = vmatprep.subr.bf16.mxu0 %v2214
  %2342 = vmatpush1.bf16.msra.mxu0 %v2213
  %2343 = vmatprep.subr.bf16.mxu0 %v2216
  %2344 = vmatpush1.bf16.msra.mxu0 %v2215
  %2345 = vmatprep.subr.bf16.mxu0 %v2218
  %2346 = vmatpush1.bf16.msra.mxu0 %v2217
  %2347 = vmatprep.subr.bf16.mxu0 %v2220
  %2348 = vmatpush1.bf16.msra.mxu0 %v2219
  %2349 = vmatprep.subr.bf16.mxu0 %v2222
  %2350 = vmatpush1.bf16.msra.mxu0 %v2221
  %2351 = vmatprep.subr.bf16.mxu0 %v2224
  %2352 = vmatpush1.bf16.msra.mxu0 %v2223
  %2353 = vmatprep.subr.bf16.mxu0 %v2226
  %2354 = vmatpush1.bf16.msra.mxu0 %v2225
  %2355 = vmatprep.subr.bf16.mxu0 %v2228
  %2356 = vmatpush1.bf16.msra.mxu0 %v2227
  %2357 = vmatprep.subr.bf16.mxu0 %v2230
  %2358 = vmatpush1.bf16.msra.mxu0 %v2229
  %2359 = vmatprep.subr.bf16.mxu0 %v2232
  %2360 = vmatpush1.bf16.msra.mxu0 %v2231
  %2361 = vmatprep.subr.bf16.mxu0 %v2234
  %2362 = vmatpush1.bf16.msra.mxu0 %v2233
  %2363 = vmatprep.mubr.bf16.mxu0 %v1944
  %2364 = vmatmul.mubr.bf16.gmra.mrb[0].mxu0 %v1943
  %v2365 = vpop.f32.mrb[0].mxu0
  %v2366 = vadd.f32 0.0, %v2365
  %v2367 = vpop.f32.mrb[0].mxu0
  %v2368 = vadd.f32 0.0, %v2367
  %v2369 = vpop.f32.mrb[0].mxu0
  %v2370 = vpop.f32.mrb[0].mxu0
  %2371 = vdwg.mxu0
  %2372 = vmatprep.subr.bf16.mxu0 %v2236
  %2373 = vmatpush1.bf16.msra.mxu0 %v2235
  %2374 = vmatprep.subr.bf16.mxu0 %v2238
  %2375 = vmatpush1.bf16.msra.mxu0 %v2237
  %2376 = vmatprep.subr.bf16.mxu0 %v2240
  %2377 = vmatpush1.bf16.msra.mxu0 %v2239
  %2378 = vmatprep.subr.bf16.mxu0 %v2242
  %2379 = vmatpush1.bf16.msra.mxu0 %v2241
  %2380 = vmatprep.subr.bf16.mxu0 %v2244
  %2381 = vmatpush1.bf16.msra.mxu0 %v2243
  %2382 = vmatprep.subr.bf16.mxu0 %v2246
  %2383 = vmatpush1.bf16.msra.mxu0 %v2245
  %2384 = vmatprep.subr.bf16.mxu0 %v2248
  %2385 = vmatpush1.bf16.msra.mxu0 %v2247
  %2386 = vmatprep.subr.bf16.mxu0 %v2250
  %2387 = vmatpush1.bf16.msra.mxu0 %v2249
  %2388 = vmatprep.subr.bf16.mxu0 %v2252
  %2389 = vmatpush1.bf16.msra.mxu0 %v2251
  %2390 = vmatprep.subr.bf16.mxu0 %v2254
  %2391 = vmatpush1.bf16.msra.mxu0 %v2253
  %2392 = vmatprep.subr.bf16.mxu0 %v2256
  %2393 = vmatpush1.bf16.msra.mxu0 %v2255
  %2394 = vmatprep.subr.bf16.mxu0 %v2258
  %2395 = vmatpush1.bf16.msra.mxu0 %v2257
  %2396 = vmatprep.subr.bf16.mxu0 %v2260
  %2397 = vmatpush1.bf16.msra.mxu0 %v2259
  %2398 = vmatprep.subr.bf16.mxu0 %v2262
  %2399 = vmatpush1.bf16.msra.mxu0 %v2261
  %2400 = vmatprep.subr.bf16.mxu0 %v2264
  %2401 = vmatpush1.bf16.msra.mxu0 %v2263
  %2402 = vmatprep.subr.bf16.mxu0 %v2266
  %2403 = vmatpush1.bf16.msra.mxu0 %v2265
  %2404 = vmatprep.mubr.bf16.mxu0 %v1946
  %2405 = vmatmul.mubr.bf16.gmra.mrb[0].mxu0 %v1945
  %v2406 = vpop.f32.mrb[0].mxu0
  %v2407 = vadd.f32 %v2366, %v2406
  %v2408 = vpop.f32.mrb[0].mxu0
  %v2409 = vadd.f32 %v2368, %v2408
  %v2410 = vpop.f32.mrb[0].mxu0
  %v2411 = vpop.f32.mrb[0].mxu0
  %2412 = vdwg.mxu0
  %v2413 = vmax.f32 %v2407, 0.0
  %v2414 = vmax.f32 %v2409, 0.0
  %v2415 = vpack.c.bf16 %v2413, %v2413
  %v2416 = vpack.c.bf16 %v2414, %v2414
  %v2417 = vld [vmem:[%s3] sm:$0xf]
  %v2418 = vld [vmem:[%s3 + $0x4] sm:$0xf]
  %v2419 = vld [vmem:[%s3 + $0x8] sm:$0xf]
  %v2420 = vld [vmem:[%s3 + $0xc] sm:$0xf]
  %v2421 = vld [vmem:[%s3 + $0x10] sm:$0xf]
  %v2422 = vld [vmem:[%s3 + $0x14] sm:$0xf]
  %v2423 = vld [vmem:[%s3 + $0x18] sm:$0xf]
  %v2424 = vld [vmem:[%s3 + $0x1c] sm:$0xf]
  %v2425 = vld [vmem:[%s3 + $0x20] sm:$0xf]
  %v2426 = vld [vmem:[%s3 + $0x24] sm:$0xf]
  %v2427 = vld [vmem:[%s3 + $0x28] sm:$0xf]
  %v2428 = vld [vmem:[%s3 + $0x2c] sm:$0xf]
  %v2429 = vld [vmem:[%s3 + $0x30] sm:$0xf]
  %v2430 = vld [vmem:[%s3 + $0x34] sm:$0xf]
  %v2431 = vld [vmem:[%s3 + $0x38] sm:$0xf]
  %v2432 = vld [vmem:[%s3 + $0x3c] sm:$0xf]
  %v2433 = vld [vmem:[%s3 + $0x40] sm:$0xf]
  %v2434 = vld [vmem:[%s3 + $0x44] sm:$0xf]
  %v2435 = vld [vmem:[%s3 + $0x48] sm:$0xf]
  %v2436 = vld [vmem:[%s3 + $0x4c] sm:$0xf]
  %v2437 = vld [vmem:[%s3 + $0x50] sm:$0xf]
  %v2438 = vld [vmem:[%s3 + $0x54] sm:$0xf]
  %v2439 = vld [vmem:[%s3 + $0x58] sm:$0xf]
  %v2440 = vld [vmem:[%s3 + $0x5c] sm:$0xf]
  %v2441 = vld [vmem:[%s3 + $0x60] sm:$0xf]
  %v2442 = vld [vmem:[%s3 + $0x64] sm:$0xf]
  %v2443 = vld [vmem:[%s3 + $0x68] sm:$0xf]
  %v2444 = vld [vmem:[%s3 + $0x6c] sm:$0xf]
  %v2445 = vld [vmem:[%s3 + $0x70] sm:$0xf]
  %v2446 = vld [vmem:[%s3 + $0x74] sm:$0xf]
  %v2447 = vld [vmem:[%s3 + $0x78] sm:$0xf]
  %v2448 = vld [vmem:[%s3 + $0x7c] sm:$0xf]
  %v2449 = vld [vmem:[%s4] sm:$0x1]
  %v2451 = vlaneseq
  %v2452 = vshrl.u32 %v2451, 7
  %v2453 = vsub.s32 0, %v2452
  %v2454 = vrot.slane %v2449, %v2453
  %v2488 = vunpack.c.l.b16 %v2417
  %v2489 = vunpack.c.l.b16 %v2418
  %v2490 = vunpack.c.l.b16 %v2419
  %v2491 = vunpack.c.l.b16 %v2420
  %v2492 = vunpack.c.l.b16 %v2421
  %v2493 = vunpack.c.l.b16 %v2422
  %v2494 = vunpack.c.l.b16 %v2423
  %v2495 = vunpack.c.l.b16 %v2424
  %v2496 = vunpack.c.l.b16 %v2425
  %v2497 = vunpack.c.l.b16 %v2426
  %v2498 = vunpack.c.l.b16 %v2427
  %v2499 = vunpack.c.l.b16 %v2428
  %v2500 = vunpack.c.l.b16 %v2429
  %v2501 = vunpack.c.l.b16 %v2430
  %v2502 = vunpack.c.l.b16 %v2431
  %v2503 = vunpack.c.l.b16 %v2432
  %v2504 = vunpack.c.l.b16 %v2433
  %v2505 = vunpack.c.l.b16 %v2434
  %v2506 = vunpack.c.l.b16 %v2435
  %v2507 = vunpack.c.l.b16 %v2436
  %v2508 = vunpack.c.l.b16 %v2437
  %v2509 = vunpack.c.l.b16 %v2438
  %v2510 = vunpack.c.l.b16 %v2439
  %v2511 = vunpack.c.l.b16 %v2440
  %v2512 = vunpack.c.l.b16 %v2441
  %v2513 = vunpack.c.l.b16 %v2442
  %v2514 = vunpack.c.l.b16 %v2443
  %v2515 = vunpack.c.l.b16 %v2444
  %v2516 = vunpack.c.l.b16 %v2445
  %v2517 = vunpack.c.l.b16 %v2446
  %v2518 = vunpack.c.l.b16 %v2447
  %v2519 = vunpack.c.l.b16 %v2448
  %v2520 = vpack.c.b16 %v2489, %v2488
  %v2521 = vpack.c.b16 %v2491, %v2490
  %v2522 = vpack.c.b16 %v2493, %v2492
  %v2523 = vpack.c.b16 %v2495, %v2494
  %v2524 = vpack.c.b16 %v2497, %v2496
  %v2525 = vpack.c.b16 %v2499, %v2498
  %v2526 = vpack.c.b16 %v2501, %v2500
  %v2527 = vpack.c.b16 %v2503, %v2502
  %v2528 = vpack.c.b16 %v2505, %v2504
  %v2529 = vpack.c.b16 %v2507, %v2506
  %v2530 = vpack.c.b16 %v2509, %v2508
  %v2531 = vpack.c.b16 %v2511, %v2510
  %v2532 = vpack.c.b16 %v2513, %v2512
  %v2533 = vpack.c.b16 %v2515, %v2514
  %v2534 = vpack.c.b16 %v2517, %v2516
  %v2535 = vpack.c.b16 %v2519, %v2518
  %2552 = vmatprep.subr.bf16.mxu0 0
  %2553 = vmatpush1.bf16.msra.mxu0 %v2520
  %2554 = vmatprep.subr.bf16.mxu0 0
  %2555 = vmatpush1.bf16.msra.mxu0 %v2521
  %2556 = vmatprep.subr.bf16.mxu0 0
  %2557 = vmatpush1.bf16.msra.mxu0 %v2522
  %2558 = vmatprep.subr.bf16.mxu0 0
  %2559 = vmatpush1.bf16.msra.mxu0 %v2523
  %2560 = vmatprep.subr.bf16.mxu0 0
  %2561 = vmatpush1.bf16.msra.mxu0 %v2524
  %2562 = vmatprep.subr.bf16.mxu0 0
  %2563 = vmatpush1.bf16.msra.mxu0 %v2525
  %2564 = vmatprep.subr.bf16.mxu0 0
  %2565 = vmatpush1.bf16.msra.mxu0 %v2526
  %2566 = vmatprep.subr.bf16.mxu0 0
  %2567 = vmatpush1.bf16.msra.mxu0 %v2527
  %2568 = vmatprep.subr.bf16.mxu0 0
  %2569 = vmatpush1.bf16.msra.mxu0 %v2528
  %2570 = vmatprep.subr.bf16.mxu0 0
  %2571 = vmatpush1.bf16.msra.mxu0 %v2529
  %2572 = vmatprep.subr.bf16.mxu0 0
  %2573 = vmatpush1.bf16.msra.mxu0 %v2530
  %2574 = vmatprep.subr.bf16.mxu0 0
  %2575 = vmatpush1.bf16.msra.mxu0 %v2531
  %2576 = vmatprep.subr.bf16.mxu0 0
  %2577 = vmatpush1.bf16.msra.mxu0 %v2532
  %2578 = vmatprep.subr.bf16.mxu0 0
  %2579 = vmatpush1.bf16.msra.mxu0 %v2533
  %2580 = vmatprep.subr.bf16.mxu0 0
  %2581 = vmatpush1.bf16.msra.mxu0 %v2534
  %2582 = vmatprep.subr.bf16.mxu0 0
  %2583 = vmatpush1.bf16.msra.mxu0 %v2535
  %2584 = vmatprep.mubr.bf16.mxu0 %v2416
  %2585 = vmatmul.mubr.bf16.gmra.mrb[0].mxu0 %v2415
  %v2586 = vpop.f32.mrb[0].mxu0
  %v2587 = vadd.f32 %v2454, %v2586
  %v2588 = vpop.f32.mrb[0].mxu0
  %v2589 = vpop.f32.mrb[0].mxu0
  %v2590 = vpop.f32.mrb[0].mxu0
  %2591 = vdwg.mxu0
  %vm2592 = vcmask 25600
  %2593 = vst.msk [vmem:[%s5] sm:$0x3] %vm2592, %v2587
  // Predicated region
  $region22: #{_lambda_.4} parent=0 // pred_check
    _
  $region23: #{_lambda_.4} parent=0 // pred_check_branch
    %2595 = sbr.rel (0) target = $region25
  $region24: #{_lambda_.4} parent=0 // pred_region
    _
  $region25: #{_lambda_.4} parent=0 // pred_fallthru
    _
  // Predicated region
  $region26: #{_lambda_.4} parent=0 // pred_check
    _
  $region27: #{_lambda_.4} parent=0 // pred_check_branch
    %2597 = sbr.rel (0) target = $region29
  $region28: #{_lambda_.4} parent=0 // pred_region
    _
  $region29: #{_lambda_.4} parent=0 // pred_fallthru
    _

</llo_original>
